<compile_context>
chip_gen: v7x
topology: tpu7x:2x2x1
jax: 0.10.0
libtpu: 0.0.40
codegen_flags: <defaults>
</compile_context>

<pallas_src>
import functools

import jax
import jax.numpy as jnp
import numpy as np
from jax import lax
from jax.experimental import pallas as pl
from jax.experimental.pallas import tpu as pltpu


def _gso_kernel(xf_ref, gso_ref, *, knn, n_valid, row_tile):
    """One (TR, Np) slab of corrcoef + stable-kNN sparsification.

    xf_ref holds the full pre-normalized (row-centered, unit-norm) x.
    """
    i = pl.program_id(0)
    r0 = pl.multiple_of(i * row_tile, row_tile)
    xr = xf_ref[pl.ds(r0, row_tile), :]          # (TR, Dp) rows of this tile
    xf = xf_ref[...]                             # (Np, Dp) all rows (resident)
    npad = xf.shape[0]

    # corrcoef of pre-normalized rows: Gram contracting dim 1 of both operands
    # (no explicit transpose), clipped to [-1, 1] like torch.corrcoef.
    corr = jnp.clip(
        lax.dot_general(xr, xf, (((1,), (1,)), ((), ())),
                        preferred_element_type=jnp.float32),
        -1.0, 1.0)                               # (TR, Np)

    col = lax.broadcasted_iota(jnp.int32, corr.shape, 1)   # loop-invariant
    col_valid = col < n_valid
    # Padded columns get a sentinel above the corr range so they can never be
    # selected (knn+1 <= N guarantees enough unselected valid columns remain).
    work = jnp.where(col_valid, corr, jnp.float32(2.0))

    # Kept neighbours = len(argsort(row)[1:1+knn]) = min(knn, N-1).
    k_steps = min(knn, n_valid - 1)              # static Python int

    def select_min(w):
        cur = jnp.min(w, axis=1, keepdims=True)                          # (TR,1)
        # stable tie-break: smallest column index among the tied minima
        first = jnp.min(jnp.where(w == cur, col, npad), axis=1, keepdims=True)
        return first, jnp.where(col == first, jnp.float32(jnp.inf), w)

    # Peeled t=0: the single smallest entry is selected but NOT kept
    # (torch's [1:1+knn] skips sorted position 0).  Record its column.
    col0, work = select_min(work)

    def body(_, w):
        return select_min(w)[1]

    # TODO(synk): a single-pass (value,index) variadic reduce would halve the
    # XLU reduces per iteration if Mosaic lowers it cleanly (verify first).
    work = lax.fori_loop(0, k_steps, body, work,
                         unroll=True if k_steps <= 8 else 4)

    keep = jnp.logical_and(work == jnp.float32(jnp.inf), col != col0)
    # NOTE: zero-variance rows ride a NaN path (never selected), matching
    # torch.corrcoef semantics.
    # TODO(synk): a compact (values, indices) output (knn per row) would shrink
    # HBM writeback from 4*N^2 to 8*N*knn bytes -- biggest lever on v5e.
    gso_ref[...] = jnp.where(jnp.logical_and(keep, col_valid), corr, 0.0)


def _build_gso_call(kernel, npad, dpad, tr, vmem_limit_bytes, single_buffer_x):
    x_spec_kwargs = {}
    if single_buffer_x:
        # Resident x never changes across grid steps: double-buffering it is
        # pure VMEM waste (matters on v7x's 64 MiB).
        x_spec_kwargs["pipeline_mode"] = pl.Buffered(1)
    return pl.pallas_call(
        kernel,
        out_shape=jax.ShapeDtypeStruct((npad, npad), jnp.float32),
        grid=(npad // tr,),
        in_specs=[pl.BlockSpec((npad, dpad), lambda i: (0, 0), **x_spec_kwargs)],
        out_specs=pl.BlockSpec((tr, npad), lambda i: (i, 0)),
        compiler_params=pltpu.CompilerParams(
            dimension_semantics=("parallel",),   # row tiles shard across TCs
            vmem_limit_bytes=vmem_limit_bytes),
    )


def compute_gso_pallas(x, knn, *, row_tile=128, lane_pad=128):
    """(N, D) -> (N, N) correlation GSO with per-row stable-kNN sparsification."""
    n, d = x.shape
    xf = x.astype(jnp.float32)

    # Hoisted normalization: once here instead of once per grid step.
    # NOTE: zero-variance rows give inf/NaN correlations, like torch.corrcoef.
    xc = xf - jnp.mean(xf, axis=1, keepdims=True)
    x_norm = xc * lax.rsqrt(jnp.sum(xc * xc, axis=1, keepdims=True))

    # Pad AFTER normalization: zero rows/cols are exactly neutral for the Gram
    # products; makes contraction depth and the output slab lane-dense.
    npad = ((n + lane_pad - 1) // lane_pad) * lane_pad
    dpad = ((d + lane_pad - 1) // lane_pad) * lane_pad
    x_pad = jnp.zeros((npad, dpad), jnp.float32).at[:n, :d].set(x_norm)

    tr = min(row_tile, npad)
    if npad >= 8192:                 # v7x (64 MiB VMEM): shrink the output slab
        tr = min(tr, 64)
    assert npad % tr == 0, "row_tile must divide the padded node count"

    # VMEM footprint: resident x + double-buffered (TR, Np) output slab
    # + ~6 live (TR, Np) f32 temporaries inside the kNN loop (+25% slack).
    est = 4 * (npad * dpad + 2 * tr * npad + 6 * tr * npad)
    vmem_limit = int(min(100 * 2**20, max(32 * 2**20, 5 * est // 4)))

    kernel = functools.partial(_gso_kernel, knn=int(knn), n_valid=int(n),
                               row_tile=tr)
    try:
        gso_pad = _build_gso_call(kernel, npad, dpad, tr, vmem_limit,
                                  single_buffer_x=True)(x_pad)
    except Exception:
        # TODO(synk): pipeline_mode=pl.Buffered(1) unsupported on this JAX
        # build; fall back to default (double-buffered) resident x.
        gso_pad = _build_gso_call(kernel, npad, dpad, tr, vmem_limit,
                                  single_buffer_x=False)(x_pad)
    return gso_pad[:n, :n]


class GnnBaseJax:
    """JAX/Pallas port of GnnBase (distance='correlation', sparse='knn')."""

    def __init__(self, embedding_dim, hidden_dim, dropout=0,
                 distance="correlation", sparse="knn", knn=80, threshold=0.5):
        self.embedding_dim = embedding_dim
        self.hidden_dim = hidden_dim
        self.distance = distance
        self.sparse = sparse
        self.threshold = threshold
        self.knn = knn
        self.dropout = dropout
        if distance != "correlation" or sparse != "knn":
            raise NotImplementedError
        # TODO(synk): get_model() is `pass` in the base class -> self.model is
        # None; forward terminates at graph construction, so return the graph.
        self.model = None

    def compute_gso(self, x):
        return compute_gso_pallas(x, self.knn)

    def batch_to_graph(self, x, y=None):
        gso = self.compute_gso(x)
        gso_np = np.asarray(gso)
        # dense_to_sparse (torch_geometric): row-major nonzero coords + values.
        rows, cols = np.nonzero(gso_np)
        edge_index = np.stack([rows, cols], axis=0)
        edge_attr = gso_np[rows, cols]
        return {"x": x, "edge_index": edge_index, "edge_attr": edge_attr,
                "y": y, "gso": gso}

    def forward(self, x):
        return self.batch_to_graph(x)


def _reference_gso(x_np, knn):
    """Pure numpy replica of GnnBase.compute_gso for a correctness check."""
    c = np.corrcoef(x_np.astype(np.float64))
    c = np.clip(c, -1.0, 1.0)
    out = np.zeros_like(c)
    for i in range(c.shape[0]):
        closest = np.argsort(c[i], kind="stable")[1:1 + knn]
        out[i][closest] = c[i][closest]
    return out.astype(np.float32)


if __name__ == "__main__":
    # Small shapes consistent with the module: N=16 nodes, embedding_dim=32.
    N, EMBEDDING_DIM, HIDDEN_DIM, KNN = 16, 32, 64, 4

    key = jax.random.PRNGKey(0)
    k1, k2 = jax.random.split(key)
    x = jax.random.normal(k1, (N, EMBEDDING_DIM), dtype=jnp.float32)

    model = GnnBaseJax(EMBEDDING_DIM, HIDDEN_DIM, knn=KNN)
    graph = model.forward(x)
    gso = jax.block_until_ready(graph["gso"])
    ref = _reference_gso(np.asarray(x), KNN)
    np.testing.assert_allclose(np.asarray(gso), ref, rtol=1e-4, atol=1e-5)
    # explicit kNN set-membership check (same number of kept entries)
    assert int((np.asarray(gso) != 0).sum()) == int((ref != 0).sum())

    # Second check: N not a multiple of the lane width exercises the padding path.
    x2 = jax.random.normal(k2, (50, EMBEDDING_DIM), dtype=jnp.float32)
    gso2 = jax.block_until_ready(compute_gso_pallas(x2, 7))
    ref2 = _reference_gso(np.asarray(x2), 7)
    np.testing.assert_allclose(np.asarray(gso2), ref2, rtol=1e-4, atol=1e-5)

    print("KERNEL_OK")
</pallas_src>

<mosaic_0001>
module attributes {stable_mosaic.version = 11 : i64} {
  func.func @_gso_kernel(%arg0: i32, %arg1: memref<128x128xf32, #tpu.memory_space<vmem>>, %arg2: memref<128x128xf32, #tpu.memory_space<vmem>>) attributes {dimension_semantics = [#tpu.dimension_semantics<parallel>], iteration_bounds = array<i64: 1>, scalar_prefetch = 0 : i64, scratch_operands = 0 : i64, tpu.core_type = #tpu.core_type<tc>, window_params = [{pipeline_mode = #tpu.pipeline_mode<synchronous>, transform_indices = @transform_0, window_bounds = array<i64: 128, 128>}, {transform_indices = @transform_1, window_bounds = array<i64: 128, 128>}]} {
    %c128_i32 = arith.constant 128 : i32
    %0 = arith.muli %arg0, %c128_i32 : i32
    %1 = tpu.assume_multiple %0, 128 : i32
    %2 = arith.index_cast %1 : i32 to index
    %c0 = arith.constant 0 : index
    %3 = vector.load %arg1[%2, %c0] : memref<128x128xf32, #tpu.memory_space<vmem>>, vector<128x128xf32>
    %c0_0 = arith.constant 0 : index
    %c0_1 = arith.constant 0 : index
    %4 = vector.load %arg1[%c0_0, %c0_1] : memref<128x128xf32, #tpu.memory_space<vmem>>, vector<128x128xf32>
    %cst = arith.constant dense<0.000000e+00> : vector<128x128xf32>
    %5 = tpu.matmul %3, %4, %cst {dimension_numbers = #tpu.dot_dimension_numbers<[1], [1], [0], [0], [0, 0, 1, 0], [], []>} : vector<128x128xf32>, vector<128x128xf32>, vector<128x128xf32> -> vector<128x128xf32>
    %cst_2 = arith.constant -1.000000e+00 : f32
    %cst_3 = arith.constant 1.000000e+00 : f32
    %6 = vector.broadcast %cst_2 : f32 to vector<128x128xf32>
    %7 = arith.maximumf %6, %5 : vector<128x128xf32>
    %8 = vector.broadcast %cst_3 : f32 to vector<128x128xf32>
    %9 = arith.minimumf %8, %7 : vector<128x128xf32>
    %10 = tpu.iota {dimensions = array<i32: 1>} : vector<128x128xi32>
    %c16_i32 = arith.constant 16 : i32
    %11 = vector.broadcast %c16_i32 : i32 to vector<128x128xi32>
    %12 = arith.cmpi slt, %10, %11 : vector<128x128xi32>
    %cst_4 = arith.constant 2.000000e+00 : f32
    %13 = vector.broadcast %cst_4 : f32 to vector<128x128xf32>
    %14 = arith.select %12, %9, %13 : vector<128x128xi1>, vector<128x128xf32>
    %cst_5 = arith.constant dense<0x7F800000> : vector<128xf32>
    %15 = vector.multi_reduction <minimumf>, %14, %cst_5 [1] : vector<128x128xf32> to vector<128xf32>
    %16 = vector.shape_cast %15 : vector<128xf32> to vector<128x1xf32>
    %17 = vector.broadcast %16 : vector<128x1xf32> to vector<128x128xf32>
    %18 = arith.cmpf oeq, %14, %17 : vector<128x128xf32>
    %c128_i32_6 = arith.constant 128 : i32
    %19 = vector.broadcast %c128_i32_6 : i32 to vector<128x128xi32>
    %20 = arith.select %18, %10, %19 : vector<128x128xi1>, vector<128x128xi32>
    %cst_7 = arith.constant dense<2147483647> : vector<128xi32>
    %21 = vector.multi_reduction <minsi>, %20, %cst_7 [1] : vector<128x128xi32> to vector<128xi32>
    %22 = vector.shape_cast %21 : vector<128xi32> to vector<128x1xi32>
    %23 = vector.broadcast %22 : vector<128x1xi32> to vector<128x128xi32>
    %24 = arith.cmpi eq, %10, %23 : vector<128x128xi32>
    %cst_8 = arith.constant 0x7F800000 : f32
    %25 = vector.broadcast %cst_8 : f32 to vector<128x128xf32>
    %26 = arith.select %24, %25, %14 : vector<128x128xi1>, vector<128x128xf32>
    %c0_i32 = arith.constant 0 : i32
    %cst_9 = arith.constant dense<0x7F800000> : vector<128xf32>
    %27 = vector.multi_reduction <minimumf>, %26, %cst_9 [1] : vector<128x128xf32> to vector<128xf32>
    %28 = vector.shape_cast %27 : vector<128xf32> to vector<128x1xf32>
    %29 = vector.broadcast %28 : vector<128x1xf32> to vector<128x128xf32>
    %30 = arith.cmpf oeq, %26, %29 : vector<128x128xf32>
    %c128_i32_10 = arith.constant 128 : i32
    %31 = vector.broadcast %c128_i32_10 : i32 to vector<128x128xi32>
    %32 = arith.select %30, %10, %31 : vector<128x128xi1>, vector<128x128xi32>
    %cst_11 = arith.constant dense<2147483647> : vector<128xi32>
    %33 = vector.multi_reduction <minsi>, %32, %cst_11 [1] : vector<128x128xi32> to vector<128xi32>
    %34 = vector.shape_cast %33 : vector<128xi32> to vector<128x1xi32>
    %35 = vector.broadcast %34 : vector<128x1xi32> to vector<128x128xi32>
    %36 = arith.cmpi eq, %10, %35 : vector<128x128xi32>
    %cst_12 = arith.constant 0x7F800000 : f32
    %37 = vector.broadcast %cst_12 : f32 to vector<128x128xf32>
    %38 = arith.select %36, %37, %26 : vector<128x128xi1>, vector<128x128xf32>
    %c1_i32 = arith.constant 1 : i32
    %cst_13 = arith.constant dense<0x7F800000> : vector<128xf32>
    %39 = vector.multi_reduction <minimumf>, %38, %cst_13 [1] : vector<128x128xf32> to vector<128xf32>
    %40 = vector.shape_cast %39 : vector<128xf32> to vector<128x1xf32>
    %41 = vector.broadcast %40 : vector<128x1xf32> to vector<128x128xf32>
    %42 = arith.cmpf oeq, %38, %41 : vector<128x128xf32>
    %c128_i32_14 = arith.constant 128 : i32
    %43 = vector.broadcast %c128_i32_14 : i32 to vector<128x128xi32>
    %44 = arith.select %42, %10, %43 : vector<128x128xi1>, vector<128x128xi32>
    %cst_15 = arith.constant dense<2147483647> : vector<128xi32>
    %45 = vector.multi_reduction <minsi>, %44, %cst_15 [1] : vector<128x128xi32> to vector<128xi32>
    %46 = vector.shape_cast %45 : vector<128xi32> to vector<128x1xi32>
    %47 = vector.broadcast %46 : vector<128x1xi32> to vector<128x128xi32>
    %48 = arith.cmpi eq, %10, %47 : vector<128x128xi32>
    %cst_16 = arith.constant 0x7F800000 : f32
    %49 = vector.broadcast %cst_16 : f32 to vector<128x128xf32>
    %50 = arith.select %48, %49, %38 : vector<128x128xi1>, vector<128x128xf32>
    %c2_i32 = arith.constant 2 : i32
    %cst_17 = arith.constant dense<0x7F800000> : vector<128xf32>
    %51 = vector.multi_reduction <minimumf>, %50, %cst_17 [1] : vector<128x128xf32> to vector<128xf32>
    %52 = vector.shape_cast %51 : vector<128xf32> to vector<128x1xf32>
    %53 = vector.broadcast %52 : vector<128x1xf32> to vector<128x128xf32>
    %54 = arith.cmpf oeq, %50, %53 : vector<128x128xf32>
    %c128_i32_18 = arith.constant 128 : i32
    %55 = vector.broadcast %c128_i32_18 : i32 to vector<128x128xi32>
    %56 = arith.select %54, %10, %55 : vector<128x128xi1>, vector<128x128xi32>
    %cst_19 = arith.constant dense<2147483647> : vector<128xi32>
    %57 = vector.multi_reduction <minsi>, %56, %cst_19 [1] : vector<128x128xi32> to vector<128xi32>
    %58 = vector.shape_cast %57 : vector<128xi32> to vector<128x1xi32>
    %59 = vector.broadcast %58 : vector<128x1xi32> to vector<128x128xi32>
    %60 = arith.cmpi eq, %10, %59 : vector<128x128xi32>
    %cst_20 = arith.constant 0x7F800000 : f32
    %61 = vector.broadcast %cst_20 : f32 to vector<128x128xf32>
    %62 = arith.select %60, %61, %50 : vector<128x128xi1>, vector<128x128xf32>
    %c3_i32 = arith.constant 3 : i32
    %cst_21 = arith.constant dense<0x7F800000> : vector<128xf32>
    %63 = vector.multi_reduction <minimumf>, %62, %cst_21 [1] : vector<128x128xf32> to vector<128xf32>
    %64 = vector.shape_cast %63 : vector<128xf32> to vector<128x1xf32>
    %65 = vector.broadcast %64 : vector<128x1xf32> to vector<128x128xf32>
    %66 = arith.cmpf oeq, %62, %65 : vector<128x128xf32>
    %c128_i32_22 = arith.constant 128 : i32
    %67 = vector.broadcast %c128_i32_22 : i32 to vector<128x128xi32>
    %68 = arith.select %66, %10, %67 : vector<128x128xi1>, vector<128x128xi32>
    %cst_23 = arith.constant dense<2147483647> : vector<128xi32>
    %69 = vector.multi_reduction <minsi>, %68, %cst_23 [1] : vector<128x128xi32> to vector<128xi32>
    %70 = vector.shape_cast %69 : vector<128xi32> to vector<128x1xi32>
    %71 = vector.broadcast %70 : vector<128x1xi32> to vector<128x128xi32>
    %72 = arith.cmpi eq, %10, %71 : vector<128x128xi32>
    %cst_24 = arith.constant 0x7F800000 : f32
    %73 = vector.broadcast %cst_24 : f32 to vector<128x128xf32>
    %74 = arith.select %72, %73, %62 : vector<128x128xi1>, vector<128x128xf32>
    %cst_25 = arith.constant 0x7F800000 : f32
    %75 = vector.broadcast %cst_25 : f32 to vector<128x128xf32>
    %76 = arith.cmpf oeq, %74, %75 : vector<128x128xf32>
    %77 = vector.broadcast %22 : vector<128x1xi32> to vector<128x128xi32>
    %78 = arith.cmpi ne, %10, %77 : vector<128x128xi32>
    %79 = arith.andi %76, %78 : vector<128x128xi1>
    %80 = arith.andi %79, %12 : vector<128x128xi1>
    %cst_26 = arith.constant 0.000000e+00 : f32
    %81 = vector.broadcast %cst_26 : f32 to vector<128x128xf32>
    %82 = arith.select %80, %9, %81 : vector<128x128xi1>, vector<128x128xf32>
    %c0_27 = arith.constant 0 : index
    %c0_28 = arith.constant 0 : index
    %83 = vector.load %arg2[%c0_27, %c0_28] : memref<128x128xf32, #tpu.memory_space<vmem>>, vector<128x128xf32>
    tpu.vector_store %arg2[%c0_27, %c0_28], %82 {strides = array<i32>} : memref<128x128xf32, #tpu.memory_space<vmem>>, vector<128x128xf32>,
    return
  }
  func.func @transform_0(%arg0: i32) -> (i32, i32) {
    %c0_i32 = arith.constant 0 : i32
    %c0_i32_0 = arith.constant 0 : i32
    %c0_i32_1 = arith.constant 0 : i32
    return %c0_i32, %c0_i32_0 : i32, i32
  }
  func.func @transform_1(%arg0: i32) -> (i32, i32) {
    %c0_i32 = arith.constant 0 : i32
    %c0_i32_0 = arith.constant 0 : i32
    return %arg0, %c0_i32 : i32, i32
  }
}

module attributes {stable_mosaic.version = 11 : i64} {
  func.func @_gso_kernel(%arg0: i32, %arg1: memref<128x128xf32, #tpu.memory_space<vmem>>, %arg2: memref<128x128xf32, #tpu.memory_space<vmem>>) attributes {dimension_semantics = [#tpu.dimension_semantics<parallel>], iteration_bounds = array<i64: 1>, scalar_prefetch = 0 : i64, scratch_operands = 0 : i64, tpu.core_type = #tpu.core_type<tc>, window_params = [{pipeline_mode = #tpu.pipeline_mode<synchronous>, transform_indices = @transform_0, window_bounds = array<i64: 128, 128>}, {transform_indices = @transform_1, window_bounds = array<i64: 128, 128>}]} {
    %c128_i32 = arith.constant 128 : i32
    %0 = arith.muli %arg0, %c128_i32 : i32
    %1 = tpu.assume_multiple %0, 128 : i32
    %2 = arith.index_cast %1 : i32 to index
    %c0 = arith.constant 0 : index
    %3 = vector.load %arg1[%2, %c0] : memref<128x128xf32, #tpu.memory_space<vmem>>, vector<128x128xf32>
    %c0_0 = arith.constant 0 : index
    %c0_1 = arith.constant 0 : index
    %4 = vector.load %arg1[%c0_0, %c0_1] : memref<128x128xf32, #tpu.memory_space<vmem>>, vector<128x128xf32>
    %cst = arith.constant dense<0.000000e+00> : vector<128x128xf32>
    %5 = tpu.matmul %3, %4, %cst {dimension_numbers = #tpu.dot_dimension_numbers<[1], [1], [0], [0], [0, 0, 1, 0], [], []>} : vector<128x128xf32>, vector<128x128xf32>, vector<128x128xf32> -> vector<128x128xf32>
    %cst_2 = arith.constant -1.000000e+00 : f32
    %cst_3 = arith.constant 1.000000e+00 : f32
    %6 = vector.broadcast %cst_2 : f32 to vector<128x128xf32>
    %7 = arith.maximumf %6, %5 : vector<128x128xf32>
    %8 = vector.broadcast %cst_3 : f32 to vector<128x128xf32>
    %9 = arith.minimumf %8, %7 : vector<128x128xf32>
    %10 = tpu.iota {dimensions = array<i32: 1>} : vector<128x128xi32>
    %c16_i32 = arith.constant 16 : i32
    %11 = vector.broadcast %c16_i32 : i32 to vector<128x128xi32>
    %12 = arith.cmpi slt, %10, %11 : vector<128x128xi32>
    %cst_4 = arith.constant 2.000000e+00 : f32
    %13 = vector.broadcast %cst_4 : f32 to vector<128x128xf32>
    %14 = arith.select %12, %9, %13 : vector<128x128xi1>, vector<128x128xf32>
    %cst_5 = arith.constant dense<0x7F800000> : vector<128xf32>
    %15 = vector.multi_reduction <minimumf>, %14, %cst_5 [1] : vector<128x128xf32> to vector<128xf32>
    %16 = vector.shape_cast %15 : vector<128xf32> to vector<128x1xf32>
    %17 = vector.broadcast %16 : vector<128x1xf32> to vector<128x128xf32>
    %18 = arith.cmpf oeq, %14, %17 : vector<128x128xf32>
    %c128_i32_6 = arith.constant 128 : i32
    %19 = vector.broadcast %c128_i32_6 : i32 to vector<128x128xi32>
    %20 = arith.select %18, %10, %19 : vector<128x128xi1>, vector<128x128xi32>
    %cst_7 = arith.constant dense<2147483647> : vector<128xi32>
    %21 = vector.multi_reduction <minsi>, %20, %cst_7 [1] : vector<128x128xi32> to vector<128xi32>
    %22 = vector.shape_cast %21 : vector<128xi32> to vector<128x1xi32>
    %23 = vector.broadcast %22 : vector<128x1xi32> to vector<128x128xi32>
    %24 = arith.cmpi eq, %10, %23 : vector<128x128xi32>
    %cst_8 = arith.constant 0x7F800000 : f32
    %25 = vector.broadcast %cst_8 : f32 to vector<128x128xf32>
    %26 = arith.select %24, %25, %14 : vector<128x128xi1>, vector<128x128xf32>
    %c0_i32 = arith.constant 0 : i32
    %cst_9 = arith.constant dense<0x7F800000> : vector<128xf32>
    %27 = vector.multi_reduction <minimumf>, %26, %cst_9 [1] : vector<128x128xf32> to vector<128xf32>
    %28 = vector.shape_cast %27 : vector<128xf32> to vector<128x1xf32>
    %29 = vector.broadcast %28 : vector<128x1xf32> to vector<128x128xf32>
    %30 = arith.cmpf oeq, %26, %29 : vector<128x128xf32>
    %c128_i32_10 = arith.constant 128 : i32
    %31 = vector.broadcast %c128_i32_10 : i32 to vector<128x128xi32>
    %32 = arith.select %30, %10, %31 : vector<128x128xi1>, vector<128x128xi32>
    %cst_11 = arith.constant dense<2147483647> : vector<128xi32>
    %33 = vector.multi_reduction <minsi>, %32, %cst_11 [1] : vector<128x128xi32> to vector<128xi32>
    %34 = vector.shape_cast %33 : vector<128xi32> to vector<128x1xi32>
    %35 = vector.broadcast %34 : vector<128x1xi32> to vector<128x128xi32>
    %36 = arith.cmpi eq, %10, %35 : vector<128x128xi32>
    %cst_12 = arith.constant 0x7F800000 : f32
    %37 = vector.broadcast %cst_12 : f32 to vector<128x128xf32>
    %38 = arith.select %36, %37, %26 : vector<128x128xi1>, vector<128x128xf32>
    %c1_i32 = arith.constant 1 : i32
    %cst_13 = arith.constant dense<0x7F800000> : vector<128xf32>
    %39 = vector.multi_reduction <minimumf>, %38, %cst_13 [1] : vector<128x128xf32> to vector<128xf32>
    %40 = vector.shape_cast %39 : vector<128xf32> to vector<128x1xf32>
    %41 = vector.broadcast %40 : vector<128x1xf32> to vector<128x128xf32>
    %42 = arith.cmpf oeq, %38, %41 : vector<128x128xf32>
    %c128_i32_14 = arith.constant 128 : i32
    %43 = vector.broadcast %c128_i32_14 : i32 to vector<128x128xi32>
    %44 = arith.select %42, %10, %43 : vector<128x128xi1>, vector<128x128xi32>
    %cst_15 = arith.constant dense<2147483647> : vector<128xi32>
    %45 = vector.multi_reduction <minsi>, %44, %cst_15 [1] : vector<128x128xi32> to vector<128xi32>
    %46 = vector.shape_cast %45 : vector<128xi32> to vector<128x1xi32>
    %47 = vector.broadcast %46 : vector<128x1xi32> to vector<128x128xi32>
    %48 = arith.cmpi eq, %10, %47 : vector<128x128xi32>
    %cst_16 = arith.constant 0x7F800000 : f32
    %49 = vector.broadcast %cst_16 : f32 to vector<128x128xf32>
    %50 = arith.select %48, %49, %38 : vector<128x128xi1>, vector<128x128xf32>
    %c2_i32 = arith.constant 2 : i32
    %cst_17 = arith.constant dense<0x7F800000> : vector<128xf32>
    %51 = vector.multi_reduction <minimumf>, %50, %cst_17 [1] : vector<128x128xf32> to vector<128xf32>
    %52 = vector.shape_cast %51 : vector<128xf32> to vector<128x1xf32>
    %53 = vector.broadcast %52 : vector<128x1xf32> to vector<128x128xf32>
    %54 = arith.cmpf oeq, %50, %53 : vector<128x128xf32>
    %c128_i32_18 = arith.constant 128 : i32
    %55 = vector.broadcast %c128_i32_18 : i32 to vector<128x128xi32>
    %56 = arith.select %54, %10, %55 : vector<128x128xi1>, vector<128x128xi32>
    %cst_19 = arith.constant dense<2147483647> : vector<128xi32>
    %57 = vector.multi_reduction <minsi>, %56, %cst_19 [1] : vector<128x128xi32> to vector<128xi32>
    %58 = vector.shape_cast %57 : vector<128xi32> to vector<128x1xi32>
    %59 = vector.broadcast %58 : vector<128x1xi32> to vector<128x128xi32>
    %60 = arith.cmpi eq, %10, %59 : vector<128x128xi32>
    %cst_20 = arith.constant 0x7F800000 : f32
    %61 = vector.broadcast %cst_20 : f32 to vector<128x128xf32>
    %62 = arith.select %60, %61, %50 : vector<128x128xi1>, vector<128x128xf32>
    %c3_i32 = arith.constant 3 : i32
    %cst_21 = arith.constant dense<0x7F800000> : vector<128xf32>
    %63 = vector.multi_reduction <minimumf>, %62, %cst_21 [1] : vector<128x128xf32> to vector<128xf32>
    %64 = vector.shape_cast %63 : vector<128xf32> to vector<128x1xf32>
    %65 = vector.broadcast %64 : vector<128x1xf32> to vector<128x128xf32>
    %66 = arith.cmpf oeq, %62, %65 : vector<128x128xf32>
    %c128_i32_22 = arith.constant 128 : i32
    %67 = vector.broadcast %c128_i32_22 : i32 to vector<128x128xi32>
    %68 = arith.select %66, %10, %67 : vector<128x128xi1>, vector<128x128xi32>
    %cst_23 = arith.constant dense<2147483647> : vector<128xi32>
    %69 = vector.multi_reduction <minsi>, %68, %cst_23 [1] : vector<128x128xi32> to vector<128xi32>
    %70 = vector.shape_cast %69 : vector<128xi32> to vector<128x1xi32>
    %71 = vector.broadcast %70 : vector<128x1xi32> to vector<128x128xi32>
    %72 = arith.cmpi eq, %10, %71 : vector<128x128xi32>
    %cst_24 = arith.constant 0x7F800000 : f32
    %73 = vector.broadcast %cst_24 : f32 to vector<128x128xf32>
    %74 = arith.select %72, %73, %62 : vector<128x128xi1>, vector<128x128xf32>
    %cst_25 = arith.constant 0x7F800000 : f32
    %75 = vector.broadcast %cst_25 : f32 to vector<128x128xf32>
    %76 = arith.cmpf oeq, %74, %75 : vector<128x128xf32>
    %77 = vector.broadcast %22 : vector<128x1xi32> to vector<128x128xi32>
    %78 = arith.cmpi ne, %10, %77 : vector<128x128xi32>
    %79 = arith.andi %76, %78 : vector<128x128xi1>
    %80 = arith.andi %79, %12 : vector<128x128xi1>
    %cst_26 = arith.constant 0.000000e+00 : f32
    %81 = vector.broadcast %cst_26 : f32 to vector<128x128xf32>
    %82 = arith.select %80, %9, %81 : vector<128x128xi1>, vector<128x128xf32>
    %c0_27 = arith.constant 0 : index
    %c0_28 = arith.constant 0 : index
    %83 = vector.load %arg2[%c0_27, %c0_28] : memref<128x128xf32, #tpu.memory_space<vmem>>, vector<128x128xf32>
    tpu.vector_store %arg2[%c0_27, %c0_28], %82 {strides = array<i32>} : memref<128x128xf32, #tpu.memory_space<vmem>>, vector<128x128xf32>,
    return
  }
  func.func @transform_0(%arg0: i32) -> (i32, i32) {
    %c0_i32 = arith.constant 0 : i32
    %c0_i32_0 = arith.constant 0 : i32
    %c0_i32_1 = arith.constant 0 : i32
    return %c0_i32, %c0_i32_0 : i32, i32
  }
  func.func @transform_1(%arg0: i32) -> (i32, i32) {
    %c0_i32 = arith.constant 0 : i32
    %c0_i32_0 = arith.constant 0 : i32
    return %arg0, %c0_i32 : i32, i32
  }
}

</mosaic_0001>

<llo_original>
// kernel: tpu_custom_call.1
$region0: #{tpu_custom_call.1}
  #allocation0 [shape = 'u32[]', space=smem, size = 0x4, offset = 0x4, fixed_abs, tag = 'smem constant byte address 0x4 - core index']
  #allocation1 [shape = 'u32[144,128]{1,0:T(1,128)}', space=vmem, size = 0x12000, scoped, tag = 'internal scratch']
  %s0 = inlined_call_operand.hbm [shape: f32[128,128], index: 0, kind: input, shape index: {}]
  %s1 = inlined_call_operand.hbm [shape: f32[128,128], index: 1, kind: output, shape index: {}]
  %s2 = sld [smem:[#allocation0]]
  $region18: #{tpu_custom_call.1} parent=0
    _
  %s4 = ssub.s32 1, %s2
  %s5 = scalar_select 0, %s4, %s2
  $region1: #{tpu_custom_call.1} parent=0
    #allocation2 [shape = 'u8[65536]{0}', space=vmem, size = 0x10000, scoped, tag = 'input window, operand 0, single buffered']
    #allocation3 [shape = 's32[1]{0}', space=sflag, size = 0x4, scoped, tag = 'scoped memory for tpu_custom_call.1']
    #allocation4 [shape = 's32[1]{0}', space=sflag, size = 0x4, scoped, tag = 'scoped memory for tpu_custom_call.1']
    #allocation5 [shape = 'u8[65536]{0}', space=vmem, size = 0x10000, scoped, tag = 'output window, operand 0, single buffered']
    %6 = vsyncpa [#allocation3], 0
    %7 = vsyncpa [#allocation4], 0
    // Predicated region
    $region2: #{tpu_custom_call.1} parent=1 // pred_check
      _
    $region3: #{tpu_custom_call.1} parent=1 // pred_check_branch
      %9 = sbr.rel (0) target = $region5
    $region4: #{tpu_custom_call.1} parent=1 // pred_region
      %s11 = ssub.s32 2048, 2048
      %12 = vsyncadd [#allocation3], %s11
      %s13 = sshll.u32 [#allocation2], 4
      %s14 = int_to_ptr.vmem [resolvable:$true] %s13
      %19 = dma.hbm_to_vmem [thread:$0]  %s0, 2048, %s14, [#allocation3], 128, 128, 8
    $region5: #{tpu_custom_call.1} parent=1 // pred_fallthru
      _
    // Predicated region
    $region6: #{tpu_custom_call.1} parent=1 // pred_check
      _
    $region7: #{tpu_custom_call.1} parent=1 // pred_check_branch
      %21 = sbr.rel (0) target = $region9
    $region8: #{tpu_custom_call.1} parent=1 // pred_region
      %22 = dma.done [#allocation3], 2048
    $region9: #{tpu_custom_call.1} parent=1 // pred_fallthru
      _
    %s23 = smul.u32 0, 128
    %s24 = scalar_lea.vmem [#allocation2], %s23
    %v25 = vld [vmem:[%s24] sm:$0xff]
    %v26 = vld [vmem:[%s24 + $0x8] sm:$0xff]
    %v27 = vld [vmem:[%s24 + $0x10] sm:$0xff]
    %v28 = vld [vmem:[%s24 + $0x18] sm:$0xff]
    %v29 = vld [vmem:[%s24 + $0x20] sm:$0xff]
    %v30 = vld [vmem:[%s24 + $0x28] sm:$0xff]
    %v31 = vld [vmem:[%s24 + $0x30] sm:$0xff]
    %v32 = vld [vmem:[%s24 + $0x38] sm:$0xff]
    %v33 = vld [vmem:[%s24 + $0x40] sm:$0xff]
    %v34 = vld [vmem:[%s24 + $0x48] sm:$0xff]
    %v35 = vld [vmem:[%s24 + $0x50] sm:$0xff]
    %v36 = vld [vmem:[%s24 + $0x58] sm:$0xff]
    %v37 = vld [vmem:[%s24 + $0x60] sm:$0xff]
    %v38 = vld [vmem:[%s24 + $0x68] sm:$0xff]
    %v39 = vld [vmem:[%s24 + $0x70] sm:$0xff]
    %v40 = vld [vmem:[%s24 + $0x78] sm:$0xff]
    %v41 = vld [vmem:[#allocation2] sm:$0xff]
    %v42 = vld [vmem:[#allocation2 + $0x8] sm:$0xff]
    %v43 = vld [vmem:[#allocation2 + $0x10] sm:$0xff]
    %v44 = vld [vmem:[#allocation2 + $0x18] sm:$0xff]
    %v45 = vld [vmem:[#allocation2 + $0x20] sm:$0xff]
    %v46 = vld [vmem:[#allocation2 + $0x28] sm:$0xff]
    %v47 = vld [vmem:[#allocation2 + $0x30] sm:$0xff]
    %v48 = vld [vmem:[#allocation2 + $0x38] sm:$0xff]
    %v49 = vld [vmem:[#allocation2 + $0x40] sm:$0xff]
    %v50 = vld [vmem:[#allocation2 + $0x48] sm:$0xff]
    %v51 = vld [vmem:[#allocation2 + $0x50] sm:$0xff]
    %v52 = vld [vmem:[#allocation2 + $0x58] sm:$0xff]
    %v53 = vld [vmem:[#allocation2 + $0x60] sm:$0xff]
    %v54 = vld [vmem:[#allocation2 + $0x68] sm:$0xff]
    %v55 = vld [vmem:[#allocation2 + $0x70] sm:$0xff]
    %v56 = vld [vmem:[#allocation2 + $0x78] sm:$0xff]
    %57 = vmatprep.subr.mxu0 0.0
    %58 = vmatpush1.xpose.msra.mxu0 %v41
    %59 = vmatprep.subr.mxu0 0.0
    %60 = vmatpush1.xpose.msra.mxu0 %v42
    %61 = vmatprep.subr.mxu0 0.0
    %62 = vmatpush1.xpose.msra.mxu0 %v43
    %63 = vmatprep.subr.mxu0 0.0
    %64 = vmatpush1.xpose.msra.mxu0 %v44
    %65 = vmatprep.subr.mxu0 0.0
    %66 = vmatpush1.xpose.msra.mxu0 %v45
    %67 = vmatprep.subr.mxu0 0.0
    %68 = vmatpush1.xpose.msra.mxu0 %v46
    %69 = vmatprep.subr.mxu0 0.0
    %70 = vmatpush1.xpose.msra.mxu0 %v47
    %71 = vmatprep.subr.mxu0 0.0
    %72 = vmatpush1.xpose.msra.mxu0 %v48
    %73 = vmatprep.subr.mxu0 0.0
    %74 = vmatpush1.xpose.msra.mxu0 %v49
    %75 = vmatprep.subr.mxu0 0.0
    %76 = vmatpush1.xpose.msra.mxu0 %v50
    %77 = vmatprep.subr.mxu0 0.0
    %78 = vmatpush1.xpose.msra.mxu0 %v51
    %79 = vmatprep.subr.mxu0 0.0
    %80 = vmatpush1.xpose.msra.mxu0 %v52
    %81 = vmatprep.subr.mxu0 0.0
    %82 = vmatpush1.xpose.msra.mxu0 %v53
    %83 = vmatprep.subr.mxu0 0.0
    %84 = vmatpush1.xpose.msra.mxu0 %v54
    %85 = vmatprep.subr.mxu0 0.0
    %86 = vmatpush1.xpose.msra.mxu0 %v55
    %87 = vmatprep.subr.mxu0 0.0
    %88 = vmatpush1.xpose.msra.mxu0 %v56
    %89 = vmatprep.subr.mxu0 0.0
    %90 = vmatpush1.xpose.msra.mxu0 0.0
    %91 = vmatprep.subr.mxu0 0.0
    %92 = vmatpush1.xpose.msra.mxu0 0.0
    %93 = vmatprep.subr.mxu0 0.0
    %94 = vmatpush1.xpose.msra.mxu0 0.0
    %95 = vmatprep.subr.mxu0 0.0
    %96 = vmatpush1.xpose.msra.mxu0 0.0
    %97 = vmatprep.subr.mxu0 0.0
    %98 = vmatpush1.xpose.msra.mxu0 0.0
    %99 = vmatprep.subr.mxu0 0.0
    %100 = vmatpush1.xpose.msra.mxu0 0.0
    %101 = vmatprep.subr.mxu0 0.0
    %102 = vmatpush1.xpose.msra.mxu0 0.0
    %103 = vmatprep.subr.mxu0 0.0
    %104 = vmatpush1.xpose.msra.mxu0 0.0
    %105 = vmatprep.subr.mxu0 0.0
    %106 = vmatpush1.xpose.msra.mxu0 0.0
    %107 = vmatprep.subr.mxu0 0.0
    %108 = vmatpush1.xpose.msra.mxu0 0.0
    %109 = vmatprep.subr.mxu0 0.0
    %110 = vmatpush1.xpose.msra.mxu0 0.0
    %111 = vmatprep.subr.mxu0 0.0
    %112 = vmatpush1.xpose.msra.mxu0 0.0
    %113 = vmatprep.subr.mxu0 0.0
    %114 = vmatpush1.xpose.msra.mxu0 0.0
    %115 = vmatprep.subr.mxu0 0.0
    %116 = vmatpush1.xpose.msra.mxu0 0.0
    %117 = vmatprep.subr.mxu0 0.0
    %118 = vmatpush1.xpose.msra.mxu0 0.0
    %119 = vmatprep.subr.mxu0 0.0
    %120 = vmatpush1.xpose.msra.mxu0 0.0
    %121 = vmatprep.mubr.f32.mxu0 0.0
    %122 = vmatmul.mubr.f32.gmra.mrb[0].mxu0 %v25
    %v123 = vpop.f32.mrb[0].mxu0
    %v124 = vadd.f32 0.0, %v123
    %v125 = vpop.f32.mrb[0].mxu0
    %126 = vmatprep.mubr.f32.mxu0 0.0
    %127 = vmatmul.mubr.f32.gmra.mrb[0].mxu0 %v26
    %v128 = vpop.f32.mrb[0].mxu0
    %v129 = vadd.f32 0.0, %v128
    %v130 = vpop.f32.mrb[0].mxu0
    %131 = vmatprep.mubr.f32.mxu0 0.0
    %132 = vmatmul.mubr.f32.gmra.mrb[0].mxu0 %v27
    %v133 = vpop.f32.mrb[0].mxu0
    %v134 = vadd.f32 0.0, %v133
    %v135 = vpop.f32.mrb[0].mxu0
    %136 = vmatprep.mubr.f32.mxu0 0.0
    %137 = vmatmul.mubr.f32.gmra.mrb[0].mxu0 %v28
    %v138 = vpop.f32.mrb[0].mxu0
    %v139 = vadd.f32 0.0, %v138
    %v140 = vpop.f32.mrb[0].mxu0
    %141 = vmatprep.mubr.f32.mxu0 0.0
    %142 = vmatmul.mubr.f32.gmra.mrb[0].mxu0 %v29
    %v143 = vpop.f32.mrb[0].mxu0
    %v144 = vadd.f32 0.0, %v143
    %v145 = vpop.f32.mrb[0].mxu0
    %146 = vmatprep.mubr.f32.mxu0 0.0
    %147 = vmatmul.mubr.f32.gmra.mrb[0].mxu0 %v30
    %v148 = vpop.f32.mrb[0].mxu0
    %v149 = vadd.f32 0.0, %v148
    %v150 = vpop.f32.mrb[0].mxu0
    %151 = vmatprep.mubr.f32.mxu0 0.0
    %152 = vmatmul.mubr.f32.gmra.mrb[0].mxu0 %v31
    %v153 = vpop.f32.mrb[0].mxu0
    %v154 = vadd.f32 0.0, %v153
    %v155 = vpop.f32.mrb[0].mxu0
    %156 = vmatprep.mubr.f32.mxu0 0.0
    %157 = vmatmul.mubr.f32.gmra.mrb[0].mxu0 %v32
    %v158 = vpop.f32.mrb[0].mxu0
    %v159 = vadd.f32 0.0, %v158
    %v160 = vpop.f32.mrb[0].mxu0
    %161 = vmatprep.mubr.f32.mxu0 0.0
    %162 = vmatmul.mubr.f32.gmra.mrb[0].mxu0 %v33
    %v163 = vpop.f32.mrb[0].mxu0
    %v164 = vadd.f32 0.0, %v163
    %v165 = vpop.f32.mrb[0].mxu0
    %166 = vmatprep.mubr.f32.mxu0 0.0
    %167 = vmatmul.mubr.f32.gmra.mrb[0].mxu0 %v34
    %v168 = vpop.f32.mrb[0].mxu0
    %v169 = vadd.f32 0.0, %v168
    %v170 = vpop.f32.mrb[0].mxu0
    %171 = vmatprep.mubr.f32.mxu0 0.0
    %172 = vmatmul.mubr.f32.gmra.mrb[0].mxu0 %v35
    %v173 = vpop.f32.mrb[0].mxu0
    %v174 = vadd.f32 0.0, %v173
    %v175 = vpop.f32.mrb[0].mxu0
    %176 = vmatprep.mubr.f32.mxu0 0.0
    %177 = vmatmul.mubr.f32.gmra.mrb[0].mxu0 %v36
    %v178 = vpop.f32.mrb[0].mxu0
    %v179 = vadd.f32 0.0, %v178
    %v180 = vpop.f32.mrb[0].mxu0
    %181 = vmatprep.mubr.f32.mxu0 0.0
    %182 = vmatmul.mubr.f32.gmra.mrb[0].mxu0 %v37
    %v183 = vpop.f32.mrb[0].mxu0
    %v184 = vadd.f32 0.0, %v183
    %v185 = vpop.f32.mrb[0].mxu0
    %186 = vmatprep.mubr.f32.mxu0 0.0
    %187 = vmatmul.mubr.f32.gmra.mrb[0].mxu0 %v38
    %v188 = vpop.f32.mrb[0].mxu0
    %v189 = vadd.f32 0.0, %v188
    %v190 = vpop.f32.mrb[0].mxu0
    %191 = vmatprep.mubr.f32.mxu0 0.0
    %192 = vmatmul.mubr.f32.gmra.mrb[0].mxu0 %v39
    %v193 = vpop.f32.mrb[0].mxu0
    %v194 = vadd.f32 0.0, %v193
    %v195 = vpop.f32.mrb[0].mxu0
    %196 = vmatprep.mubr.f32.mxu0 0.0
    %197 = vmatmul.mubr.f32.gmra.mrb[0].mxu0 %v40
    %v198 = vpop.f32.mrb[0].mxu0
    %v199 = vadd.f32 0.0, %v198
    %v200 = vpop.f32.mrb[0].mxu0
    %201 = vdwg.mxu0
    %v202 = vmax.f32 %v124, -1.0
    %v203 = vmax.f32 %v129, -1.0
    %v204 = vmax.f32 %v134, -1.0
    %v205 = vmax.f32 %v139, -1.0
    %v206 = vmax.f32 %v144, -1.0
    %v207 = vmax.f32 %v149, -1.0
    %v208 = vmax.f32 %v154, -1.0
    %v209 = vmax.f32 %v159, -1.0
    %v210 = vmax.f32 %v164, -1.0
    %v211 = vmax.f32 %v169, -1.0
    %v212 = vmax.f32 %v174, -1.0
    %v213 = vmax.f32 %v179, -1.0
    %v214 = vmax.f32 %v184, -1.0
    %v215 = vmax.f32 %v189, -1.0
    %v216 = vmax.f32 %v194, -1.0
    %v217 = vmax.f32 %v199, -1.0
    %v218 = vmin.f32 %v202, 1.0
    %v219 = vmin.f32 %v203, 1.0
    %v220 = vmin.f32 %v204, 1.0
    %v221 = vmin.f32 %v205, 1.0
    %v222 = vmin.f32 %v206, 1.0
    %v223 = vmin.f32 %v207, 1.0
    %v224 = vmin.f32 %v208, 1.0
    %v225 = vmin.f32 %v209, 1.0
    %v226 = vmin.f32 %v210, 1.0
    %v227 = vmin.f32 %v211, 1.0
    %v228 = vmin.f32 %v212, 1.0
    %v229 = vmin.f32 %v213, 1.0
    %v230 = vmin.f32 %v214, 1.0
    %v231 = vmin.f32 %v215, 1.0
    %v232 = vmin.f32 %v216, 1.0
    %v233 = vmin.f32 %v217, 1.0
    %v234 = vlaneseq
    %v235 = vand.u32 %v234, 127
    %vm236 = vcmp.lt.s32.totalorder %v235, 16
    %v237 = vsel %vm236, %v218, 2.0
    %v238 = vsel %vm236, %v219, 2.0
    %v239 = vsel %vm236, %v220, 2.0
    %v240 = vsel %vm236, %v221, 2.0
    %v241 = vsel %vm236, %v222, 2.0
    %v242 = vsel %vm236, %v223, 2.0
    %v243 = vsel %vm236, %v224, 2.0
    %v244 = vsel %vm236, %v225, 2.0
    %v245 = vsel %vm236, %v226, 2.0
    %v246 = vsel %vm236, %v227, 2.0
    %v247 = vsel %vm236, %v228, 2.0
    %v248 = vsel %vm236, %v229, 2.0
    %v249 = vsel %vm236, %v230, 2.0
    %v250 = vsel %vm236, %v231, 2.0
    %v251 = vsel %vm236, %v232, 2.0
    %v252 = vsel %vm236, %v233, 2.0
    %253 = vmin.xlane.f32.xlu0 %v237
    %v254 = vpop.xlane.xlu0 %253
    %255 = vmin.xlane.f32.xlu0 %v238
    %v256 = vpop.xlane.xlu0 %255
    %257 = vmin.xlane.f32.xlu0 %v239
    %v258 = vpop.xlane.xlu0 %257
    %259 = vmin.xlane.f32.xlu0 %v240
    %v260 = vpop.xlane.xlu0 %259
    %261 = vmin.xlane.f32.xlu0 %v241
    %v262 = vpop.xlane.xlu0 %261
    %263 = vmin.xlane.f32.xlu0 %v242
    %v264 = vpop.xlane.xlu0 %263
    %265 = vmin.xlane.f32.xlu0 %v243
    %v266 = vpop.xlane.xlu0 %265
    %267 = vmin.xlane.f32.xlu0 %v244
    %v268 = vpop.xlane.xlu0 %267
    %269 = vmin.xlane.f32.xlu0 %v245
    %v270 = vpop.xlane.xlu0 %269
    %271 = vmin.xlane.f32.xlu0 %v246
    %v272 = vpop.xlane.xlu0 %271
    %273 = vmin.xlane.f32.xlu0 %v247
    %v274 = vpop.xlane.xlu0 %273
    %275 = vmin.xlane.f32.xlu0 %v248
    %v276 = vpop.xlane.xlu0 %275
    %277 = vmin.xlane.f32.xlu0 %v249
    %v278 = vpop.xlane.xlu0 %277
    %279 = vmin.xlane.f32.xlu0 %v250
    %v280 = vpop.xlane.xlu0 %279
    %281 = vmin.xlane.f32.xlu0 %v251
    %v282 = vpop.xlane.xlu0 %281
    %283 = vmin.xlane.f32.xlu0 %v252
    %v284 = vpop.xlane.xlu0 %283
    %vm285 = vcmp.eq.f32.partialorder %v237, %v254
    %vm286 = vcmp.eq.f32.partialorder %v238, %v256
    %vm287 = vcmp.eq.f32.partialorder %v239, %v258
    %vm288 = vcmp.eq.f32.partialorder %v240, %v260
    %vm289 = vcmp.eq.f32.partialorder %v241, %v262
    %vm290 = vcmp.eq.f32.partialorder %v242, %v264
    %vm291 = vcmp.eq.f32.partialorder %v243, %v266
    %vm292 = vcmp.eq.f32.partialorder %v244, %v268
    %vm293 = vcmp.eq.f32.partialorder %v245, %v270
    %vm294 = vcmp.eq.f32.partialorder %v246, %v272
    %vm295 = vcmp.eq.f32.partialorder %v247, %v274
    %vm296 = vcmp.eq.f32.partialorder %v248, %v276
    %vm297 = vcmp.eq.f32.partialorder %v249, %v278
    %vm298 = vcmp.eq.f32.partialorder %v250, %v280
    %vm299 = vcmp.eq.f32.partialorder %v251, %v282
    %vm300 = vcmp.eq.f32.partialorder %v252, %v284
    %v301 = vsel %vm285, %v235, 128
    %v302 = vsel %vm286, %v235, 128
    %v303 = vsel %vm287, %v235, 128
    %v304 = vsel %vm288, %v235, 128
    %v305 = vsel %vm289, %v235, 128
    %v306 = vsel %vm290, %v235, 128
    %v307 = vsel %vm291, %v235, 128
    %v308 = vsel %vm292, %v235, 128
    %v309 = vsel %vm293, %v235, 128
    %v310 = vsel %vm294, %v235, 128
    %v311 = vsel %vm295, %v235, 128
    %v312 = vsel %vm296, %v235, 128
    %v313 = vsel %vm297, %v235, 128
    %v314 = vsel %vm298, %v235, 128
    %v315 = vsel %vm299, %v235, 128
    %v316 = vsel %vm300, %v235, 128
    %v317 = vand.u32 %v301, 65535
    %v318 = vshra.s32 %v301, 16
    %v319 = vcvt.s32.f32 %v317
    %v320 = vcvt.s32.f32 %v318
    %321 = vmin.xlane.f32.xlu0 %v320
    %v322 = vpop.xlane.xlu0 %321
    %vm323 = vcmp.eq.f32.partialorder %v320, %v322
    %v324 = vsel %vm323, %v319, inf
    %325 = vmin.xlane.f32.xlu0 %v324
    %v326 = vpop.xlane.xlu0 %325
    %v327 = vcvt.f32.s32 %v326
    %v328 = vcvt.f32.s32 %v322
    %v329 = vshll.u32 %v328, 16
    %v330 = vadd.s32 %v329, %v327
    %v331 = vand.u32 %v302, 65535
    %v332 = vshra.s32 %v302, 16
    %v333 = vcvt.s32.f32 %v331
    %v334 = vcvt.s32.f32 %v332
    %335 = vmin.xlane.f32.xlu0 %v334
    %v336 = vpop.xlane.xlu0 %335
    %vm337 = vcmp.eq.f32.partialorder %v334, %v336
    %v338 = vsel %vm337, %v333, inf
    %339 = vmin.xlane.f32.xlu0 %v338
    %v340 = vpop.xlane.xlu0 %339
    %v341 = vcvt.f32.s32 %v340
    %v342 = vcvt.f32.s32 %v336
    %v343 = vshll.u32 %v342, 16
    %v344 = vadd.s32 %v343, %v341
    %v345 = vand.u32 %v303, 65535
    %v346 = vshra.s32 %v303, 16
    %v347 = vcvt.s32.f32 %v345
    %v348 = vcvt.s32.f32 %v346
    %349 = vmin.xlane.f32.xlu0 %v348
    %v350 = vpop.xlane.xlu0 %349
    %vm351 = vcmp.eq.f32.partialorder %v348, %v350
    %v352 = vsel %vm351, %v347, inf
    %353 = vmin.xlane.f32.xlu0 %v352
    %v354 = vpop.xlane.xlu0 %353
    %v355 = vcvt.f32.s32 %v354
    %v356 = vcvt.f32.s32 %v350
    %v357 = vshll.u32 %v356, 16
    %v358 = vadd.s32 %v357, %v355
    %v359 = vand.u32 %v304, 65535
    %v360 = vshra.s32 %v304, 16
    %v361 = vcvt.s32.f32 %v359
    %v362 = vcvt.s32.f32 %v360
    %363 = vmin.xlane.f32.xlu0 %v362
    %v364 = vpop.xlane.xlu0 %363
    %vm365 = vcmp.eq.f32.partialorder %v362, %v364
    %v366 = vsel %vm365, %v361, inf
    %367 = vmin.xlane.f32.xlu0 %v366
    %v368 = vpop.xlane.xlu0 %367
    %v369 = vcvt.f32.s32 %v368
    %v370 = vcvt.f32.s32 %v364
    %v371 = vshll.u32 %v370, 16
    %v372 = vadd.s32 %v371, %v369
    %v373 = vand.u32 %v305, 65535
    %v374 = vshra.s32 %v305, 16
    %v375 = vcvt.s32.f32 %v373
    %v376 = vcvt.s32.f32 %v374
    %377 = vmin.xlane.f32.xlu0 %v376
    %v378 = vpop.xlane.xlu0 %377
    %vm379 = vcmp.eq.f32.partialorder %v376, %v378
    %v380 = vsel %vm379, %v375, inf
    %381 = vmin.xlane.f32.xlu0 %v380
    %v382 = vpop.xlane.xlu0 %381
    %v383 = vcvt.f32.s32 %v382
    %v384 = vcvt.f32.s32 %v378
    %v385 = vshll.u32 %v384, 16
    %v386 = vadd.s32 %v385, %v383
    %v387 = vand.u32 %v306, 65535
    %v388 = vshra.s32 %v306, 16
    %v389 = vcvt.s32.f32 %v387
    %v390 = vcvt.s32.f32 %v388
    %391 = vmin.xlane.f32.xlu0 %v390
    %v392 = vpop.xlane.xlu0 %391
    %vm393 = vcmp.eq.f32.partialorder %v390, %v392
    %v394 = vsel %vm393, %v389, inf
    %395 = vmin.xlane.f32.xlu0 %v394
    %v396 = vpop.xlane.xlu0 %395
    %v397 = vcvt.f32.s32 %v396
    %v398 = vcvt.f32.s32 %v392
    %v399 = vshll.u32 %v398, 16
    %v400 = vadd.s32 %v399, %v397
    %v401 = vand.u32 %v307, 65535
    %v402 = vshra.s32 %v307, 16
    %v403 = vcvt.s32.f32 %v401
    %v404 = vcvt.s32.f32 %v402
    %405 = vmin.xlane.f32.xlu0 %v404
    %v406 = vpop.xlane.xlu0 %405
    %vm407 = vcmp.eq.f32.partialorder %v404, %v406
    %v408 = vsel %vm407, %v403, inf
    %409 = vmin.xlane.f32.xlu0 %v408
    %v410 = vpop.xlane.xlu0 %409
    %v411 = vcvt.f32.s32 %v410
    %v412 = vcvt.f32.s32 %v406
    %v413 = vshll.u32 %v412, 16
    %v414 = vadd.s32 %v413, %v411
    %v415 = vand.u32 %v308, 65535
    %v416 = vshra.s32 %v308, 16
    %v417 = vcvt.s32.f32 %v415
    %v418 = vcvt.s32.f32 %v416
    %419 = vmin.xlane.f32.xlu0 %v418
    %v420 = vpop.xlane.xlu0 %419
    %vm421 = vcmp.eq.f32.partialorder %v418, %v420
    %v422 = vsel %vm421, %v417, inf
    %423 = vmin.xlane.f32.xlu0 %v422
    %v424 = vpop.xlane.xlu0 %423
    %v425 = vcvt.f32.s32 %v424
    %v426 = vcvt.f32.s32 %v420
    %v427 = vshll.u32 %v426, 16
    %v428 = vadd.s32 %v427, %v425
    %v429 = vand.u32 %v309, 65535
    %v430 = vshra.s32 %v309, 16
    %v431 = vcvt.s32.f32 %v429
    %v432 = vcvt.s32.f32 %v430
    %433 = vmin.xlane.f32.xlu0 %v432
    %v434 = vpop.xlane.xlu0 %433
    %vm435 = vcmp.eq.f32.partialorder %v432, %v434
    %v436 = vsel %vm435, %v431, inf
    %437 = vmin.xlane.f32.xlu0 %v436
    %v438 = vpop.xlane.xlu0 %437
    %v439 = vcvt.f32.s32 %v438
    %v440 = vcvt.f32.s32 %v434
    %v441 = vshll.u32 %v440, 16
    %v442 = vadd.s32 %v441, %v439
    %v443 = vand.u32 %v310, 65535
    %v444 = vshra.s32 %v310, 16
    %v445 = vcvt.s32.f32 %v443
    %v446 = vcvt.s32.f32 %v444
    %447 = vmin.xlane.f32.xlu0 %v446
    %v448 = vpop.xlane.xlu0 %447
    %vm449 = vcmp.eq.f32.partialorder %v446, %v448
    %v450 = vsel %vm449, %v445, inf
    %451 = vmin.xlane.f32.xlu0 %v450
    %v452 = vpop.xlane.xlu0 %451
    %v453 = vcvt.f32.s32 %v452
    %v454 = vcvt.f32.s32 %v448
    %v455 = vshll.u32 %v454, 16
    %v456 = vadd.s32 %v455, %v453
    %v457 = vand.u32 %v311, 65535
    %v458 = vshra.s32 %v311, 16
    %v459 = vcvt.s32.f32 %v457
    %v460 = vcvt.s32.f32 %v458
    %461 = vmin.xlane.f32.xlu0 %v460
    %v462 = vpop.xlane.xlu0 %461
    %vm463 = vcmp.eq.f32.partialorder %v460, %v462
    %v464 = vsel %vm463, %v459, inf
    %465 = vmin.xlane.f32.xlu0 %v464
    %v466 = vpop.xlane.xlu0 %465
    %v467 = vcvt.f32.s32 %v466
    %v468 = vcvt.f32.s32 %v462
    %v469 = vshll.u32 %v468, 16
    %v470 = vadd.s32 %v469, %v467
    %v471 = vand.u32 %v312, 65535
    %v472 = vshra.s32 %v312, 16
    %v473 = vcvt.s32.f32 %v471
    %v474 = vcvt.s32.f32 %v472
    %475 = vmin.xlane.f32.xlu0 %v474
    %v476 = vpop.xlane.xlu0 %475
    %vm477 = vcmp.eq.f32.partialorder %v474, %v476
    %v478 = vsel %vm477, %v473, inf
    %479 = vmin.xlane.f32.xlu0 %v478
    %v480 = vpop.xlane.xlu0 %479
    %v481 = vcvt.f32.s32 %v480
    %v482 = vcvt.f32.s32 %v476
    %v483 = vshll.u32 %v482, 16
    %v484 = vadd.s32 %v483, %v481
    %v485 = vand.u32 %v313, 65535
    %v486 = vshra.s32 %v313, 16
    %v487 = vcvt.s32.f32 %v485
    %v488 = vcvt.s32.f32 %v486
    %489 = vmin.xlane.f32.xlu0 %v488
    %v490 = vpop.xlane.xlu0 %489
    %vm491 = vcmp.eq.f32.partialorder %v488, %v490
    %v492 = vsel %vm491, %v487, inf
    %493 = vmin.xlane.f32.xlu0 %v492
    %v494 = vpop.xlane.xlu0 %493
    %v495 = vcvt.f32.s32 %v494
    %v496 = vcvt.f32.s32 %v490
    %v497 = vshll.u32 %v496, 16
    %v498 = vadd.s32 %v497, %v495
    %v499 = vand.u32 %v314, 65535
    %v500 = vshra.s32 %v314, 16
    %v501 = vcvt.s32.f32 %v499
    %v502 = vcvt.s32.f32 %v500
    %503 = vmin.xlane.f32.xlu0 %v502
    %v504 = vpop.xlane.xlu0 %503
    %vm505 = vcmp.eq.f32.partialorder %v502, %v504
    %v506 = vsel %vm505, %v501, inf
    %507 = vmin.xlane.f32.xlu0 %v506
    %v508 = vpop.xlane.xlu0 %507
    %v509 = vcvt.f32.s32 %v508
    %v510 = vcvt.f32.s32 %v504
    %v511 = vshll.u32 %v510, 16
    %v512 = vadd.s32 %v511, %v509
    %v513 = vand.u32 %v315, 65535
    %v514 = vshra.s32 %v315, 16
    %v515 = vcvt.s32.f32 %v513
    %v516 = vcvt.s32.f32 %v514
    %517 = vmin.xlane.f32.xlu0 %v516
    %v518 = vpop.xlane.xlu0 %517
    %vm519 = vcmp.eq.f32.partialorder %v516, %v518
    %v520 = vsel %vm519, %v515, inf
    %521 = vmin.xlane.f32.xlu0 %v520
    %v522 = vpop.xlane.xlu0 %521
    %v523 = vcvt.f32.s32 %v522
    %v524 = vcvt.f32.s32 %v518
    %v525 = vshll.u32 %v524, 16
    %v526 = vadd.s32 %v525, %v523
    %v527 = vand.u32 %v316, 65535
    %v528 = vshra.s32 %v316, 16
    %v529 = vcvt.s32.f32 %v527
    %v530 = vcvt.s32.f32 %v528
    %531 = vmin.xlane.f32.xlu0 %v530
    %v532 = vpop.xlane.xlu0 %531
    %vm533 = vcmp.eq.f32.partialorder %v530, %v532
    %v534 = vsel %vm533, %v529, inf
    %535 = vmin.xlane.f32.xlu0 %v534
    %v536 = vpop.xlane.xlu0 %535
    %v537 = vcvt.f32.s32 %v536
    %v538 = vcvt.f32.s32 %v532
    %v539 = vshll.u32 %v538, 16
    %v540 = vadd.s32 %v539, %v537
    %vm541 = vcmp.eq.s32.totalorder %v235, %v330
    %vm542 = vcmp.eq.s32.totalorder %v235, %v344
    %vm543 = vcmp.eq.s32.totalorder %v235, %v358
    %vm544 = vcmp.eq.s32.totalorder %v235, %v372
    %vm545 = vcmp.eq.s32.totalorder %v235, %v386
    %vm546 = vcmp.eq.s32.totalorder %v235, %v400
    %vm547 = vcmp.eq.s32.totalorder %v235, %v414
    %vm548 = vcmp.eq.s32.totalorder %v235, %v428
    %vm549 = vcmp.eq.s32.totalorder %v235, %v442
    %vm550 = vcmp.eq.s32.totalorder %v235, %v456
    %vm551 = vcmp.eq.s32.totalorder %v235, %v470
    %vm552 = vcmp.eq.s32.totalorder %v235, %v484
    %vm553 = vcmp.eq.s32.totalorder %v235, %v498
    %vm554 = vcmp.eq.s32.totalorder %v235, %v512
    %vm555 = vcmp.eq.s32.totalorder %v235, %v526
    %vm556 = vcmp.eq.s32.totalorder %v235, %v540
    %v557 = vsel %vm541, inf, %v237
    %v558 = vsel %vm542, inf, %v238
    %v559 = vsel %vm543, inf, %v239
    %v560 = vsel %vm544, inf, %v240
    %v561 = vsel %vm545, inf, %v241
    %v562 = vsel %vm546, inf, %v242
    %v563 = vsel %vm547, inf, %v243
    %v564 = vsel %vm548, inf, %v244
    %v565 = vsel %vm549, inf, %v245
    %v566 = vsel %vm550, inf, %v246
    %v567 = vsel %vm551, inf, %v247
    %v568 = vsel %vm552, inf, %v248
    %v569 = vsel %vm553, inf, %v249
    %v570 = vsel %vm554, inf, %v250
    %v571 = vsel %vm555, inf, %v251
    %v572 = vsel %vm556, inf, %v252
    %573 = vmin.xlane.f32.xlu0 %v557
    %v574 = vpop.xlane.xlu0 %573
    %575 = vmin.xlane.f32.xlu0 %v558
    %v576 = vpop.xlane.xlu0 %575
    %577 = vmin.xlane.f32.xlu0 %v559
    %v578 = vpop.xlane.xlu0 %577
    %579 = vmin.xlane.f32.xlu0 %v560
    %v580 = vpop.xlane.xlu0 %579
    %581 = vmin.xlane.f32.xlu0 %v561
    %v582 = vpop.xlane.xlu0 %581
    %583 = vmin.xlane.f32.xlu0 %v562
    %v584 = vpop.xlane.xlu0 %583
    %585 = vmin.xlane.f32.xlu0 %v563
    %v586 = vpop.xlane.xlu0 %585
    %587 = vmin.xlane.f32.xlu0 %v564
    %v588 = vpop.xlane.xlu0 %587
    %589 = vmin.xlane.f32.xlu0 %v565
    %v590 = vpop.xlane.xlu0 %589
    %591 = vmin.xlane.f32.xlu0 %v566
    %v592 = vpop.xlane.xlu0 %591
    %593 = vmin.xlane.f32.xlu0 %v567
    %v594 = vpop.xlane.xlu0 %593
    %595 = vmin.xlane.f32.xlu0 %v568
    %v596 = vpop.xlane.xlu0 %595
    %597 = vmin.xlane.f32.xlu0 %v569
    %v598 = vpop.xlane.xlu0 %597
    %599 = vmin.xlane.f32.xlu0 %v570
    %v600 = vpop.xlane.xlu0 %599
    %601 = vmin.xlane.f32.xlu0 %v571
    %v602 = vpop.xlane.xlu0 %601
    %603 = vmin.xlane.f32.xlu0 %v572
    %v604 = vpop.xlane.xlu0 %603
    %vm605 = vcmp.eq.f32.partialorder %v557, %v574
    %vm606 = vcmp.eq.f32.partialorder %v558, %v576
    %vm607 = vcmp.eq.f32.partialorder %v559, %v578
    %vm608 = vcmp.eq.f32.partialorder %v560, %v580
    %vm609 = vcmp.eq.f32.partialorder %v561, %v582
    %vm610 = vcmp.eq.f32.partialorder %v562, %v584
    %vm611 = vcmp.eq.f32.partialorder %v563, %v586
    %vm612 = vcmp.eq.f32.partialorder %v564, %v588
    %vm613 = vcmp.eq.f32.partialorder %v565, %v590
    %vm614 = vcmp.eq.f32.partialorder %v566, %v592
    %vm615 = vcmp.eq.f32.partialorder %v567, %v594
    %vm616 = vcmp.eq.f32.partialorder %v568, %v596
    %vm617 = vcmp.eq.f32.partialorder %v569, %v598
    %vm618 = vcmp.eq.f32.partialorder %v570, %v600
    %vm619 = vcmp.eq.f32.partialorder %v571, %v602
    %vm620 = vcmp.eq.f32.partialorder %v572, %v604
    %v621 = vsel %vm605, %v235, 128
    %v622 = vsel %vm606, %v235, 128
    %v623 = vsel %vm607, %v235, 128
    %v624 = vsel %vm608, %v235, 128
    %v625 = vsel %vm609, %v235, 128
    %v626 = vsel %vm610, %v235, 128
    %v627 = vsel %vm611, %v235, 128
    %v628 = vsel %vm612, %v235, 128
    %v629 = vsel %vm613, %v235, 128
    %v630 = vsel %vm614, %v235, 128
    %v631 = vsel %vm615, %v235, 128
    %v632 = vsel %vm616, %v235, 128
    %v633 = vsel %vm617, %v235, 128
    %v634 = vsel %vm618, %v235, 128
    %v635 = vsel %vm619, %v235, 128
    %v636 = vsel %vm620, %v235, 128
    %v637 = vand.u32 %v621, 65535
    %v638 = vshra.s32 %v621, 16
    %v639 = vcvt.s32.f32 %v637
    %v640 = vcvt.s32.f32 %v638
    %641 = vmin.xlane.f32.xlu0 %v640
    %v642 = vpop.xlane.xlu0 %641
    %vm643 = vcmp.eq.f32.partialorder %v640, %v642
    %v644 = vsel %vm643, %v639, inf
    %645 = vmin.xlane.f32.xlu0 %v644
    %v646 = vpop.xlane.xlu0 %645
    %v647 = vcvt.f32.s32 %v646
    %v648 = vcvt.f32.s32 %v642
    %v649 = vshll.u32 %v648, 16
    %v650 = vadd.s32 %v649, %v647
    %v651 = vand.u32 %v622, 65535
    %v652 = vshra.s32 %v622, 16
    %v653 = vcvt.s32.f32 %v651
    %v654 = vcvt.s32.f32 %v652
    %655 = vmin.xlane.f32.xlu0 %v654
    %v656 = vpop.xlane.xlu0 %655
    %vm657 = vcmp.eq.f32.partialorder %v654, %v656
    %v658 = vsel %vm657, %v653, inf
    %659 = vmin.xlane.f32.xlu0 %v658
    %v660 = vpop.xlane.xlu0 %659
    %v661 = vcvt.f32.s32 %v660
    %v662 = vcvt.f32.s32 %v656
    %v663 = vshll.u32 %v662, 16
    %v664 = vadd.s32 %v663, %v661
    %v665 = vand.u32 %v623, 65535
    %v666 = vshra.s32 %v623, 16
    %v667 = vcvt.s32.f32 %v665
    %v668 = vcvt.s32.f32 %v666
    %669 = vmin.xlane.f32.xlu0 %v668
    %v670 = vpop.xlane.xlu0 %669
    %vm671 = vcmp.eq.f32.partialorder %v668, %v670
    %v672 = vsel %vm671, %v667, inf
    %673 = vmin.xlane.f32.xlu0 %v672
    %v674 = vpop.xlane.xlu0 %673
    %v675 = vcvt.f32.s32 %v674
    %v676 = vcvt.f32.s32 %v670
    %v677 = vshll.u32 %v676, 16
    %v678 = vadd.s32 %v677, %v675
    %v679 = vand.u32 %v624, 65535
    %v680 = vshra.s32 %v624, 16
    %v681 = vcvt.s32.f32 %v679
    %v682 = vcvt.s32.f32 %v680
    %683 = vmin.xlane.f32.xlu0 %v682
    %v684 = vpop.xlane.xlu0 %683
    %vm685 = vcmp.eq.f32.partialorder %v682, %v684
    %v686 = vsel %vm685, %v681, inf
    %687 = vmin.xlane.f32.xlu0 %v686
    %v688 = vpop.xlane.xlu0 %687
    %v689 = vcvt.f32.s32 %v688
    %v690 = vcvt.f32.s32 %v684
    %v691 = vshll.u32 %v690, 16
    %v692 = vadd.s32 %v691, %v689
    %v693 = vand.u32 %v625, 65535
    %v694 = vshra.s32 %v625, 16
    %v695 = vcvt.s32.f32 %v693
    %v696 = vcvt.s32.f32 %v694
    %697 = vmin.xlane.f32.xlu0 %v696
    %v698 = vpop.xlane.xlu0 %697
    %vm699 = vcmp.eq.f32.partialorder %v696, %v698
    %v700 = vsel %vm699, %v695, inf
    %701 = vmin.xlane.f32.xlu0 %v700
    %v702 = vpop.xlane.xlu0 %701
    %v703 = vcvt.f32.s32 %v702
    %v704 = vcvt.f32.s32 %v698
    %v705 = vshll.u32 %v704, 16
    %v706 = vadd.s32 %v705, %v703
    %v707 = vand.u32 %v626, 65535
    %v708 = vshra.s32 %v626, 16
    %v709 = vcvt.s32.f32 %v707
    %v710 = vcvt.s32.f32 %v708
    %711 = vmin.xlane.f32.xlu0 %v710
    %v712 = vpop.xlane.xlu0 %711
    %vm713 = vcmp.eq.f32.partialorder %v710, %v712
    %v714 = vsel %vm713, %v709, inf
    %715 = vmin.xlane.f32.xlu0 %v714
    %v716 = vpop.xlane.xlu0 %715
    %v717 = vcvt.f32.s32 %v716
    %v718 = vcvt.f32.s32 %v712
    %v719 = vshll.u32 %v718, 16
    %v720 = vadd.s32 %v719, %v717
    %v721 = vand.u32 %v627, 65535
    %v722 = vshra.s32 %v627, 16
    %v723 = vcvt.s32.f32 %v721
    %v724 = vcvt.s32.f32 %v722
    %725 = vmin.xlane.f32.xlu0 %v724
    %v726 = vpop.xlane.xlu0 %725
    %vm727 = vcmp.eq.f32.partialorder %v724, %v726
    %v728 = vsel %vm727, %v723, inf
    %729 = vmin.xlane.f32.xlu0 %v728
    %v730 = vpop.xlane.xlu0 %729
    %v731 = vcvt.f32.s32 %v730
    %v732 = vcvt.f32.s32 %v726
    %v733 = vshll.u32 %v732, 16
    %v734 = vadd.s32 %v733, %v731
    %v735 = vand.u32 %v628, 65535
    %v736 = vshra.s32 %v628, 16
    %v737 = vcvt.s32.f32 %v735
    %v738 = vcvt.s32.f32 %v736
    %739 = vmin.xlane.f32.xlu0 %v738
    %v740 = vpop.xlane.xlu0 %739
    %vm741 = vcmp.eq.f32.partialorder %v738, %v740
    %v742 = vsel %vm741, %v737, inf
    %743 = vmin.xlane.f32.xlu0 %v742
    %v744 = vpop.xlane.xlu0 %743
    %v745 = vcvt.f32.s32 %v744
    %v746 = vcvt.f32.s32 %v740
    %v747 = vshll.u32 %v746, 16
    %v748 = vadd.s32 %v747, %v745
    %v749 = vand.u32 %v629, 65535
    %v750 = vshra.s32 %v629, 16
    %v751 = vcvt.s32.f32 %v749
    %v752 = vcvt.s32.f32 %v750
    %753 = vmin.xlane.f32.xlu0 %v752
    %v754 = vpop.xlane.xlu0 %753
    %vm755 = vcmp.eq.f32.partialorder %v752, %v754
    %v756 = vsel %vm755, %v751, inf
    %757 = vmin.xlane.f32.xlu0 %v756
    %v758 = vpop.xlane.xlu0 %757
    %v759 = vcvt.f32.s32 %v758
    %v760 = vcvt.f32.s32 %v754
    %v761 = vshll.u32 %v760, 16
    %v762 = vadd.s32 %v761, %v759
    %v763 = vand.u32 %v630, 65535
    %v764 = vshra.s32 %v630, 16
    %v765 = vcvt.s32.f32 %v763
    %v766 = vcvt.s32.f32 %v764
    %767 = vmin.xlane.f32.xlu0 %v766
    %v768 = vpop.xlane.xlu0 %767
    %vm769 = vcmp.eq.f32.partialorder %v766, %v768
    %v770 = vsel %vm769, %v765, inf
    %771 = vmin.xlane.f32.xlu0 %v770
    %v772 = vpop.xlane.xlu0 %771
    %v773 = vcvt.f32.s32 %v772
    %v774 = vcvt.f32.s32 %v768
    %v775 = vshll.u32 %v774, 16
    %v776 = vadd.s32 %v775, %v773
    %v777 = vand.u32 %v631, 65535
    %v778 = vshra.s32 %v631, 16
    %v779 = vcvt.s32.f32 %v777
    %v780 = vcvt.s32.f32 %v778
    %781 = vmin.xlane.f32.xlu0 %v780
    %v782 = vpop.xlane.xlu0 %781
    %vm783 = vcmp.eq.f32.partialorder %v780, %v782
    %v784 = vsel %vm783, %v779, inf
    %785 = vmin.xlane.f32.xlu0 %v784
    %v786 = vpop.xlane.xlu0 %785
    %v787 = vcvt.f32.s32 %v786
    %v788 = vcvt.f32.s32 %v782
    %v789 = vshll.u32 %v788, 16
    %v790 = vadd.s32 %v789, %v787
    %v791 = vand.u32 %v632, 65535
    %v792 = vshra.s32 %v632, 16
    %v793 = vcvt.s32.f32 %v791
    %v794 = vcvt.s32.f32 %v792
    %795 = vmin.xlane.f32.xlu0 %v794
    %v796 = vpop.xlane.xlu0 %795
    %vm797 = vcmp.eq.f32.partialorder %v794, %v796
    %v798 = vsel %vm797, %v793, inf
    %799 = vmin.xlane.f32.xlu0 %v798
    %v800 = vpop.xlane.xlu0 %799
    %v801 = vcvt.f32.s32 %v800
    %v802 = vcvt.f32.s32 %v796
    %v803 = vshll.u32 %v802, 16
    %v804 = vadd.s32 %v803, %v801
    %v805 = vand.u32 %v633, 65535
    %v806 = vshra.s32 %v633, 16
    %v807 = vcvt.s32.f32 %v805
    %v808 = vcvt.s32.f32 %v806
    %809 = vmin.xlane.f32.xlu0 %v808
    %v810 = vpop.xlane.xlu0 %809
    %vm811 = vcmp.eq.f32.partialorder %v808, %v810
    %v812 = vsel %vm811, %v807, inf
    %813 = vmin.xlane.f32.xlu0 %v812
    %v814 = vpop.xlane.xlu0 %813
    %v815 = vcvt.f32.s32 %v814
    %v816 = vcvt.f32.s32 %v810
    %v817 = vshll.u32 %v816, 16
    %v818 = vadd.s32 %v817, %v815
    %v819 = vand.u32 %v634, 65535
    %v820 = vshra.s32 %v634, 16
    %v821 = vcvt.s32.f32 %v819
    %v822 = vcvt.s32.f32 %v820
    %823 = vmin.xlane.f32.xlu0 %v822
    %v824 = vpop.xlane.xlu0 %823
    %vm825 = vcmp.eq.f32.partialorder %v822, %v824
    %v826 = vsel %vm825, %v821, inf
    %827 = vmin.xlane.f32.xlu0 %v826
    %v828 = vpop.xlane.xlu0 %827
    %v829 = vcvt.f32.s32 %v828
    %v830 = vcvt.f32.s32 %v824
    %v831 = vshll.u32 %v830, 16
    %v832 = vadd.s32 %v831, %v829
    %v833 = vand.u32 %v635, 65535
    %v834 = vshra.s32 %v635, 16
    %v835 = vcvt.s32.f32 %v833
    %v836 = vcvt.s32.f32 %v834
    %837 = vmin.xlane.f32.xlu0 %v836
    %v838 = vpop.xlane.xlu0 %837
    %vm839 = vcmp.eq.f32.partialorder %v836, %v838
    %v840 = vsel %vm839, %v835, inf
    %841 = vmin.xlane.f32.xlu0 %v840
    %v842 = vpop.xlane.xlu0 %841
    %v843 = vcvt.f32.s32 %v842
    %v844 = vcvt.f32.s32 %v838
    %v845 = vshll.u32 %v844, 16
    %v846 = vadd.s32 %v845, %v843
    %v847 = vand.u32 %v636, 65535
    %v848 = vshra.s32 %v636, 16
    %v849 = vcvt.s32.f32 %v847
    %v850 = vcvt.s32.f32 %v848
    %851 = vmin.xlane.f32.xlu0 %v850
    %v852 = vpop.xlane.xlu0 %851
    %vm853 = vcmp.eq.f32.partialorder %v850, %v852
    %v854 = vsel %vm853, %v849, inf
    %855 = vmin.xlane.f32.xlu0 %v854
    %v856 = vpop.xlane.xlu0 %855
    %v857 = vcvt.f32.s32 %v856
    %v858 = vcvt.f32.s32 %v852
    %v859 = vshll.u32 %v858, 16
    %v860 = vadd.s32 %v859, %v857
    %vm861 = vcmp.eq.s32.totalorder %v235, %v650
    %vm862 = vcmp.eq.s32.totalorder %v235, %v664
    %vm863 = vcmp.eq.s32.totalorder %v235, %v678
    %vm864 = vcmp.eq.s32.totalorder %v235, %v692
    %vm865 = vcmp.eq.s32.totalorder %v235, %v706
    %vm866 = vcmp.eq.s32.totalorder %v235, %v720
    %vm867 = vcmp.eq.s32.totalorder %v235, %v734
    %vm868 = vcmp.eq.s32.totalorder %v235, %v748
    %vm869 = vcmp.eq.s32.totalorder %v235, %v762
    %vm870 = vcmp.eq.s32.totalorder %v235, %v776
    %vm871 = vcmp.eq.s32.totalorder %v235, %v790
    %vm872 = vcmp.eq.s32.totalorder %v235, %v804
    %vm873 = vcmp.eq.s32.totalorder %v235, %v818
    %vm874 = vcmp.eq.s32.totalorder %v235, %v832
    %vm875 = vcmp.eq.s32.totalorder %v235, %v846
    %vm876 = vcmp.eq.s32.totalorder %v235, %v860
    %v877 = vsel %vm861, inf, %v557
    %v878 = vsel %vm862, inf, %v558
    %v879 = vsel %vm863, inf, %v559
    %v880 = vsel %vm864, inf, %v560
    %v881 = vsel %vm865, inf, %v561
    %v882 = vsel %vm866, inf, %v562
    %v883 = vsel %vm867, inf, %v563
    %v884 = vsel %vm868, inf, %v564
    %v885 = vsel %vm869, inf, %v565
    %v886 = vsel %vm870, inf, %v566
    %v887 = vsel %vm871, inf, %v567
    %v888 = vsel %vm872, inf, %v568
    %v889 = vsel %vm873, inf, %v569
    %v890 = vsel %vm874, inf, %v570
    %v891 = vsel %vm875, inf, %v571
    %v892 = vsel %vm876, inf, %v572
    %893 = vmin.xlane.f32.xlu0 %v877
    %v894 = vpop.xlane.xlu0 %893
    %895 = vmin.xlane.f32.xlu0 %v878
    %v896 = vpop.xlane.xlu0 %895
    %897 = vmin.xlane.f32.xlu0 %v879
    %v898 = vpop.xlane.xlu0 %897
    %899 = vmin.xlane.f32.xlu0 %v880
    %v900 = vpop.xlane.xlu0 %899
    %901 = vmin.xlane.f32.xlu0 %v881
    %v902 = vpop.xlane.xlu0 %901
    %903 = vmin.xlane.f32.xlu0 %v882
    %v904 = vpop.xlane.xlu0 %903
    %905 = vmin.xlane.f32.xlu0 %v883
    %v906 = vpop.xlane.xlu0 %905
    %907 = vmin.xlane.f32.xlu0 %v884
    %v908 = vpop.xlane.xlu0 %907
    %909 = vmin.xlane.f32.xlu0 %v885
    %v910 = vpop.xlane.xlu0 %909
    %911 = vmin.xlane.f32.xlu0 %v886
    %v912 = vpop.xlane.xlu0 %911
    %913 = vmin.xlane.f32.xlu0 %v887
    %v914 = vpop.xlane.xlu0 %913
    %915 = vmin.xlane.f32.xlu0 %v888
    %v916 = vpop.xlane.xlu0 %915
    %917 = vmin.xlane.f32.xlu0 %v889
    %v918 = vpop.xlane.xlu0 %917
    %919 = vmin.xlane.f32.xlu0 %v890
    %v920 = vpop.xlane.xlu0 %919
    %921 = vmin.xlane.f32.xlu0 %v891
    %v922 = vpop.xlane.xlu0 %921
    %923 = vmin.xlane.f32.xlu0 %v892
    %v924 = vpop.xlane.xlu0 %923
    %vm925 = vcmp.eq.f32.partialorder %v877, %v894
    %vm926 = vcmp.eq.f32.partialorder %v878, %v896
    %vm927 = vcmp.eq.f32.partialorder %v879, %v898
    %vm928 = vcmp.eq.f32.partialorder %v880, %v900
    %vm929 = vcmp.eq.f32.partialorder %v881, %v902
    %vm930 = vcmp.eq.f32.partialorder %v882, %v904
    %vm931 = vcmp.eq.f32.partialorder %v883, %v906
    %vm932 = vcmp.eq.f32.partialorder %v884, %v908
    %vm933 = vcmp.eq.f32.partialorder %v885, %v910
    %vm934 = vcmp.eq.f32.partialorder %v886, %v912
    %vm935 = vcmp.eq.f32.partialorder %v887, %v914
    %vm936 = vcmp.eq.f32.partialorder %v888, %v916
    %vm937 = vcmp.eq.f32.partialorder %v889, %v918
    %vm938 = vcmp.eq.f32.partialorder %v890, %v920
    %vm939 = vcmp.eq.f32.partialorder %v891, %v922
    %vm940 = vcmp.eq.f32.partialorder %v892, %v924
    %v941 = vsel %vm925, %v235, 128
    %v942 = vsel %vm926, %v235, 128
    %v943 = vsel %vm927, %v235, 128
    %v944 = vsel %vm928, %v235, 128
    %v945 = vsel %vm929, %v235, 128
    %v946 = vsel %vm930, %v235, 128
    %v947 = vsel %vm931, %v235, 128
    %v948 = vsel %vm932, %v235, 128
    %v949 = vsel %vm933, %v235, 128
    %v950 = vsel %vm934, %v235, 128
    %v951 = vsel %vm935, %v235, 128
    %v952 = vsel %vm936, %v235, 128
    %v953 = vsel %vm937, %v235, 128
    %v954 = vsel %vm938, %v235, 128
    %v955 = vsel %vm939, %v235, 128
    %v956 = vsel %vm940, %v235, 128
    %v957 = vand.u32 %v941, 65535
    %v958 = vshra.s32 %v941, 16
    %v959 = vcvt.s32.f32 %v957
    %v960 = vcvt.s32.f32 %v958
    %961 = vmin.xlane.f32.xlu0 %v960
    %v962 = vpop.xlane.xlu0 %961
    %vm963 = vcmp.eq.f32.partialorder %v960, %v962
    %v964 = vsel %vm963, %v959, inf
    %965 = vmin.xlane.f32.xlu0 %v964
    %v966 = vpop.xlane.xlu0 %965
    %v967 = vcvt.f32.s32 %v966
    %v968 = vcvt.f32.s32 %v962
    %v969 = vshll.u32 %v968, 16
    %v970 = vadd.s32 %v969, %v967
    %v971 = vand.u32 %v942, 65535
    %v972 = vshra.s32 %v942, 16
    %v973 = vcvt.s32.f32 %v971
    %v974 = vcvt.s32.f32 %v972
    %975 = vmin.xlane.f32.xlu0 %v974
    %v976 = vpop.xlane.xlu0 %975
    %vm977 = vcmp.eq.f32.partialorder %v974, %v976
    %v978 = vsel %vm977, %v973, inf
    %979 = vmin.xlane.f32.xlu0 %v978
    %v980 = vpop.xlane.xlu0 %979
    %v981 = vcvt.f32.s32 %v980
    %v982 = vcvt.f32.s32 %v976
    %v983 = vshll.u32 %v982, 16
    %v984 = vadd.s32 %v983, %v981
    %v985 = vand.u32 %v943, 65535
    %v986 = vshra.s32 %v943, 16
    %v987 = vcvt.s32.f32 %v985
    %v988 = vcvt.s32.f32 %v986
    %989 = vmin.xlane.f32.xlu0 %v988
    %v990 = vpop.xlane.xlu0 %989
    %vm991 = vcmp.eq.f32.partialorder %v988, %v990
    %v992 = vsel %vm991, %v987, inf
    %993 = vmin.xlane.f32.xlu0 %v992
    %v994 = vpop.xlane.xlu0 %993
    %v995 = vcvt.f32.s32 %v994
    %v996 = vcvt.f32.s32 %v990
    %v997 = vshll.u32 %v996, 16
    %v998 = vadd.s32 %v997, %v995
    %v999 = vand.u32 %v944, 65535
    %v1000 = vshra.s32 %v944, 16
    %v1001 = vcvt.s32.f32 %v999
    %v1002 = vcvt.s32.f32 %v1000
    %1003 = vmin.xlane.f32.xlu0 %v1002
    %v1004 = vpop.xlane.xlu0 %1003
    %vm1005 = vcmp.eq.f32.partialorder %v1002, %v1004
    %v1006 = vsel %vm1005, %v1001, inf
    %1007 = vmin.xlane.f32.xlu0 %v1006
    %v1008 = vpop.xlane.xlu0 %1007
    %v1009 = vcvt.f32.s32 %v1008
    %v1010 = vcvt.f32.s32 %v1004
    %v1011 = vshll.u32 %v1010, 16
    %v1012 = vadd.s32 %v1011, %v1009
    %v1013 = vand.u32 %v945, 65535
    %v1014 = vshra.s32 %v945, 16
    %v1015 = vcvt.s32.f32 %v1013
    %v1016 = vcvt.s32.f32 %v1014
    %1017 = vmin.xlane.f32.xlu0 %v1016
    %v1018 = vpop.xlane.xlu0 %1017
    %vm1019 = vcmp.eq.f32.partialorder %v1016, %v1018
    %v1020 = vsel %vm1019, %v1015, inf
    %1021 = vmin.xlane.f32.xlu0 %v1020
    %v1022 = vpop.xlane.xlu0 %1021
    %v1023 = vcvt.f32.s32 %v1022
    %v1024 = vcvt.f32.s32 %v1018
    %v1025 = vshll.u32 %v1024, 16
    %v1026 = vadd.s32 %v1025, %v1023
    %v1027 = vand.u32 %v946, 65535
    %v1028 = vshra.s32 %v946, 16
    %v1029 = vcvt.s32.f32 %v1027
    %v1030 = vcvt.s32.f32 %v1028
    %1031 = vmin.xlane.f32.xlu0 %v1030
    %v1032 = vpop.xlane.xlu0 %1031
    %vm1033 = vcmp.eq.f32.partialorder %v1030, %v1032
    %v1034 = vsel %vm1033, %v1029, inf
    %1035 = vmin.xlane.f32.xlu0 %v1034
    %v1036 = vpop.xlane.xlu0 %1035
    %v1037 = vcvt.f32.s32 %v1036
    %v1038 = vcvt.f32.s32 %v1032
    %v1039 = vshll.u32 %v1038, 16
    %v1040 = vadd.s32 %v1039, %v1037
    %v1041 = vand.u32 %v947, 65535
    %v1042 = vshra.s32 %v947, 16
    %v1043 = vcvt.s32.f32 %v1041
    %v1044 = vcvt.s32.f32 %v1042
    %1045 = vmin.xlane.f32.xlu0 %v1044
    %v1046 = vpop.xlane.xlu0 %1045
    %vm1047 = vcmp.eq.f32.partialorder %v1044, %v1046
    %v1048 = vsel %vm1047, %v1043, inf
    %1049 = vmin.xlane.f32.xlu0 %v1048
    %v1050 = vpop.xlane.xlu0 %1049
    %v1051 = vcvt.f32.s32 %v1050
    %v1052 = vcvt.f32.s32 %v1046
    %v1053 = vshll.u32 %v1052, 16
    %v1054 = vadd.s32 %v1053, %v1051
    %v1055 = vand.u32 %v948, 65535
    %v1056 = vshra.s32 %v948, 16
    %v1057 = vcvt.s32.f32 %v1055
    %v1058 = vcvt.s32.f32 %v1056
    %1059 = vmin.xlane.f32.xlu0 %v1058
    %v1060 = vpop.xlane.xlu0 %1059
    %vm1061 = vcmp.eq.f32.partialorder %v1058, %v1060
    %v1062 = vsel %vm1061, %v1057, inf
    %1063 = vmin.xlane.f32.xlu0 %v1062
    %v1064 = vpop.xlane.xlu0 %1063
    %v1065 = vcvt.f32.s32 %v1064
    %v1066 = vcvt.f32.s32 %v1060
    %v1067 = vshll.u32 %v1066, 16
    %v1068 = vadd.s32 %v1067, %v1065
    %v1069 = vand.u32 %v949, 65535
    %v1070 = vshra.s32 %v949, 16
    %v1071 = vcvt.s32.f32 %v1069
    %v1072 = vcvt.s32.f32 %v1070
    %1073 = vmin.xlane.f32.xlu0 %v1072
    %v1074 = vpop.xlane.xlu0 %1073
    %vm1075 = vcmp.eq.f32.partialorder %v1072, %v1074
    %v1076 = vsel %vm1075, %v1071, inf
    %1077 = vmin.xlane.f32.xlu0 %v1076
    %v1078 = vpop.xlane.xlu0 %1077
    %v1079 = vcvt.f32.s32 %v1078
    %v1080 = vcvt.f32.s32 %v1074
    %v1081 = vshll.u32 %v1080, 16
    %v1082 = vadd.s32 %v1081, %v1079
    %v1083 = vand.u32 %v950, 65535
    %v1084 = vshra.s32 %v950, 16
    %v1085 = vcvt.s32.f32 %v1083
    %v1086 = vcvt.s32.f32 %v1084
    %1087 = vmin.xlane.f32.xlu0 %v1086
    %v1088 = vpop.xlane.xlu0 %1087
    %vm1089 = vcmp.eq.f32.partialorder %v1086, %v1088
    %v1090 = vsel %vm1089, %v1085, inf
    %1091 = vmin.xlane.f32.xlu0 %v1090
    %v1092 = vpop.xlane.xlu0 %1091
    %v1093 = vcvt.f32.s32 %v1092
    %v1094 = vcvt.f32.s32 %v1088
    %v1095 = vshll.u32 %v1094, 16
    %v1096 = vadd.s32 %v1095, %v1093
    %v1097 = vand.u32 %v951, 65535
    %v1098 = vshra.s32 %v951, 16
    %v1099 = vcvt.s32.f32 %v1097
    %v1100 = vcvt.s32.f32 %v1098
    %1101 = vmin.xlane.f32.xlu0 %v1100
    %v1102 = vpop.xlane.xlu0 %1101
    %vm1103 = vcmp.eq.f32.partialorder %v1100, %v1102
    %v1104 = vsel %vm1103, %v1099, inf
    %1105 = vmin.xlane.f32.xlu0 %v1104
    %v1106 = vpop.xlane.xlu0 %1105
    %v1107 = vcvt.f32.s32 %v1106
    %v1108 = vcvt.f32.s32 %v1102
    %v1109 = vshll.u32 %v1108, 16
    %v1110 = vadd.s32 %v1109, %v1107
    %v1111 = vand.u32 %v952, 65535
    %v1112 = vshra.s32 %v952, 16
    %v1113 = vcvt.s32.f32 %v1111
    %v1114 = vcvt.s32.f32 %v1112
    %1115 = vmin.xlane.f32.xlu0 %v1114
    %v1116 = vpop.xlane.xlu0 %1115
    %vm1117 = vcmp.eq.f32.partialorder %v1114, %v1116
    %v1118 = vsel %vm1117, %v1113, inf
    %1119 = vmin.xlane.f32.xlu0 %v1118
    %v1120 = vpop.xlane.xlu0 %1119
    %v1121 = vcvt.f32.s32 %v1120
    %v1122 = vcvt.f32.s32 %v1116
    %v1123 = vshll.u32 %v1122, 16
    %v1124 = vadd.s32 %v1123, %v1121
    %v1125 = vand.u32 %v953, 65535
    %v1126 = vshra.s32 %v953, 16
    %v1127 = vcvt.s32.f32 %v1125
    %v1128 = vcvt.s32.f32 %v1126
    %1129 = vmin.xlane.f32.xlu0 %v1128
    %v1130 = vpop.xlane.xlu0 %1129
    %vm1131 = vcmp.eq.f32.partialorder %v1128, %v1130
    %v1132 = vsel %vm1131, %v1127, inf
    %1133 = vmin.xlane.f32.xlu0 %v1132
    %v1134 = vpop.xlane.xlu0 %1133
    %v1135 = vcvt.f32.s32 %v1134
    %v1136 = vcvt.f32.s32 %v1130
    %v1137 = vshll.u32 %v1136, 16
    %v1138 = vadd.s32 %v1137, %v1135
    %v1139 = vand.u32 %v954, 65535
    %v1140 = vshra.s32 %v954, 16
    %v1141 = vcvt.s32.f32 %v1139
    %v1142 = vcvt.s32.f32 %v1140
    %1143 = vmin.xlane.f32.xlu0 %v1142
    %v1144 = vpop.xlane.xlu0 %1143
    %vm1145 = vcmp.eq.f32.partialorder %v1142, %v1144
    %v1146 = vsel %vm1145, %v1141, inf
    %1147 = vmin.xlane.f32.xlu0 %v1146
    %v1148 = vpop.xlane.xlu0 %1147
    %v1149 = vcvt.f32.s32 %v1148
    %v1150 = vcvt.f32.s32 %v1144
    %v1151 = vshll.u32 %v1150, 16
    %v1152 = vadd.s32 %v1151, %v1149
    %v1153 = vand.u32 %v955, 65535
    %v1154 = vshra.s32 %v955, 16
    %v1155 = vcvt.s32.f32 %v1153
    %v1156 = vcvt.s32.f32 %v1154
    %1157 = vmin.xlane.f32.xlu0 %v1156
    %v1158 = vpop.xlane.xlu0 %1157
    %vm1159 = vcmp.eq.f32.partialorder %v1156, %v1158
    %v1160 = vsel %vm1159, %v1155, inf
    %1161 = vmin.xlane.f32.xlu0 %v1160
    %v1162 = vpop.xlane.xlu0 %1161
    %v1163 = vcvt.f32.s32 %v1162
    %v1164 = vcvt.f32.s32 %v1158
    %v1165 = vshll.u32 %v1164, 16
    %v1166 = vadd.s32 %v1165, %v1163
    %v1167 = vand.u32 %v956, 65535
    %v1168 = vshra.s32 %v956, 16
    %v1169 = vcvt.s32.f32 %v1167
    %v1170 = vcvt.s32.f32 %v1168
    %1171 = vmin.xlane.f32.xlu0 %v1170
    %v1172 = vpop.xlane.xlu0 %1171
    %vm1173 = vcmp.eq.f32.partialorder %v1170, %v1172
    %v1174 = vsel %vm1173, %v1169, inf
    %1175 = vmin.xlane.f32.xlu0 %v1174
    %v1176 = vpop.xlane.xlu0 %1175
    %v1177 = vcvt.f32.s32 %v1176
    %v1178 = vcvt.f32.s32 %v1172
    %v1179 = vshll.u32 %v1178, 16
    %v1180 = vadd.s32 %v1179, %v1177
    %vm1181 = vcmp.eq.s32.totalorder %v235, %v970
    %vm1182 = vcmp.eq.s32.totalorder %v235, %v984
    %vm1183 = vcmp.eq.s32.totalorder %v235, %v998
    %vm1184 = vcmp.eq.s32.totalorder %v235, %v1012
    %vm1185 = vcmp.eq.s32.totalorder %v235, %v1026
    %vm1186 = vcmp.eq.s32.totalorder %v235, %v1040
    %vm1187 = vcmp.eq.s32.totalorder %v235, %v1054
    %vm1188 = vcmp.eq.s32.totalorder %v235, %v1068
    %vm1189 = vcmp.eq.s32.totalorder %v235, %v1082
    %vm1190 = vcmp.eq.s32.totalorder %v235, %v1096
    %vm1191 = vcmp.eq.s32.totalorder %v235, %v1110
    %vm1192 = vcmp.eq.s32.totalorder %v235, %v1124
    %vm1193 = vcmp.eq.s32.totalorder %v235, %v1138
    %vm1194 = vcmp.eq.s32.totalorder %v235, %v1152
    %vm1195 = vcmp.eq.s32.totalorder %v235, %v1166
    %vm1196 = vcmp.eq.s32.totalorder %v235, %v1180
    %v1197 = vsel %vm1181, inf, %v877
    %v1198 = vsel %vm1182, inf, %v878
    %v1199 = vsel %vm1183, inf, %v879
    %v1200 = vsel %vm1184, inf, %v880
    %v1201 = vsel %vm1185, inf, %v881
    %v1202 = vsel %vm1186, inf, %v882
    %v1203 = vsel %vm1187, inf, %v883
    %v1204 = vsel %vm1188, inf, %v884
    %v1205 = vsel %vm1189, inf, %v885
    %v1206 = vsel %vm1190, inf, %v886
    %v1207 = vsel %vm1191, inf, %v887
    %v1208 = vsel %vm1192, inf, %v888
    %v1209 = vsel %vm1193, inf, %v889
    %v1210 = vsel %vm1194, inf, %v890
    %v1211 = vsel %vm1195, inf, %v891
    %v1212 = vsel %vm1196, inf, %v892
    %1213 = vmin.xlane.f32.xlu0 %v1197
    %v1214 = vpop.xlane.xlu0 %1213
    %1215 = vmin.xlane.f32.xlu0 %v1198
    %v1216 = vpop.xlane.xlu0 %1215
    %1217 = vmin.xlane.f32.xlu0 %v1199
    %v1218 = vpop.xlane.xlu0 %1217
    %1219 = vmin.xlane.f32.xlu0 %v1200
    %v1220 = vpop.xlane.xlu0 %1219
    %1221 = vmin.xlane.f32.xlu0 %v1201
    %v1222 = vpop.xlane.xlu0 %1221
    %1223 = vmin.xlane.f32.xlu0 %v1202
    %v1224 = vpop.xlane.xlu0 %1223
    %1225 = vmin.xlane.f32.xlu0 %v1203
    %v1226 = vpop.xlane.xlu0 %1225
    %1227 = vmin.xlane.f32.xlu0 %v1204
    %v1228 = vpop.xlane.xlu0 %1227
    %1229 = vmin.xlane.f32.xlu0 %v1205
    %v1230 = vpop.xlane.xlu0 %1229
    %1231 = vmin.xlane.f32.xlu0 %v1206
    %v1232 = vpop.xlane.xlu0 %1231
    %1233 = vmin.xlane.f32.xlu0 %v1207
    %v1234 = vpop.xlane.xlu0 %1233
    %1235 = vmin.xlane.f32.xlu0 %v1208
    %v1236 = vpop.xlane.xlu0 %1235
    %1237 = vmin.xlane.f32.xlu0 %v1209
    %v1238 = vpop.xlane.xlu0 %1237
    %1239 = vmin.xlane.f32.xlu0 %v1210
    %v1240 = vpop.xlane.xlu0 %1239
    %1241 = vmin.xlane.f32.xlu0 %v1211
    %v1242 = vpop.xlane.xlu0 %1241
    %1243 = vmin.xlane.f32.xlu0 %v1212
    %v1244 = vpop.xlane.xlu0 %1243
    %vm1245 = vcmp.eq.f32.partialorder %v1197, %v1214
    %vm1246 = vcmp.eq.f32.partialorder %v1198, %v1216
    %vm1247 = vcmp.eq.f32.partialorder %v1199, %v1218
    %vm1248 = vcmp.eq.f32.partialorder %v1200, %v1220
    %vm1249 = vcmp.eq.f32.partialorder %v1201, %v1222
    %vm1250 = vcmp.eq.f32.partialorder %v1202, %v1224
    %vm1251 = vcmp.eq.f32.partialorder %v1203, %v1226
    %vm1252 = vcmp.eq.f32.partialorder %v1204, %v1228
    %vm1253 = vcmp.eq.f32.partialorder %v1205, %v1230
    %vm1254 = vcmp.eq.f32.partialorder %v1206, %v1232
    %vm1255 = vcmp.eq.f32.partialorder %v1207, %v1234
    %vm1256 = vcmp.eq.f32.partialorder %v1208, %v1236
    %vm1257 = vcmp.eq.f32.partialorder %v1209, %v1238
    %vm1258 = vcmp.eq.f32.partialorder %v1210, %v1240
    %vm1259 = vcmp.eq.f32.partialorder %v1211, %v1242
    %vm1260 = vcmp.eq.f32.partialorder %v1212, %v1244
    %v1261 = vsel %vm1245, %v235, 128
    %v1262 = vsel %vm1246, %v235, 128
    %v1263 = vsel %vm1247, %v235, 128
    %v1264 = vsel %vm1248, %v235, 128
    %v1265 = vsel %vm1249, %v235, 128
    %v1266 = vsel %vm1250, %v235, 128
    %v1267 = vsel %vm1251, %v235, 128
    %v1268 = vsel %vm1252, %v235, 128
    %v1269 = vsel %vm1253, %v235, 128
    %v1270 = vsel %vm1254, %v235, 128
    %v1271 = vsel %vm1255, %v235, 128
    %v1272 = vsel %vm1256, %v235, 128
    %v1273 = vsel %vm1257, %v235, 128
    %v1274 = vsel %vm1258, %v235, 128
    %v1275 = vsel %vm1259, %v235, 128
    %v1276 = vsel %vm1260, %v235, 128
    %v1277 = vand.u32 %v1261, 65535
    %v1278 = vshra.s32 %v1261, 16
    %v1279 = vcvt.s32.f32 %v1277
    %v1280 = vcvt.s32.f32 %v1278
    %1281 = vmin.xlane.f32.xlu0 %v1280
    %v1282 = vpop.xlane.xlu0 %1281
    %vm1283 = vcmp.eq.f32.partialorder %v1280, %v1282
    %v1284 = vsel %vm1283, %v1279, inf
    %1285 = vmin.xlane.f32.xlu0 %v1284
    %v1286 = vpop.xlane.xlu0 %1285
    %v1287 = vcvt.f32.s32 %v1286
    %v1288 = vcvt.f32.s32 %v1282
    %v1289 = vshll.u32 %v1288, 16
    %v1290 = vadd.s32 %v1289, %v1287
    %v1291 = vand.u32 %v1262, 65535
    %v1292 = vshra.s32 %v1262, 16
    %v1293 = vcvt.s32.f32 %v1291
    %v1294 = vcvt.s32.f32 %v1292
    %1295 = vmin.xlane.f32.xlu0 %v1294
    %v1296 = vpop.xlane.xlu0 %1295
    %vm1297 = vcmp.eq.f32.partialorder %v1294, %v1296
    %v1298 = vsel %vm1297, %v1293, inf
    %1299 = vmin.xlane.f32.xlu0 %v1298
    %v1300 = vpop.xlane.xlu0 %1299
    %v1301 = vcvt.f32.s32 %v1300
    %v1302 = vcvt.f32.s32 %v1296
    %v1303 = vshll.u32 %v1302, 16
    %v1304 = vadd.s32 %v1303, %v1301
    %v1305 = vand.u32 %v1263, 65535
    %v1306 = vshra.s32 %v1263, 16
    %v1307 = vcvt.s32.f32 %v1305
    %v1308 = vcvt.s32.f32 %v1306
    %1309 = vmin.xlane.f32.xlu0 %v1308
    %v1310 = vpop.xlane.xlu0 %1309
    %vm1311 = vcmp.eq.f32.partialorder %v1308, %v1310
    %v1312 = vsel %vm1311, %v1307, inf
    %1313 = vmin.xlane.f32.xlu0 %v1312
    %v1314 = vpop.xlane.xlu0 %1313
    %v1315 = vcvt.f32.s32 %v1314
    %v1316 = vcvt.f32.s32 %v1310
    %v1317 = vshll.u32 %v1316, 16
    %v1318 = vadd.s32 %v1317, %v1315
    %v1319 = vand.u32 %v1264, 65535
    %v1320 = vshra.s32 %v1264, 16
    %v1321 = vcvt.s32.f32 %v1319
    %v1322 = vcvt.s32.f32 %v1320
    %1323 = vmin.xlane.f32.xlu0 %v1322
    %v1324 = vpop.xlane.xlu0 %1323
    %vm1325 = vcmp.eq.f32.partialorder %v1322, %v1324
    %v1326 = vsel %vm1325, %v1321, inf
    %1327 = vmin.xlane.f32.xlu0 %v1326
    %v1328 = vpop.xlane.xlu0 %1327
    %v1329 = vcvt.f32.s32 %v1328
    %v1330 = vcvt.f32.s32 %v1324
    %v1331 = vshll.u32 %v1330, 16
    %v1332 = vadd.s32 %v1331, %v1329
    %v1333 = vand.u32 %v1265, 65535
    %v1334 = vshra.s32 %v1265, 16
    %v1335 = vcvt.s32.f32 %v1333
    %v1336 = vcvt.s32.f32 %v1334
    %1337 = vmin.xlane.f32.xlu0 %v1336
    %v1338 = vpop.xlane.xlu0 %1337
    %vm1339 = vcmp.eq.f32.partialorder %v1336, %v1338
    %v1340 = vsel %vm1339, %v1335, inf
    %1341 = vmin.xlane.f32.xlu0 %v1340
    %v1342 = vpop.xlane.xlu0 %1341
    %v1343 = vcvt.f32.s32 %v1342
    %v1344 = vcvt.f32.s32 %v1338
    %v1345 = vshll.u32 %v1344, 16
    %v1346 = vadd.s32 %v1345, %v1343
    %v1347 = vand.u32 %v1266, 65535
    %v1348 = vshra.s32 %v1266, 16
    %v1349 = vcvt.s32.f32 %v1347
    %v1350 = vcvt.s32.f32 %v1348
    %1351 = vmin.xlane.f32.xlu0 %v1350
    %v1352 = vpop.xlane.xlu0 %1351
    %vm1353 = vcmp.eq.f32.partialorder %v1350, %v1352
    %v1354 = vsel %vm1353, %v1349, inf
    %1355 = vmin.xlane.f32.xlu0 %v1354
    %v1356 = vpop.xlane.xlu0 %1355
    %v1357 = vcvt.f32.s32 %v1356
    %v1358 = vcvt.f32.s32 %v1352
    %v1359 = vshll.u32 %v1358, 16
    %v1360 = vadd.s32 %v1359, %v1357
    %v1361 = vand.u32 %v1267, 65535
    %v1362 = vshra.s32 %v1267, 16
    %v1363 = vcvt.s32.f32 %v1361
    %v1364 = vcvt.s32.f32 %v1362
    %1365 = vmin.xlane.f32.xlu0 %v1364
    %v1366 = vpop.xlane.xlu0 %1365
    %vm1367 = vcmp.eq.f32.partialorder %v1364, %v1366
    %v1368 = vsel %vm1367, %v1363, inf
    %1369 = vmin.xlane.f32.xlu0 %v1368
    %v1370 = vpop.xlane.xlu0 %1369
    %v1371 = vcvt.f32.s32 %v1370
    %v1372 = vcvt.f32.s32 %v1366
    %v1373 = vshll.u32 %v1372, 16
    %v1374 = vadd.s32 %v1373, %v1371
    %v1375 = vand.u32 %v1268, 65535
    %v1376 = vshra.s32 %v1268, 16
    %v1377 = vcvt.s32.f32 %v1375
    %v1378 = vcvt.s32.f32 %v1376
    %1379 = vmin.xlane.f32.xlu0 %v1378
    %v1380 = vpop.xlane.xlu0 %1379
    %vm1381 = vcmp.eq.f32.partialorder %v1378, %v1380
    %v1382 = vsel %vm1381, %v1377, inf
    %1383 = vmin.xlane.f32.xlu0 %v1382
    %v1384 = vpop.xlane.xlu0 %1383
    %v1385 = vcvt.f32.s32 %v1384
    %v1386 = vcvt.f32.s32 %v1380
    %v1387 = vshll.u32 %v1386, 16
    %v1388 = vadd.s32 %v1387, %v1385
    %v1389 = vand.u32 %v1269, 65535
    %v1390 = vshra.s32 %v1269, 16
    %v1391 = vcvt.s32.f32 %v1389
    %v1392 = vcvt.s32.f32 %v1390
    %1393 = vmin.xlane.f32.xlu0 %v1392
    %v1394 = vpop.xlane.xlu0 %1393
    %vm1395 = vcmp.eq.f32.partialorder %v1392, %v1394
    %v1396 = vsel %vm1395, %v1391, inf
    %1397 = vmin.xlane.f32.xlu0 %v1396
    %v1398 = vpop.xlane.xlu0 %1397
    %v1399 = vcvt.f32.s32 %v1398
    %v1400 = vcvt.f32.s32 %v1394
    %v1401 = vshll.u32 %v1400, 16
    %v1402 = vadd.s32 %v1401, %v1399
    %v1403 = vand.u32 %v1270, 65535
    %v1404 = vshra.s32 %v1270, 16
    %v1405 = vcvt.s32.f32 %v1403
    %v1406 = vcvt.s32.f32 %v1404
    %1407 = vmin.xlane.f32.xlu0 %v1406
    %v1408 = vpop.xlane.xlu0 %1407
    %vm1409 = vcmp.eq.f32.partialorder %v1406, %v1408
    %v1410 = vsel %vm1409, %v1405, inf
    %1411 = vmin.xlane.f32.xlu0 %v1410
    %v1412 = vpop.xlane.xlu0 %1411
    %v1413 = vcvt.f32.s32 %v1412
    %v1414 = vcvt.f32.s32 %v1408
    %v1415 = vshll.u32 %v1414, 16
    %v1416 = vadd.s32 %v1415, %v1413
    %v1417 = vand.u32 %v1271, 65535
    %v1418 = vshra.s32 %v1271, 16
    %v1419 = vcvt.s32.f32 %v1417
    %v1420 = vcvt.s32.f32 %v1418
    %1421 = vmin.xlane.f32.xlu0 %v1420
    %v1422 = vpop.xlane.xlu0 %1421
    %vm1423 = vcmp.eq.f32.partialorder %v1420, %v1422
    %v1424 = vsel %vm1423, %v1419, inf
    %1425 = vmin.xlane.f32.xlu0 %v1424
    %v1426 = vpop.xlane.xlu0 %1425
    %v1427 = vcvt.f32.s32 %v1426
    %v1428 = vcvt.f32.s32 %v1422
    %v1429 = vshll.u32 %v1428, 16
    %v1430 = vadd.s32 %v1429, %v1427
    %v1431 = vand.u32 %v1272, 65535
    %v1432 = vshra.s32 %v1272, 16
    %v1433 = vcvt.s32.f32 %v1431
    %v1434 = vcvt.s32.f32 %v1432
    %1435 = vmin.xlane.f32.xlu0 %v1434
    %v1436 = vpop.xlane.xlu0 %1435
    %vm1437 = vcmp.eq.f32.partialorder %v1434, %v1436
    %v1438 = vsel %vm1437, %v1433, inf
    %1439 = vmin.xlane.f32.xlu0 %v1438
    %v1440 = vpop.xlane.xlu0 %1439
    %v1441 = vcvt.f32.s32 %v1440
    %v1442 = vcvt.f32.s32 %v1436
    %v1443 = vshll.u32 %v1442, 16
    %v1444 = vadd.s32 %v1443, %v1441
    %v1445 = vand.u32 %v1273, 65535
    %v1446 = vshra.s32 %v1273, 16
    %v1447 = vcvt.s32.f32 %v1445
    %v1448 = vcvt.s32.f32 %v1446
    %1449 = vmin.xlane.f32.xlu0 %v1448
    %v1450 = vpop.xlane.xlu0 %1449
    %vm1451 = vcmp.eq.f32.partialorder %v1448, %v1450
    %v1452 = vsel %vm1451, %v1447, inf
    %1453 = vmin.xlane.f32.xlu0 %v1452
    %v1454 = vpop.xlane.xlu0 %1453
    %v1455 = vcvt.f32.s32 %v1454
    %v1456 = vcvt.f32.s32 %v1450
    %v1457 = vshll.u32 %v1456, 16
    %v1458 = vadd.s32 %v1457, %v1455
    %v1459 = vand.u32 %v1274, 65535
    %v1460 = vshra.s32 %v1274, 16
    %v1461 = vcvt.s32.f32 %v1459
    %v1462 = vcvt.s32.f32 %v1460
    %1463 = vmin.xlane.f32.xlu0 %v1462
    %v1464 = vpop.xlane.xlu0 %1463
    %vm1465 = vcmp.eq.f32.partialorder %v1462, %v1464
    %v1466 = vsel %vm1465, %v1461, inf
    %1467 = vmin.xlane.f32.xlu0 %v1466
    %v1468 = vpop.xlane.xlu0 %1467
    %v1469 = vcvt.f32.s32 %v1468
    %v1470 = vcvt.f32.s32 %v1464
    %v1471 = vshll.u32 %v1470, 16
    %v1472 = vadd.s32 %v1471, %v1469
    %v1473 = vand.u32 %v1275, 65535
    %v1474 = vshra.s32 %v1275, 16
    %v1475 = vcvt.s32.f32 %v1473
    %v1476 = vcvt.s32.f32 %v1474
    %1477 = vmin.xlane.f32.xlu0 %v1476
    %v1478 = vpop.xlane.xlu0 %1477
    %vm1479 = vcmp.eq.f32.partialorder %v1476, %v1478
    %v1480 = vsel %vm1479, %v1475, inf
    %1481 = vmin.xlane.f32.xlu0 %v1480
    %v1482 = vpop.xlane.xlu0 %1481
    %v1483 = vcvt.f32.s32 %v1482
    %v1484 = vcvt.f32.s32 %v1478
    %v1485 = vshll.u32 %v1484, 16
    %v1486 = vadd.s32 %v1485, %v1483
    %v1487 = vand.u32 %v1276, 65535
    %v1488 = vshra.s32 %v1276, 16
    %v1489 = vcvt.s32.f32 %v1487
    %v1490 = vcvt.s32.f32 %v1488
    %1491 = vmin.xlane.f32.xlu0 %v1490
    %v1492 = vpop.xlane.xlu0 %1491
    %vm1493 = vcmp.eq.f32.partialorder %v1490, %v1492
    %v1494 = vsel %vm1493, %v1489, inf
    %1495 = vmin.xlane.f32.xlu0 %v1494
    %v1496 = vpop.xlane.xlu0 %1495
    %v1497 = vcvt.f32.s32 %v1496
    %v1498 = vcvt.f32.s32 %v1492
    %v1499 = vshll.u32 %v1498, 16
    %v1500 = vadd.s32 %v1499, %v1497
    %vm1501 = vcmp.eq.s32.totalorder %v235, %v1290
    %vm1502 = vcmp.eq.s32.totalorder %v235, %v1304
    %vm1503 = vcmp.eq.s32.totalorder %v235, %v1318
    %vm1504 = vcmp.eq.s32.totalorder %v235, %v1332
    %vm1505 = vcmp.eq.s32.totalorder %v235, %v1346
    %vm1506 = vcmp.eq.s32.totalorder %v235, %v1360
    %vm1507 = vcmp.eq.s32.totalorder %v235, %v1374
    %vm1508 = vcmp.eq.s32.totalorder %v235, %v1388
    %vm1509 = vcmp.eq.s32.totalorder %v235, %v1402
    %vm1510 = vcmp.eq.s32.totalorder %v235, %v1416
    %vm1511 = vcmp.eq.s32.totalorder %v235, %v1430
    %vm1512 = vcmp.eq.s32.totalorder %v235, %v1444
    %vm1513 = vcmp.eq.s32.totalorder %v235, %v1458
    %vm1514 = vcmp.eq.s32.totalorder %v235, %v1472
    %vm1515 = vcmp.eq.s32.totalorder %v235, %v1486
    %vm1516 = vcmp.eq.s32.totalorder %v235, %v1500
    %v1517 = vsel %vm1501, inf, %v1197
    %v1518 = vsel %vm1502, inf, %v1198
    %v1519 = vsel %vm1503, inf, %v1199
    %v1520 = vsel %vm1504, inf, %v1200
    %v1521 = vsel %vm1505, inf, %v1201
    %v1522 = vsel %vm1506, inf, %v1202
    %v1523 = vsel %vm1507, inf, %v1203
    %v1524 = vsel %vm1508, inf, %v1204
    %v1525 = vsel %vm1509, inf, %v1205
    %v1526 = vsel %vm1510, inf, %v1206
    %v1527 = vsel %vm1511, inf, %v1207
    %v1528 = vsel %vm1512, inf, %v1208
    %v1529 = vsel %vm1513, inf, %v1209
    %v1530 = vsel %vm1514, inf, %v1210
    %v1531 = vsel %vm1515, inf, %v1211
    %v1532 = vsel %vm1516, inf, %v1212
    %1533 = vmin.xlane.f32.xlu0 %v1517
    %v1534 = vpop.xlane.xlu0 %1533
    %1535 = vmin.xlane.f32.xlu0 %v1518
    %v1536 = vpop.xlane.xlu0 %1535
    %1537 = vmin.xlane.f32.xlu0 %v1519
    %v1538 = vpop.xlane.xlu0 %1537
    %1539 = vmin.xlane.f32.xlu0 %v1520
    %v1540 = vpop.xlane.xlu0 %1539
    %1541 = vmin.xlane.f32.xlu0 %v1521
    %v1542 = vpop.xlane.xlu0 %1541
    %1543 = vmin.xlane.f32.xlu0 %v1522
    %v1544 = vpop.xlane.xlu0 %1543
    %1545 = vmin.xlane.f32.xlu0 %v1523
    %v1546 = vpop.xlane.xlu0 %1545
    %1547 = vmin.xlane.f32.xlu0 %v1524
    %v1548 = vpop.xlane.xlu0 %1547
    %1549 = vmin.xlane.f32.xlu0 %v1525
    %v1550 = vpop.xlane.xlu0 %1549
    %1551 = vmin.xlane.f32.xlu0 %v1526
    %v1552 = vpop.xlane.xlu0 %1551
    %1553 = vmin.xlane.f32.xlu0 %v1527
    %v1554 = vpop.xlane.xlu0 %1553
    %1555 = vmin.xlane.f32.xlu0 %v1528
    %v1556 = vpop.xlane.xlu0 %1555
    %1557 = vmin.xlane.f32.xlu0 %v1529
    %v1558 = vpop.xlane.xlu0 %1557
    %1559 = vmin.xlane.f32.xlu0 %v1530
    %v1560 = vpop.xlane.xlu0 %1559
    %1561 = vmin.xlane.f32.xlu0 %v1531
    %v1562 = vpop.xlane.xlu0 %1561
    %1563 = vmin.xlane.f32.xlu0 %v1532
    %v1564 = vpop.xlane.xlu0 %1563
    %vm1565 = vcmp.eq.f32.partialorder %v1517, %v1534
    %vm1566 = vcmp.eq.f32.partialorder %v1518, %v1536
    %vm1567 = vcmp.eq.f32.partialorder %v1519, %v1538
    %vm1568 = vcmp.eq.f32.partialorder %v1520, %v1540
    %vm1569 = vcmp.eq.f32.partialorder %v1521, %v1542
    %vm1570 = vcmp.eq.f32.partialorder %v1522, %v1544
    %vm1571 = vcmp.eq.f32.partialorder %v1523, %v1546
    %vm1572 = vcmp.eq.f32.partialorder %v1524, %v1548
    %vm1573 = vcmp.eq.f32.partialorder %v1525, %v1550
    %vm1574 = vcmp.eq.f32.partialorder %v1526, %v1552
    %vm1575 = vcmp.eq.f32.partialorder %v1527, %v1554
    %vm1576 = vcmp.eq.f32.partialorder %v1528, %v1556
    %vm1577 = vcmp.eq.f32.partialorder %v1529, %v1558
    %vm1578 = vcmp.eq.f32.partialorder %v1530, %v1560
    %vm1579 = vcmp.eq.f32.partialorder %v1531, %v1562
    %vm1580 = vcmp.eq.f32.partialorder %v1532, %v1564
    %v1581 = vsel %vm1565, %v235, 128
    %v1582 = vsel %vm1566, %v235, 128
    %v1583 = vsel %vm1567, %v235, 128
    %v1584 = vsel %vm1568, %v235, 128
    %v1585 = vsel %vm1569, %v235, 128
    %v1586 = vsel %vm1570, %v235, 128
    %v1587 = vsel %vm1571, %v235, 128
    %v1588 = vsel %vm1572, %v235, 128
    %v1589 = vsel %vm1573, %v235, 128
    %v1590 = vsel %vm1574, %v235, 128
    %v1591 = vsel %vm1575, %v235, 128
    %v1592 = vsel %vm1576, %v235, 128
    %v1593 = vsel %vm1577, %v235, 128
    %v1594 = vsel %vm1578, %v235, 128
    %v1595 = vsel %vm1579, %v235, 128
    %v1596 = vsel %vm1580, %v235, 128
    %v1597 = vand.u32 %v1581, 65535
    %v1598 = vshra.s32 %v1581, 16
    %v1599 = vcvt.s32.f32 %v1597
    %v1600 = vcvt.s32.f32 %v1598
    %1601 = vmin.xlane.f32.xlu0 %v1600
    %v1602 = vpop.xlane.xlu0 %1601
    %vm1603 = vcmp.eq.f32.partialorder %v1600, %v1602
    %v1604 = vsel %vm1603, %v1599, inf
    %1605 = vmin.xlane.f32.xlu0 %v1604
    %v1606 = vpop.xlane.xlu0 %1605
    %v1607 = vcvt.f32.s32 %v1606
    %v1608 = vcvt.f32.s32 %v1602
    %v1609 = vshll.u32 %v1608, 16
    %v1610 = vadd.s32 %v1609, %v1607
    %v1611 = vand.u32 %v1582, 65535
    %v1612 = vshra.s32 %v1582, 16
    %v1613 = vcvt.s32.f32 %v1611
    %v1614 = vcvt.s32.f32 %v1612
    %1615 = vmin.xlane.f32.xlu0 %v1614
    %v1616 = vpop.xlane.xlu0 %1615
    %vm1617 = vcmp.eq.f32.partialorder %v1614, %v1616
    %v1618 = vsel %vm1617, %v1613, inf
    %1619 = vmin.xlane.f32.xlu0 %v1618
    %v1620 = vpop.xlane.xlu0 %1619
    %v1621 = vcvt.f32.s32 %v1620
    %v1622 = vcvt.f32.s32 %v1616
    %v1623 = vshll.u32 %v1622, 16
    %v1624 = vadd.s32 %v1623, %v1621
    %v1625 = vand.u32 %v1583, 65535
    %v1626 = vshra.s32 %v1583, 16
    %v1627 = vcvt.s32.f32 %v1625
    %v1628 = vcvt.s32.f32 %v1626
    %1629 = vmin.xlane.f32.xlu0 %v1628
    %v1630 = vpop.xlane.xlu0 %1629
    %vm1631 = vcmp.eq.f32.partialorder %v1628, %v1630
    %v1632 = vsel %vm1631, %v1627, inf
    %1633 = vmin.xlane.f32.xlu0 %v1632
    %v1634 = vpop.xlane.xlu0 %1633
    %v1635 = vcvt.f32.s32 %v1634
    %v1636 = vcvt.f32.s32 %v1630
    %v1637 = vshll.u32 %v1636, 16
    %v1638 = vadd.s32 %v1637, %v1635
    %v1639 = vand.u32 %v1584, 65535
    %v1640 = vshra.s32 %v1584, 16
    %v1641 = vcvt.s32.f32 %v1639
    %v1642 = vcvt.s32.f32 %v1640
    %1643 = vmin.xlane.f32.xlu0 %v1642
    %v1644 = vpop.xlane.xlu0 %1643
    %vm1645 = vcmp.eq.f32.partialorder %v1642, %v1644
    %v1646 = vsel %vm1645, %v1641, inf
    %1647 = vmin.xlane.f32.xlu0 %v1646
    %v1648 = vpop.xlane.xlu0 %1647
    %v1649 = vcvt.f32.s32 %v1648
    %v1650 = vcvt.f32.s32 %v1644
    %v1651 = vshll.u32 %v1650, 16
    %v1652 = vadd.s32 %v1651, %v1649
    %v1653 = vand.u32 %v1585, 65535
    %v1654 = vshra.s32 %v1585, 16
    %v1655 = vcvt.s32.f32 %v1653
    %v1656 = vcvt.s32.f32 %v1654
    %1657 = vmin.xlane.f32.xlu0 %v1656
    %v1658 = vpop.xlane.xlu0 %1657
    %vm1659 = vcmp.eq.f32.partialorder %v1656, %v1658
    %v1660 = vsel %vm1659, %v1655, inf
    %1661 = vmin.xlane.f32.xlu0 %v1660
    %v1662 = vpop.xlane.xlu0 %1661
    %v1663 = vcvt.f32.s32 %v1662
    %v1664 = vcvt.f32.s32 %v1658
    %v1665 = vshll.u32 %v1664, 16
    %v1666 = vadd.s32 %v1665, %v1663
    %v1667 = vand.u32 %v1586, 65535
    %v1668 = vshra.s32 %v1586, 16
    %v1669 = vcvt.s32.f32 %v1667
    %v1670 = vcvt.s32.f32 %v1668
    %1671 = vmin.xlane.f32.xlu0 %v1670
    %v1672 = vpop.xlane.xlu0 %1671
    %vm1673 = vcmp.eq.f32.partialorder %v1670, %v1672
    %v1674 = vsel %vm1673, %v1669, inf
    %1675 = vmin.xlane.f32.xlu0 %v1674
    %v1676 = vpop.xlane.xlu0 %1675
    %v1677 = vcvt.f32.s32 %v1676
    %v1678 = vcvt.f32.s32 %v1672
    %v1679 = vshll.u32 %v1678, 16
    %v1680 = vadd.s32 %v1679, %v1677
    %v1681 = vand.u32 %v1587, 65535
    %v1682 = vshra.s32 %v1587, 16
    %v1683 = vcvt.s32.f32 %v1681
    %v1684 = vcvt.s32.f32 %v1682
    %1685 = vmin.xlane.f32.xlu0 %v1684
    %v1686 = vpop.xlane.xlu0 %1685
    %vm1687 = vcmp.eq.f32.partialorder %v1684, %v1686
    %v1688 = vsel %vm1687, %v1683, inf
    %1689 = vmin.xlane.f32.xlu0 %v1688
    %v1690 = vpop.xlane.xlu0 %1689
    %v1691 = vcvt.f32.s32 %v1690
    %v1692 = vcvt.f32.s32 %v1686
    %v1693 = vshll.u32 %v1692, 16
    %v1694 = vadd.s32 %v1693, %v1691
    %v1695 = vand.u32 %v1588, 65535
    %v1696 = vshra.s32 %v1588, 16
    %v1697 = vcvt.s32.f32 %v1695
    %v1698 = vcvt.s32.f32 %v1696
    %1699 = vmin.xlane.f32.xlu0 %v1698
    %v1700 = vpop.xlane.xlu0 %1699
    %vm1701 = vcmp.eq.f32.partialorder %v1698, %v1700
    %v1702 = vsel %vm1701, %v1697, inf
    %1703 = vmin.xlane.f32.xlu0 %v1702
    %v1704 = vpop.xlane.xlu0 %1703
    %v1705 = vcvt.f32.s32 %v1704
    %v1706 = vcvt.f32.s32 %v1700
    %v1707 = vshll.u32 %v1706, 16
    %v1708 = vadd.s32 %v1707, %v1705
    %v1709 = vand.u32 %v1589, 65535
    %v1710 = vshra.s32 %v1589, 16
    %v1711 = vcvt.s32.f32 %v1709
    %v1712 = vcvt.s32.f32 %v1710
    %1713 = vmin.xlane.f32.xlu0 %v1712
    %v1714 = vpop.xlane.xlu0 %1713
    %vm1715 = vcmp.eq.f32.partialorder %v1712, %v1714
    %v1716 = vsel %vm1715, %v1711, inf
    %1717 = vmin.xlane.f32.xlu0 %v1716
    %v1718 = vpop.xlane.xlu0 %1717
    %v1719 = vcvt.f32.s32 %v1718
    %v1720 = vcvt.f32.s32 %v1714
    %v1721 = vshll.u32 %v1720, 16
    %v1722 = vadd.s32 %v1721, %v1719
    %v1723 = vand.u32 %v1590, 65535
    %v1724 = vshra.s32 %v1590, 16
    %v1725 = vcvt.s32.f32 %v1723
    %v1726 = vcvt.s32.f32 %v1724
    %1727 = vmin.xlane.f32.xlu0 %v1726
    %v1728 = vpop.xlane.xlu0 %1727
    %vm1729 = vcmp.eq.f32.partialorder %v1726, %v1728
    %v1730 = vsel %vm1729, %v1725, inf
    %1731 = vmin.xlane.f32.xlu0 %v1730
    %v1732 = vpop.xlane.xlu0 %1731
    %v1733 = vcvt.f32.s32 %v1732
    %v1734 = vcvt.f32.s32 %v1728
    %v1735 = vshll.u32 %v1734, 16
    %v1736 = vadd.s32 %v1735, %v1733
    %v1737 = vand.u32 %v1591, 65535
    %v1738 = vshra.s32 %v1591, 16
    %v1739 = vcvt.s32.f32 %v1737
    %v1740 = vcvt.s32.f32 %v1738
    %1741 = vmin.xlane.f32.xlu0 %v1740
    %v1742 = vpop.xlane.xlu0 %1741
    %vm1743 = vcmp.eq.f32.partialorder %v1740, %v1742
    %v1744 = vsel %vm1743, %v1739, inf
    %1745 = vmin.xlane.f32.xlu0 %v1744
    %v1746 = vpop.xlane.xlu0 %1745
    %v1747 = vcvt.f32.s32 %v1746
    %v1748 = vcvt.f32.s32 %v1742
    %v1749 = vshll.u32 %v1748, 16
    %v1750 = vadd.s32 %v1749, %v1747
    %v1751 = vand.u32 %v1592, 65535
    %v1752 = vshra.s32 %v1592, 16
    %v1753 = vcvt.s32.f32 %v1751
    %v1754 = vcvt.s32.f32 %v1752
    %1755 = vmin.xlane.f32.xlu0 %v1754
    %v1756 = vpop.xlane.xlu0 %1755
    %vm1757 = vcmp.eq.f32.partialorder %v1754, %v1756
    %v1758 = vsel %vm1757, %v1753, inf
    %1759 = vmin.xlane.f32.xlu0 %v1758
    %v1760 = vpop.xlane.xlu0 %1759
    %v1761 = vcvt.f32.s32 %v1760
    %v1762 = vcvt.f32.s32 %v1756
    %v1763 = vshll.u32 %v1762, 16
    %v1764 = vadd.s32 %v1763, %v1761
    %v1765 = vand.u32 %v1593, 65535
    %v1766 = vshra.s32 %v1593, 16
    %v1767 = vcvt.s32.f32 %v1765
    %v1768 = vcvt.s32.f32 %v1766
    %1769 = vmin.xlane.f32.xlu0 %v1768
    %v1770 = vpop.xlane.xlu0 %1769
    %vm1771 = vcmp.eq.f32.partialorder %v1768, %v1770
    %v1772 = vsel %vm1771, %v1767, inf
    %1773 = vmin.xlane.f32.xlu0 %v1772
    %v1774 = vpop.xlane.xlu0 %1773
    %v1775 = vcvt.f32.s32 %v1774
    %v1776 = vcvt.f32.s32 %v1770
    %v1777 = vshll.u32 %v1776, 16
    %v1778 = vadd.s32 %v1777, %v1775
    %v1779 = vand.u32 %v1594, 65535
    %v1780 = vshra.s32 %v1594, 16
    %v1781 = vcvt.s32.f32 %v1779
    %v1782 = vcvt.s32.f32 %v1780
    %1783 = vmin.xlane.f32.xlu0 %v1782
    %v1784 = vpop.xlane.xlu0 %1783
    %vm1785 = vcmp.eq.f32.partialorder %v1782, %v1784
    %v1786 = vsel %vm1785, %v1781, inf
    %1787 = vmin.xlane.f32.xlu0 %v1786
    %v1788 = vpop.xlane.xlu0 %1787
    %v1789 = vcvt.f32.s32 %v1788
    %v1790 = vcvt.f32.s32 %v1784
    %v1791 = vshll.u32 %v1790, 16
    %v1792 = vadd.s32 %v1791, %v1789
    %v1793 = vand.u32 %v1595, 65535
    %v1794 = vshra.s32 %v1595, 16
    %v1795 = vcvt.s32.f32 %v1793
    %v1796 = vcvt.s32.f32 %v1794
    %1797 = vmin.xlane.f32.xlu0 %v1796
    %v1798 = vpop.xlane.xlu0 %1797
    %vm1799 = vcmp.eq.f32.partialorder %v1796, %v1798
    %v1800 = vsel %vm1799, %v1795, inf
    %1801 = vmin.xlane.f32.xlu0 %v1800
    %v1802 = vpop.xlane.xlu0 %1801
    %v1803 = vcvt.f32.s32 %v1802
    %v1804 = vcvt.f32.s32 %v1798
    %v1805 = vshll.u32 %v1804, 16
    %v1806 = vadd.s32 %v1805, %v1803
    %v1807 = vand.u32 %v1596, 65535
    %v1808 = vshra.s32 %v1596, 16
    %v1809 = vcvt.s32.f32 %v1807
    %v1810 = vcvt.s32.f32 %v1808
    %1811 = vmin.xlane.f32.xlu0 %v1810
    %v1812 = vpop.xlane.xlu0 %1811
    %vm1813 = vcmp.eq.f32.partialorder %v1810, %v1812
    %v1814 = vsel %vm1813, %v1809, inf
    %1815 = vmin.xlane.f32.xlu0 %v1814
    %v1816 = vpop.xlane.xlu0 %1815
    %v1817 = vcvt.f32.s32 %v1816
    %v1818 = vcvt.f32.s32 %v1812
    %v1819 = vshll.u32 %v1818, 16
    %v1820 = vadd.s32 %v1819, %v1817
    %vm1821 = vcmp.eq.s32.totalorder %v235, %v1610
    %vm1822 = vcmp.eq.s32.totalorder %v235, %v1624
    %vm1823 = vcmp.eq.s32.totalorder %v235, %v1638
    %vm1824 = vcmp.eq.s32.totalorder %v235, %v1652
    %vm1825 = vcmp.eq.s32.totalorder %v235, %v1666
    %vm1826 = vcmp.eq.s32.totalorder %v235, %v1680
    %vm1827 = vcmp.eq.s32.totalorder %v235, %v1694
    %vm1828 = vcmp.eq.s32.totalorder %v235, %v1708
    %vm1829 = vcmp.eq.s32.totalorder %v235, %v1722
    %vm1830 = vcmp.eq.s32.totalorder %v235, %v1736
    %vm1831 = vcmp.eq.s32.totalorder %v235, %v1750
    %vm1832 = vcmp.eq.s32.totalorder %v235, %v1764
    %vm1833 = vcmp.eq.s32.totalorder %v235, %v1778
    %vm1834 = vcmp.eq.s32.totalorder %v235, %v1792
    %vm1835 = vcmp.eq.s32.totalorder %v235, %v1806
    %vm1836 = vcmp.eq.s32.totalorder %v235, %v1820
    %v1837 = vsel %vm1821, inf, %v1517
    %v1838 = vsel %vm1822, inf, %v1518
    %v1839 = vsel %vm1823, inf, %v1519
    %v1840 = vsel %vm1824, inf, %v1520
    %v1841 = vsel %vm1825, inf, %v1521
    %v1842 = vsel %vm1826, inf, %v1522
    %v1843 = vsel %vm1827, inf, %v1523
    %v1844 = vsel %vm1828, inf, %v1524
    %v1845 = vsel %vm1829, inf, %v1525
    %v1846 = vsel %vm1830, inf, %v1526
    %v1847 = vsel %vm1831, inf, %v1527
    %v1848 = vsel %vm1832, inf, %v1528
    %v1849 = vsel %vm1833, inf, %v1529
    %v1850 = vsel %vm1834, inf, %v1530
    %v1851 = vsel %vm1835, inf, %v1531
    %v1852 = vsel %vm1836, inf, %v1532
    %vm1853 = vcmp.eq.f32.partialorder %v1837, inf
    %vm1854 = vcmp.eq.f32.partialorder %v1838, inf
    %vm1855 = vcmp.eq.f32.partialorder %v1839, inf
    %vm1856 = vcmp.eq.f32.partialorder %v1840, inf
    %vm1857 = vcmp.eq.f32.partialorder %v1841, inf
    %vm1858 = vcmp.eq.f32.partialorder %v1842, inf
    %vm1859 = vcmp.eq.f32.partialorder %v1843, inf
    %vm1860 = vcmp.eq.f32.partialorder %v1844, inf
    %vm1861 = vcmp.eq.f32.partialorder %v1845, inf
    %vm1862 = vcmp.eq.f32.partialorder %v1846, inf
    %vm1863 = vcmp.eq.f32.partialorder %v1847, inf
    %vm1864 = vcmp.eq.f32.partialorder %v1848, inf
    %vm1865 = vcmp.eq.f32.partialorder %v1849, inf
    %vm1866 = vcmp.eq.f32.partialorder %v1850, inf
    %vm1867 = vcmp.eq.f32.partialorder %v1851, inf
    %vm1868 = vcmp.eq.f32.partialorder %v1852, inf
    %vm1869 = vcmp.ne.s32.totalorder %v235, %v330
    %vm1870 = vcmp.ne.s32.totalorder %v235, %v344
    %vm1871 = vcmp.ne.s32.totalorder %v235, %v358
    %vm1872 = vcmp.ne.s32.totalorder %v235, %v372
    %vm1873 = vcmp.ne.s32.totalorder %v235, %v386
    %vm1874 = vcmp.ne.s32.totalorder %v235, %v400
    %vm1875 = vcmp.ne.s32.totalorder %v235, %v414
    %vm1876 = vcmp.ne.s32.totalorder %v235, %v428
    %vm1877 = vcmp.ne.s32.totalorder %v235, %v442
    %vm1878 = vcmp.ne.s32.totalorder %v235, %v456
    %vm1879 = vcmp.ne.s32.totalorder %v235, %v470
    %vm1880 = vcmp.ne.s32.totalorder %v235, %v484
    %vm1881 = vcmp.ne.s32.totalorder %v235, %v498
    %vm1882 = vcmp.ne.s32.totalorder %v235, %v512
    %vm1883 = vcmp.ne.s32.totalorder %v235, %v526
    %vm1884 = vcmp.ne.s32.totalorder %v235, %v540
    %vm1885 = vmand %vm1853, %vm1869
    %vm1886 = vmand %vm1854, %vm1870
    %vm1887 = vmand %vm1855, %vm1871
    %vm1888 = vmand %vm1856, %vm1872
    %vm1889 = vmand %vm1857, %vm1873
    %vm1890 = vmand %vm1858, %vm1874
    %vm1891 = vmand %vm1859, %vm1875
    %vm1892 = vmand %vm1860, %vm1876
    %vm1893 = vmand %vm1861, %vm1877
    %vm1894 = vmand %vm1862, %vm1878
    %vm1895 = vmand %vm1863, %vm1879
    %vm1896 = vmand %vm1864, %vm1880
    %vm1897 = vmand %vm1865, %vm1881
    %vm1898 = vmand %vm1866, %vm1882
    %vm1899 = vmand %vm1867, %vm1883
    %vm1900 = vmand %vm1868, %vm1884
    %vm1901 = vmand %vm1885, %vm236
    %vm1902 = vmand %vm1886, %vm236
    %vm1903 = vmand %vm1887, %vm236
    %vm1904 = vmand %vm1888, %vm236
    %vm1905 = vmand %vm1889, %vm236
    %vm1906 = vmand %vm1890, %vm236
    %vm1907 = vmand %vm1891, %vm236
    %vm1908 = vmand %vm1892, %vm236
    %vm1909 = vmand %vm1893, %vm236
    %vm1910 = vmand %vm1894, %vm236
    %vm1911 = vmand %vm1895, %vm236
    %vm1912 = vmand %vm1896, %vm236
    %vm1913 = vmand %vm1897, %vm236
    %vm1914 = vmand %vm1898, %vm236
    %vm1915 = vmand %vm1899, %vm236
    %vm1916 = vmand %vm1900, %vm236
    %v1917 = vsel %vm1901, %v218, 0.0
    %v1918 = vsel %vm1902, %v219, 0.0
    %v1919 = vsel %vm1903, %v220, 0.0
    %v1920 = vsel %vm1904, %v221, 0.0
    %v1921 = vsel %vm1905, %v222, 0.0
    %v1922 = vsel %vm1906, %v223, 0.0
    %v1923 = vsel %vm1907, %v224, 0.0
    %v1924 = vsel %vm1908, %v225, 0.0
    %v1925 = vsel %vm1909, %v226, 0.0
    %v1926 = vsel %vm1910, %v227, 0.0
    %v1927 = vsel %vm1911, %v228, 0.0
    %v1928 = vsel %vm1912, %v229, 0.0
    %v1929 = vsel %vm1913, %v230, 0.0
    %v1930 = vsel %vm1914, %v231, 0.0
    %v1931 = vsel %vm1915, %v232, 0.0
    %v1932 = vsel %vm1916, %v233, 0.0
    %1933 = vst [vmem:[#allocation5] sm:$0xff] %v1917
    %1934 = vst [vmem:[#allocation5 + $0x8] sm:$0xff] %v1918
    %1935 = vst [vmem:[#allocation5 + $0x10] sm:$0xff] %v1919
    %1936 = vst [vmem:[#allocation5 + $0x18] sm:$0xff] %v1920
    %1937 = vst [vmem:[#allocation5 + $0x20] sm:$0xff] %v1921
    %1938 = vst [vmem:[#allocation5 + $0x28] sm:$0xff] %v1922
    %1939 = vst [vmem:[#allocation5 + $0x30] sm:$0xff] %v1923
    %1940 = vst [vmem:[#allocation5 + $0x38] sm:$0xff] %v1924
    %1941 = vst [vmem:[#allocation5 + $0x40] sm:$0xff] %v1925
    %1942 = vst [vmem:[#allocation5 + $0x48] sm:$0xff] %v1926
    %1943 = vst [vmem:[#allocation5 + $0x50] sm:$0xff] %v1927
    %1944 = vst [vmem:[#allocation5 + $0x58] sm:$0xff] %v1928
    %1945 = vst [vmem:[#allocation5 + $0x60] sm:$0xff] %v1929
    %1946 = vst [vmem:[#allocation5 + $0x68] sm:$0xff] %v1930
    %1947 = vst [vmem:[#allocation5 + $0x70] sm:$0xff] %v1931
    %1948 = vst [vmem:[#allocation5 + $0x78] sm:$0xff] %v1932
    // Predicated region
    $region10: #{tpu_custom_call.1} parent=1 // pred_check
      _
    $region11: #{tpu_custom_call.1} parent=1 // pred_check_branch
      %1950 = sbr.rel (0) target = $region13
    $region12: #{tpu_custom_call.1} parent=1 // pred_region
      %s1952 = ssub.s32 2048, 2048
      %1953 = vsyncadd [#allocation4], %s1952
      %s1954 = sshll.u32 [#allocation5], 4
      %s1955 = int_to_ptr.vmem [resolvable:$true] %s1954
      %1960 = dma.vmem_to_hbm [thread:$0]  %s1955, 2048, %s1, [#allocation4], 128, 128, 8
    $region13: #{tpu_custom_call.1} parent=1 // pred_fallthru
      _
    // Predicated region
    $region14: #{tpu_custom_call.1} parent=1 // pred_check
      _
    $region15: #{tpu_custom_call.1} parent=1 // pred_check_branch
      %1962 = sbr.rel (0) target = $region17
    $region16: #{tpu_custom_call.1} parent=1 // pred_region
      %1963 = dma.done [#allocation4], 2048
    $region17: #{tpu_custom_call.1} parent=1 // pred_fallthru
      _
    %1964 = vsyncpa [#allocation3], 1
    %1965 = vsyncpa [#allocation4], 1

// kernel: tpu_custom_call.1
$region0: #{tpu_custom_call.1}
  #allocation0 [shape = 'u32[]', space=smem, size = 0x4, offset = 0x4, fixed_abs, tag = 'smem constant byte address 0x4 - core index']
  #allocation1 [shape = 'u32[144,128]{1,0:T(1,128)}', space=vmem, size = 0x12000, scoped, tag = 'internal scratch']
  %s0 = inlined_call_operand.hbm [shape: f32[128,128], index: 0, kind: input, shape index: {}]
  %s1 = inlined_call_operand.hbm [shape: f32[128,128], index: 1, kind: output, shape index: {}]
  %s2 = sld [smem:[#allocation0]]
  $region18: #{tpu_custom_call.1} parent=0
    _
  %s4 = ssub.s32 1, %s2
  %s5 = scalar_select 0, %s4, %s2
  $region1: #{tpu_custom_call.1} parent=0
    #allocation2 [shape = 'u8[65536]{0}', space=vmem, size = 0x10000, scoped, tag = 'input window, operand 0, single buffered']
    #allocation3 [shape = 's32[1]{0}', space=sflag, size = 0x4, scoped, tag = 'scoped memory for tpu_custom_call.1']
    #allocation4 [shape = 's32[1]{0}', space=sflag, size = 0x4, scoped, tag = 'scoped memory for tpu_custom_call.1']
    #allocation5 [shape = 'u8[65536]{0}', space=vmem, size = 0x10000, scoped, tag = 'output window, operand 0, single buffered']
    %6 = vsyncpa [#allocation3], 0
    %7 = vsyncpa [#allocation4], 0
    // Predicated region
    $region2: #{tpu_custom_call.1} parent=1 // pred_check
      _
    $region3: #{tpu_custom_call.1} parent=1 // pred_check_branch
      %9 = sbr.rel (0) target = $region5
    $region4: #{tpu_custom_call.1} parent=1 // pred_region
      %s11 = ssub.s32 2048, 2048
      %12 = vsyncadd [#allocation3], %s11
      %s13 = sshll.u32 [#allocation2], 4
      %s14 = int_to_ptr.vmem [resolvable:$true] %s13
      %19 = dma.hbm_to_vmem [thread:$0]  %s0, 2048, %s14, [#allocation3], 128, 128, 8
    $region5: #{tpu_custom_call.1} parent=1 // pred_fallthru
      _
    // Predicated region
    $region6: #{tpu_custom_call.1} parent=1 // pred_check
      _
    $region7: #{tpu_custom_call.1} parent=1 // pred_check_branch
      %21 = sbr.rel (0) target = $region9
    $region8: #{tpu_custom_call.1} parent=1 // pred_region
      %22 = dma.done [#allocation3], 2048
    $region9: #{tpu_custom_call.1} parent=1 // pred_fallthru
      _
    %s23 = smul.u32 0, 128
    %s24 = scalar_lea.vmem [#allocation2], %s23
    %v25 = vld [vmem:[%s24] sm:$0xff]
    %v26 = vld [vmem:[%s24 + $0x8] sm:$0xff]
    %v27 = vld [vmem:[%s24 + $0x10] sm:$0xff]
    %v28 = vld [vmem:[%s24 + $0x18] sm:$0xff]
    %v29 = vld [vmem:[%s24 + $0x20] sm:$0xff]
    %v30 = vld [vmem:[%s24 + $0x28] sm:$0xff]
    %v31 = vld [vmem:[%s24 + $0x30] sm:$0xff]
    %v32 = vld [vmem:[%s24 + $0x38] sm:$0xff]
    %v33 = vld [vmem:[%s24 + $0x40] sm:$0xff]
    %v34 = vld [vmem:[%s24 + $0x48] sm:$0xff]
    %v35 = vld [vmem:[%s24 + $0x50] sm:$0xff]
    %v36 = vld [vmem:[%s24 + $0x58] sm:$0xff]
    %v37 = vld [vmem:[%s24 + $0x60] sm:$0xff]
    %v38 = vld [vmem:[%s24 + $0x68] sm:$0xff]
    %v39 = vld [vmem:[%s24 + $0x70] sm:$0xff]
    %v40 = vld [vmem:[%s24 + $0x78] sm:$0xff]
    %v41 = vld [vmem:[#allocation2] sm:$0xff]
    %v42 = vld [vmem:[#allocation2 + $0x8] sm:$0xff]
    %v43 = vld [vmem:[#allocation2 + $0x10] sm:$0xff]
    %v44 = vld [vmem:[#allocation2 + $0x18] sm:$0xff]
    %v45 = vld [vmem:[#allocation2 + $0x20] sm:$0xff]
    %v46 = vld [vmem:[#allocation2 + $0x28] sm:$0xff]
    %v47 = vld [vmem:[#allocation2 + $0x30] sm:$0xff]
    %v48 = vld [vmem:[#allocation2 + $0x38] sm:$0xff]
    %v49 = vld [vmem:[#allocation2 + $0x40] sm:$0xff]
    %v50 = vld [vmem:[#allocation2 + $0x48] sm:$0xff]
    %v51 = vld [vmem:[#allocation2 + $0x50] sm:$0xff]
    %v52 = vld [vmem:[#allocation2 + $0x58] sm:$0xff]
    %v53 = vld [vmem:[#allocation2 + $0x60] sm:$0xff]
    %v54 = vld [vmem:[#allocation2 + $0x68] sm:$0xff]
    %v55 = vld [vmem:[#allocation2 + $0x70] sm:$0xff]
    %v56 = vld [vmem:[#allocation2 + $0x78] sm:$0xff]
    %57 = vmatprep.subr.mxu0 0.0
    %58 = vmatpush1.xpose.msra.mxu0 %v41
    %59 = vmatprep.subr.mxu0 0.0
    %60 = vmatpush1.xpose.msra.mxu0 %v42
    %61 = vmatprep.subr.mxu0 0.0
    %62 = vmatpush1.xpose.msra.mxu0 %v43
    %63 = vmatprep.subr.mxu0 0.0
    %64 = vmatpush1.xpose.msra.mxu0 %v44
    %65 = vmatprep.subr.mxu0 0.0
    %66 = vmatpush1.xpose.msra.mxu0 %v45
    %67 = vmatprep.subr.mxu0 0.0
    %68 = vmatpush1.xpose.msra.mxu0 %v46
    %69 = vmatprep.subr.mxu0 0.0
    %70 = vmatpush1.xpose.msra.mxu0 %v47
    %71 = vmatprep.subr.mxu0 0.0
    %72 = vmatpush1.xpose.msra.mxu0 %v48
    %73 = vmatprep.subr.mxu0 0.0
    %74 = vmatpush1.xpose.msra.mxu0 %v49
    %75 = vmatprep.subr.mxu0 0.0
    %76 = vmatpush1.xpose.msra.mxu0 %v50
    %77 = vmatprep.subr.mxu0 0.0
    %78 = vmatpush1.xpose.msra.mxu0 %v51
    %79 = vmatprep.subr.mxu0 0.0
    %80 = vmatpush1.xpose.msra.mxu0 %v52
    %81 = vmatprep.subr.mxu0 0.0
    %82 = vmatpush1.xpose.msra.mxu0 %v53
    %83 = vmatprep.subr.mxu0 0.0
    %84 = vmatpush1.xpose.msra.mxu0 %v54
    %85 = vmatprep.subr.mxu0 0.0
    %86 = vmatpush1.xpose.msra.mxu0 %v55
    %87 = vmatprep.subr.mxu0 0.0
    %88 = vmatpush1.xpose.msra.mxu0 %v56
    %89 = vmatprep.subr.mxu0 0.0
    %90 = vmatpush1.xpose.msra.mxu0 0.0
    %91 = vmatprep.subr.mxu0 0.0
    %92 = vmatpush1.xpose.msra.mxu0 0.0
    %93 = vmatprep.subr.mxu0 0.0
    %94 = vmatpush1.xpose.msra.mxu0 0.0
    %95 = vmatprep.subr.mxu0 0.0
    %96 = vmatpush1.xpose.msra.mxu0 0.0
    %97 = vmatprep.subr.mxu0 0.0
    %98 = vmatpush1.xpose.msra.mxu0 0.0
    %99 = vmatprep.subr.mxu0 0.0
    %100 = vmatpush1.xpose.msra.mxu0 0.0
    %101 = vmatprep.subr.mxu0 0.0
    %102 = vmatpush1.xpose.msra.mxu0 0.0
    %103 = vmatprep.subr.mxu0 0.0
    %104 = vmatpush1.xpose.msra.mxu0 0.0
    %105 = vmatprep.subr.mxu0 0.0
    %106 = vmatpush1.xpose.msra.mxu0 0.0
    %107 = vmatprep.subr.mxu0 0.0
    %108 = vmatpush1.xpose.msra.mxu0 0.0
    %109 = vmatprep.subr.mxu0 0.0
    %110 = vmatpush1.xpose.msra.mxu0 0.0
    %111 = vmatprep.subr.mxu0 0.0
    %112 = vmatpush1.xpose.msra.mxu0 0.0
    %113 = vmatprep.subr.mxu0 0.0
    %114 = vmatpush1.xpose.msra.mxu0 0.0
    %115 = vmatprep.subr.mxu0 0.0
    %116 = vmatpush1.xpose.msra.mxu0 0.0
    %117 = vmatprep.subr.mxu0 0.0
    %118 = vmatpush1.xpose.msra.mxu0 0.0
    %119 = vmatprep.subr.mxu0 0.0
    %120 = vmatpush1.xpose.msra.mxu0 0.0
    %121 = vmatprep.mubr.f32.mxu0 0.0
    %122 = vmatmul.mubr.f32.gmra.mrb[0].mxu0 %v25
    %v123 = vpop.f32.mrb[0].mxu0
    %v124 = vadd.f32 0.0, %v123
    %v125 = vpop.f32.mrb[0].mxu0
    %126 = vmatprep.mubr.f32.mxu0 0.0
    %127 = vmatmul.mubr.f32.gmra.mrb[0].mxu0 %v26
    %v128 = vpop.f32.mrb[0].mxu0
    %v129 = vadd.f32 0.0, %v128
    %v130 = vpop.f32.mrb[0].mxu0
    %131 = vmatprep.mubr.f32.mxu0 0.0
    %132 = vmatmul.mubr.f32.gmra.mrb[0].mxu0 %v27
    %v133 = vpop.f32.mrb[0].mxu0
    %v134 = vadd.f32 0.0, %v133
    %v135 = vpop.f32.mrb[0].mxu0
    %136 = vmatprep.mubr.f32.mxu0 0.0
    %137 = vmatmul.mubr.f32.gmra.mrb[0].mxu0 %v28
    %v138 = vpop.f32.mrb[0].mxu0
    %v139 = vadd.f32 0.0, %v138
    %v140 = vpop.f32.mrb[0].mxu0
    %141 = vmatprep.mubr.f32.mxu0 0.0
    %142 = vmatmul.mubr.f32.gmra.mrb[0].mxu0 %v29
    %v143 = vpop.f32.mrb[0].mxu0
    %v144 = vadd.f32 0.0, %v143
    %v145 = vpop.f32.mrb[0].mxu0
    %146 = vmatprep.mubr.f32.mxu0 0.0
    %147 = vmatmul.mubr.f32.gmra.mrb[0].mxu0 %v30
    %v148 = vpop.f32.mrb[0].mxu0
    %v149 = vadd.f32 0.0, %v148
    %v150 = vpop.f32.mrb[0].mxu0
    %151 = vmatprep.mubr.f32.mxu0 0.0
    %152 = vmatmul.mubr.f32.gmra.mrb[0].mxu0 %v31
    %v153 = vpop.f32.mrb[0].mxu0
    %v154 = vadd.f32 0.0, %v153
    %v155 = vpop.f32.mrb[0].mxu0
    %156 = vmatprep.mubr.f32.mxu0 0.0
    %157 = vmatmul.mubr.f32.gmra.mrb[0].mxu0 %v32
    %v158 = vpop.f32.mrb[0].mxu0
    %v159 = vadd.f32 0.0, %v158
    %v160 = vpop.f32.mrb[0].mxu0
    %161 = vmatprep.mubr.f32.mxu0 0.0
    %162 = vmatmul.mubr.f32.gmra.mrb[0].mxu0 %v33
    %v163 = vpop.f32.mrb[0].mxu0
    %v164 = vadd.f32 0.0, %v163
    %v165 = vpop.f32.mrb[0].mxu0
    %166 = vmatprep.mubr.f32.mxu0 0.0
    %167 = vmatmul.mubr.f32.gmra.mrb[0].mxu0 %v34
    %v168 = vpop.f32.mrb[0].mxu0
    %v169 = vadd.f32 0.0, %v168
    %v170 = vpop.f32.mrb[0].mxu0
    %171 = vmatprep.mubr.f32.mxu0 0.0
    %172 = vmatmul.mubr.f32.gmra.mrb[0].mxu0 %v35
    %v173 = vpop.f32.mrb[0].mxu0
    %v174 = vadd.f32 0.0, %v173
    %v175 = vpop.f32.mrb[0].mxu0
    %176 = vmatprep.mubr.f32.mxu0 0.0
    %177 = vmatmul.mubr.f32.gmra.mrb[0].mxu0 %v36
    %v178 = vpop.f32.mrb[0].mxu0
    %v179 = vadd.f32 0.0, %v178
    %v180 = vpop.f32.mrb[0].mxu0
    %181 = vmatprep.mubr.f32.mxu0 0.0
    %182 = vmatmul.mubr.f32.gmra.mrb[0].mxu0 %v37
    %v183 = vpop.f32.mrb[0].mxu0
    %v184 = vadd.f32 0.0, %v183
    %v185 = vpop.f32.mrb[0].mxu0
    %186 = vmatprep.mubr.f32.mxu0 0.0
    %187 = vmatmul.mubr.f32.gmra.mrb[0].mxu0 %v38
    %v188 = vpop.f32.mrb[0].mxu0
    %v189 = vadd.f32 0.0, %v188
    %v190 = vpop.f32.mrb[0].mxu0
    %191 = vmatprep.mubr.f32.mxu0 0.0
    %192 = vmatmul.mubr.f32.gmra.mrb[0].mxu0 %v39
    %v193 = vpop.f32.mrb[0].mxu0
    %v194 = vadd.f32 0.0, %v193
    %v195 = vpop.f32.mrb[0].mxu0
    %196 = vmatprep.mubr.f32.mxu0 0.0
    %197 = vmatmul.mubr.f32.gmra.mrb[0].mxu0 %v40
    %v198 = vpop.f32.mrb[0].mxu0
    %v199 = vadd.f32 0.0, %v198
    %v200 = vpop.f32.mrb[0].mxu0
    %201 = vdwg.mxu0
    %v202 = vmax.f32 %v124, -1.0
    %v203 = vmax.f32 %v129, -1.0
    %v204 = vmax.f32 %v134, -1.0
    %v205 = vmax.f32 %v139, -1.0
    %v206 = vmax.f32 %v144, -1.0
    %v207 = vmax.f32 %v149, -1.0
    %v208 = vmax.f32 %v154, -1.0
    %v209 = vmax.f32 %v159, -1.0
    %v210 = vmax.f32 %v164, -1.0
    %v211 = vmax.f32 %v169, -1.0
    %v212 = vmax.f32 %v174, -1.0
    %v213 = vmax.f32 %v179, -1.0
    %v214 = vmax.f32 %v184, -1.0
    %v215 = vmax.f32 %v189, -1.0
    %v216 = vmax.f32 %v194, -1.0
    %v217 = vmax.f32 %v199, -1.0
    %v218 = vmin.f32 %v202, 1.0
    %v219 = vmin.f32 %v203, 1.0
    %v220 = vmin.f32 %v204, 1.0
    %v221 = vmin.f32 %v205, 1.0
    %v222 = vmin.f32 %v206, 1.0
    %v223 = vmin.f32 %v207, 1.0
    %v224 = vmin.f32 %v208, 1.0
    %v225 = vmin.f32 %v209, 1.0
    %v226 = vmin.f32 %v210, 1.0
    %v227 = vmin.f32 %v211, 1.0
    %v228 = vmin.f32 %v212, 1.0
    %v229 = vmin.f32 %v213, 1.0
    %v230 = vmin.f32 %v214, 1.0
    %v231 = vmin.f32 %v215, 1.0
    %v232 = vmin.f32 %v216, 1.0
    %v233 = vmin.f32 %v217, 1.0
    %v234 = vlaneseq
    %v235 = vand.u32 %v234, 127
    %vm236 = vcmp.lt.s32.totalorder %v235, 16
    %v237 = vsel %vm236, %v218, 2.0
    %v238 = vsel %vm236, %v219, 2.0
    %v239 = vsel %vm236, %v220, 2.0
    %v240 = vsel %vm236, %v221, 2.0
    %v241 = vsel %vm236, %v222, 2.0
    %v242 = vsel %vm236, %v223, 2.0
    %v243 = vsel %vm236, %v224, 2.0
    %v244 = vsel %vm236, %v225, 2.0
    %v245 = vsel %vm236, %v226, 2.0
    %v246 = vsel %vm236, %v227, 2.0
    %v247 = vsel %vm236, %v228, 2.0
    %v248 = vsel %vm236, %v229, 2.0
    %v249 = vsel %vm236, %v230, 2.0
    %v250 = vsel %vm236, %v231, 2.0
    %v251 = vsel %vm236, %v232, 2.0
    %v252 = vsel %vm236, %v233, 2.0
    %253 = vmin.xlane.f32.xlu0 %v237
    %v254 = vpop.xlane.xlu0 %253
    %255 = vmin.xlane.f32.xlu0 %v238
    %v256 = vpop.xlane.xlu0 %255
    %257 = vmin.xlane.f32.xlu0 %v239
    %v258 = vpop.xlane.xlu0 %257
    %259 = vmin.xlane.f32.xlu0 %v240
    %v260 = vpop.xlane.xlu0 %259
    %261 = vmin.xlane.f32.xlu0 %v241
    %v262 = vpop.xlane.xlu0 %261
    %263 = vmin.xlane.f32.xlu0 %v242
    %v264 = vpop.xlane.xlu0 %263
    %265 = vmin.xlane.f32.xlu0 %v243
    %v266 = vpop.xlane.xlu0 %265
    %267 = vmin.xlane.f32.xlu0 %v244
    %v268 = vpop.xlane.xlu0 %267
    %269 = vmin.xlane.f32.xlu0 %v245
    %v270 = vpop.xlane.xlu0 %269
    %271 = vmin.xlane.f32.xlu0 %v246
    %v272 = vpop.xlane.xlu0 %271
    %273 = vmin.xlane.f32.xlu0 %v247
    %v274 = vpop.xlane.xlu0 %273
    %275 = vmin.xlane.f32.xlu0 %v248
    %v276 = vpop.xlane.xlu0 %275
    %277 = vmin.xlane.f32.xlu0 %v249
    %v278 = vpop.xlane.xlu0 %277
    %279 = vmin.xlane.f32.xlu0 %v250
    %v280 = vpop.xlane.xlu0 %279
    %281 = vmin.xlane.f32.xlu0 %v251
    %v282 = vpop.xlane.xlu0 %281
    %283 = vmin.xlane.f32.xlu0 %v252
    %v284 = vpop.xlane.xlu0 %283
    %vm285 = vcmp.eq.f32.partialorder %v237, %v254
    %vm286 = vcmp.eq.f32.partialorder %v238, %v256
    %vm287 = vcmp.eq.f32.partialorder %v239, %v258
    %vm288 = vcmp.eq.f32.partialorder %v240, %v260
    %vm289 = vcmp.eq.f32.partialorder %v241, %v262
    %vm290 = vcmp.eq.f32.partialorder %v242, %v264
    %vm291 = vcmp.eq.f32.partialorder %v243, %v266
    %vm292 = vcmp.eq.f32.partialorder %v244, %v268
    %vm293 = vcmp.eq.f32.partialorder %v245, %v270
    %vm294 = vcmp.eq.f32.partialorder %v246, %v272
    %vm295 = vcmp.eq.f32.partialorder %v247, %v274
    %vm296 = vcmp.eq.f32.partialorder %v248, %v276
    %vm297 = vcmp.eq.f32.partialorder %v249, %v278
    %vm298 = vcmp.eq.f32.partialorder %v250, %v280
    %vm299 = vcmp.eq.f32.partialorder %v251, %v282
    %vm300 = vcmp.eq.f32.partialorder %v252, %v284
    %v301 = vsel %vm285, %v235, 128
    %v302 = vsel %vm286, %v235, 128
    %v303 = vsel %vm287, %v235, 128
    %v304 = vsel %vm288, %v235, 128
    %v305 = vsel %vm289, %v235, 128
    %v306 = vsel %vm290, %v235, 128
    %v307 = vsel %vm291, %v235, 128
    %v308 = vsel %vm292, %v235, 128
    %v309 = vsel %vm293, %v235, 128
    %v310 = vsel %vm294, %v235, 128
    %v311 = vsel %vm295, %v235, 128
    %v312 = vsel %vm296, %v235, 128
    %v313 = vsel %vm297, %v235, 128
    %v314 = vsel %vm298, %v235, 128
    %v315 = vsel %vm299, %v235, 128
    %v316 = vsel %vm300, %v235, 128
    %v317 = vand.u32 %v301, 65535
    %v318 = vshra.s32 %v301, 16
    %v319 = vcvt.s32.f32 %v317
    %v320 = vcvt.s32.f32 %v318
    %321 = vmin.xlane.f32.xlu0 %v320
    %v322 = vpop.xlane.xlu0 %321
    %vm323 = vcmp.eq.f32.partialorder %v320, %v322
    %v324 = vsel %vm323, %v319, inf
    %325 = vmin.xlane.f32.xlu0 %v324
    %v326 = vpop.xlane.xlu0 %325
    %v327 = vcvt.f32.s32 %v326
    %v328 = vcvt.f32.s32 %v322
    %v329 = vshll.u32 %v328, 16
    %v330 = vadd.s32 %v329, %v327
    %v331 = vand.u32 %v302, 65535
    %v332 = vshra.s32 %v302, 16
    %v333 = vcvt.s32.f32 %v331
    %v334 = vcvt.s32.f32 %v332
    %335 = vmin.xlane.f32.xlu0 %v334
    %v336 = vpop.xlane.xlu0 %335
    %vm337 = vcmp.eq.f32.partialorder %v334, %v336
    %v338 = vsel %vm337, %v333, inf
    %339 = vmin.xlane.f32.xlu0 %v338
    %v340 = vpop.xlane.xlu0 %339
    %v341 = vcvt.f32.s32 %v340
    %v342 = vcvt.f32.s32 %v336
    %v343 = vshll.u32 %v342, 16
    %v344 = vadd.s32 %v343, %v341
    %v345 = vand.u32 %v303, 65535
    %v346 = vshra.s32 %v303, 16
    %v347 = vcvt.s32.f32 %v345
    %v348 = vcvt.s32.f32 %v346
    %349 = vmin.xlane.f32.xlu0 %v348
    %v350 = vpop.xlane.xlu0 %349
    %vm351 = vcmp.eq.f32.partialorder %v348, %v350
    %v352 = vsel %vm351, %v347, inf
    %353 = vmin.xlane.f32.xlu0 %v352
    %v354 = vpop.xlane.xlu0 %353
    %v355 = vcvt.f32.s32 %v354
    %v356 = vcvt.f32.s32 %v350
    %v357 = vshll.u32 %v356, 16
    %v358 = vadd.s32 %v357, %v355
    %v359 = vand.u32 %v304, 65535
    %v360 = vshra.s32 %v304, 16
    %v361 = vcvt.s32.f32 %v359
    %v362 = vcvt.s32.f32 %v360
    %363 = vmin.xlane.f32.xlu0 %v362
    %v364 = vpop.xlane.xlu0 %363
    %vm365 = vcmp.eq.f32.partialorder %v362, %v364
    %v366 = vsel %vm365, %v361, inf
    %367 = vmin.xlane.f32.xlu0 %v366
    %v368 = vpop.xlane.xlu0 %367
    %v369 = vcvt.f32.s32 %v368
    %v370 = vcvt.f32.s32 %v364
    %v371 = vshll.u32 %v370, 16
    %v372 = vadd.s32 %v371, %v369
    %v373 = vand.u32 %v305, 65535
    %v374 = vshra.s32 %v305, 16
    %v375 = vcvt.s32.f32 %v373
    %v376 = vcvt.s32.f32 %v374
    %377 = vmin.xlane.f32.xlu0 %v376
    %v378 = vpop.xlane.xlu0 %377
    %vm379 = vcmp.eq.f32.partialorder %v376, %v378
    %v380 = vsel %vm379, %v375, inf
    %381 = vmin.xlane.f32.xlu0 %v380
    %v382 = vpop.xlane.xlu0 %381
    %v383 = vcvt.f32.s32 %v382
    %v384 = vcvt.f32.s32 %v378
    %v385 = vshll.u32 %v384, 16
    %v386 = vadd.s32 %v385, %v383
    %v387 = vand.u32 %v306, 65535
    %v388 = vshra.s32 %v306, 16
    %v389 = vcvt.s32.f32 %v387
    %v390 = vcvt.s32.f32 %v388
    %391 = vmin.xlane.f32.xlu0 %v390
    %v392 = vpop.xlane.xlu0 %391
    %vm393 = vcmp.eq.f32.partialorder %v390, %v392
    %v394 = vsel %vm393, %v389, inf
    %395 = vmin.xlane.f32.xlu0 %v394
    %v396 = vpop.xlane.xlu0 %395
    %v397 = vcvt.f32.s32 %v396
    %v398 = vcvt.f32.s32 %v392
    %v399 = vshll.u32 %v398, 16
    %v400 = vadd.s32 %v399, %v397
    %v401 = vand.u32 %v307, 65535
    %v402 = vshra.s32 %v307, 16
    %v403 = vcvt.s32.f32 %v401
    %v404 = vcvt.s32.f32 %v402
    %405 = vmin.xlane.f32.xlu0 %v404
    %v406 = vpop.xlane.xlu0 %405
    %vm407 = vcmp.eq.f32.partialorder %v404, %v406
    %v408 = vsel %vm407, %v403, inf
    %409 = vmin.xlane.f32.xlu0 %v408
    %v410 = vpop.xlane.xlu0 %409
    %v411 = vcvt.f32.s32 %v410
    %v412 = vcvt.f32.s32 %v406
    %v413 = vshll.u32 %v412, 16
    %v414 = vadd.s32 %v413, %v411
    %v415 = vand.u32 %v308, 65535
    %v416 = vshra.s32 %v308, 16
    %v417 = vcvt.s32.f32 %v415
    %v418 = vcvt.s32.f32 %v416
    %419 = vmin.xlane.f32.xlu0 %v418
    %v420 = vpop.xlane.xlu0 %419
    %vm421 = vcmp.eq.f32.partialorder %v418, %v420
    %v422 = vsel %vm421, %v417, inf
    %423 = vmin.xlane.f32.xlu0 %v422
    %v424 = vpop.xlane.xlu0 %423
    %v425 = vcvt.f32.s32 %v424
    %v426 = vcvt.f32.s32 %v420
    %v427 = vshll.u32 %v426, 16
    %v428 = vadd.s32 %v427, %v425
    %v429 = vand.u32 %v309, 65535
    %v430 = vshra.s32 %v309, 16
    %v431 = vcvt.s32.f32 %v429
    %v432 = vcvt.s32.f32 %v430
    %433 = vmin.xlane.f32.xlu0 %v432
    %v434 = vpop.xlane.xlu0 %433
    %vm435 = vcmp.eq.f32.partialorder %v432, %v434
    %v436 = vsel %vm435, %v431, inf
    %437 = vmin.xlane.f32.xlu0 %v436
    %v438 = vpop.xlane.xlu0 %437
    %v439 = vcvt.f32.s32 %v438
    %v440 = vcvt.f32.s32 %v434
    %v441 = vshll.u32 %v440, 16
    %v442 = vadd.s32 %v441, %v439
    %v443 = vand.u32 %v310, 65535
    %v444 = vshra.s32 %v310, 16
    %v445 = vcvt.s32.f32 %v443
    %v446 = vcvt.s32.f32 %v444
    %447 = vmin.xlane.f32.xlu0 %v446
    %v448 = vpop.xlane.xlu0 %447
    %vm449 = vcmp.eq.f32.partialorder %v446, %v448
    %v450 = vsel %vm449, %v445, inf
    %451 = vmin.xlane.f32.xlu0 %v450
    %v452 = vpop.xlane.xlu0 %451
    %v453 = vcvt.f32.s32 %v452
    %v454 = vcvt.f32.s32 %v448
    %v455 = vshll.u32 %v454, 16
    %v456 = vadd.s32 %v455, %v453
    %v457 = vand.u32 %v311, 65535
    %v458 = vshra.s32 %v311, 16
    %v459 = vcvt.s32.f32 %v457
    %v460 = vcvt.s32.f32 %v458
    %461 = vmin.xlane.f32.xlu0 %v460
    %v462 = vpop.xlane.xlu0 %461
    %vm463 = vcmp.eq.f32.partialorder %v460, %v462
    %v464 = vsel %vm463, %v459, inf
    %465 = vmin.xlane.f32.xlu0 %v464
    %v466 = vpop.xlane.xlu0 %465
    %v467 = vcvt.f32.s32 %v466
    %v468 = vcvt.f32.s32 %v462
    %v469 = vshll.u32 %v468, 16
    %v470 = vadd.s32 %v469, %v467
    %v471 = vand.u32 %v312, 65535
    %v472 = vshra.s32 %v312, 16
    %v473 = vcvt.s32.f32 %v471
    %v474 = vcvt.s32.f32 %v472
    %475 = vmin.xlane.f32.xlu0 %v474
    %v476 = vpop.xlane.xlu0 %475
    %vm477 = vcmp.eq.f32.partialorder %v474, %v476
    %v478 = vsel %vm477, %v473, inf
    %479 = vmin.xlane.f32.xlu0 %v478
    %v480 = vpop.xlane.xlu0 %479
    %v481 = vcvt.f32.s32 %v480
    %v482 = vcvt.f32.s32 %v476
    %v483 = vshll.u32 %v482, 16
    %v484 = vadd.s32 %v483, %v481
    %v485 = vand.u32 %v313, 65535
    %v486 = vshra.s32 %v313, 16
    %v487 = vcvt.s32.f32 %v485
    %v488 = vcvt.s32.f32 %v486
    %489 = vmin.xlane.f32.xlu0 %v488
    %v490 = vpop.xlane.xlu0 %489
    %vm491 = vcmp.eq.f32.partialorder %v488, %v490
    %v492 = vsel %vm491, %v487, inf
    %493 = vmin.xlane.f32.xlu0 %v492
    %v494 = vpop.xlane.xlu0 %493
    %v495 = vcvt.f32.s32 %v494
    %v496 = vcvt.f32.s32 %v490
    %v497 = vshll.u32 %v496, 16
    %v498 = vadd.s32 %v497, %v495
    %v499 = vand.u32 %v314, 65535
    %v500 = vshra.s32 %v314, 16
    %v501 = vcvt.s32.f32 %v499
    %v502 = vcvt.s32.f32 %v500
    %503 = vmin.xlane.f32.xlu0 %v502
    %v504 = vpop.xlane.xlu0 %503
    %vm505 = vcmp.eq.f32.partialorder %v502, %v504
    %v506 = vsel %vm505, %v501, inf
    %507 = vmin.xlane.f32.xlu0 %v506
    %v508 = vpop.xlane.xlu0 %507
    %v509 = vcvt.f32.s32 %v508
    %v510 = vcvt.f32.s32 %v504
    %v511 = vshll.u32 %v510, 16
    %v512 = vadd.s32 %v511, %v509
    %v513 = vand.u32 %v315, 65535
    %v514 = vshra.s32 %v315, 16
    %v515 = vcvt.s32.f32 %v513
    %v516 = vcvt.s32.f32 %v514
    %517 = vmin.xlane.f32.xlu0 %v516
    %v518 = vpop.xlane.xlu0 %517
    %vm519 = vcmp.eq.f32.partialorder %v516, %v518
    %v520 = vsel %vm519, %v515, inf
    %521 = vmin.xlane.f32.xlu0 %v520
    %v522 = vpop.xlane.xlu0 %521
    %v523 = vcvt.f32.s32 %v522
    %v524 = vcvt.f32.s32 %v518
    %v525 = vshll.u32 %v524, 16
    %v526 = vadd.s32 %v525, %v523
    %v527 = vand.u32 %v316, 65535
    %v528 = vshra.s32 %v316, 16
    %v529 = vcvt.s32.f32 %v527
    %v530 = vcvt.s32.f32 %v528
    %531 = vmin.xlane.f32.xlu0 %v530
    %v532 = vpop.xlane.xlu0 %531
    %vm533 = vcmp.eq.f32.partialorder %v530, %v532
    %v534 = vsel %vm533, %v529, inf
    %535 = vmin.xlane.f32.xlu0 %v534
    %v536 = vpop.xlane.xlu0 %535
    %v537 = vcvt.f32.s32 %v536
    %v538 = vcvt.f32.s32 %v532
    %v539 = vshll.u32 %v538, 16
    %v540 = vadd.s32 %v539, %v537
    %vm541 = vcmp.eq.s32.totalorder %v235, %v330
    %vm542 = vcmp.eq.s32.totalorder %v235, %v344
    %vm543 = vcmp.eq.s32.totalorder %v235, %v358
    %vm544 = vcmp.eq.s32.totalorder %v235, %v372
    %vm545 = vcmp.eq.s32.totalorder %v235, %v386
    %vm546 = vcmp.eq.s32.totalorder %v235, %v400
    %vm547 = vcmp.eq.s32.totalorder %v235, %v414
    %vm548 = vcmp.eq.s32.totalorder %v235, %v428
    %vm549 = vcmp.eq.s32.totalorder %v235, %v442
    %vm550 = vcmp.eq.s32.totalorder %v235, %v456
    %vm551 = vcmp.eq.s32.totalorder %v235, %v470
    %vm552 = vcmp.eq.s32.totalorder %v235, %v484
    %vm553 = vcmp.eq.s32.totalorder %v235, %v498
    %vm554 = vcmp.eq.s32.totalorder %v235, %v512
    %vm555 = vcmp.eq.s32.totalorder %v235, %v526
    %vm556 = vcmp.eq.s32.totalorder %v235, %v540
    %v557 = vsel %vm541, inf, %v237
    %v558 = vsel %vm542, inf, %v238
    %v559 = vsel %vm543, inf, %v239
    %v560 = vsel %vm544, inf, %v240
    %v561 = vsel %vm545, inf, %v241
    %v562 = vsel %vm546, inf, %v242
    %v563 = vsel %vm547, inf, %v243
    %v564 = vsel %vm548, inf, %v244
    %v565 = vsel %vm549, inf, %v245
    %v566 = vsel %vm550, inf, %v246
    %v567 = vsel %vm551, inf, %v247
    %v568 = vsel %vm552, inf, %v248
    %v569 = vsel %vm553, inf, %v249
    %v570 = vsel %vm554, inf, %v250
    %v571 = vsel %vm555, inf, %v251
    %v572 = vsel %vm556, inf, %v252
    %573 = vmin.xlane.f32.xlu0 %v557
    %v574 = vpop.xlane.xlu0 %573
    %575 = vmin.xlane.f32.xlu0 %v558
    %v576 = vpop.xlane.xlu0 %575
    %577 = vmin.xlane.f32.xlu0 %v559
    %v578 = vpop.xlane.xlu0 %577
    %579 = vmin.xlane.f32.xlu0 %v560
    %v580 = vpop.xlane.xlu0 %579
    %581 = vmin.xlane.f32.xlu0 %v561
    %v582 = vpop.xlane.xlu0 %581
    %583 = vmin.xlane.f32.xlu0 %v562
    %v584 = vpop.xlane.xlu0 %583
    %585 = vmin.xlane.f32.xlu0 %v563
    %v586 = vpop.xlane.xlu0 %585
    %587 = vmin.xlane.f32.xlu0 %v564
    %v588 = vpop.xlane.xlu0 %587
    %589 = vmin.xlane.f32.xlu0 %v565
    %v590 = vpop.xlane.xlu0 %589
    %591 = vmin.xlane.f32.xlu0 %v566
    %v592 = vpop.xlane.xlu0 %591
    %593 = vmin.xlane.f32.xlu0 %v567
    %v594 = vpop.xlane.xlu0 %593
    %595 = vmin.xlane.f32.xlu0 %v568
    %v596 = vpop.xlane.xlu0 %595
    %597 = vmin.xlane.f32.xlu0 %v569
    %v598 = vpop.xlane.xlu0 %597
    %599 = vmin.xlane.f32.xlu0 %v570
    %v600 = vpop.xlane.xlu0 %599
    %601 = vmin.xlane.f32.xlu0 %v571
    %v602 = vpop.xlane.xlu0 %601
    %603 = vmin.xlane.f32.xlu0 %v572
    %v604 = vpop.xlane.xlu0 %603
    %vm605 = vcmp.eq.f32.partialorder %v557, %v574
    %vm606 = vcmp.eq.f32.partialorder %v558, %v576
    %vm607 = vcmp.eq.f32.partialorder %v559, %v578
    %vm608 = vcmp.eq.f32.partialorder %v560, %v580
    %vm609 = vcmp.eq.f32.partialorder %v561, %v582
    %vm610 = vcmp.eq.f32.partialorder %v562, %v584
    %vm611 = vcmp.eq.f32.partialorder %v563, %v586
    %vm612 = vcmp.eq.f32.partialorder %v564, %v588
    %vm613 = vcmp.eq.f32.partialorder %v565, %v590
    %vm614 = vcmp.eq.f32.partialorder %v566, %v592
    %vm615 = vcmp.eq.f32.partialorder %v567, %v594
    %vm616 = vcmp.eq.f32.partialorder %v568, %v596
    %vm617 = vcmp.eq.f32.partialorder %v569, %v598
    %vm618 = vcmp.eq.f32.partialorder %v570, %v600
    %vm619 = vcmp.eq.f32.partialorder %v571, %v602
    %vm620 = vcmp.eq.f32.partialorder %v572, %v604
    %v621 = vsel %vm605, %v235, 128
    %v622 = vsel %vm606, %v235, 128
    %v623 = vsel %vm607, %v235, 128
    %v624 = vsel %vm608, %v235, 128
    %v625 = vsel %vm609, %v235, 128
    %v626 = vsel %vm610, %v235, 128
    %v627 = vsel %vm611, %v235, 128
    %v628 = vsel %vm612, %v235, 128
    %v629 = vsel %vm613, %v235, 128
    %v630 = vsel %vm614, %v235, 128
    %v631 = vsel %vm615, %v235, 128
    %v632 = vsel %vm616, %v235, 128
    %v633 = vsel %vm617, %v235, 128
    %v634 = vsel %vm618, %v235, 128
    %v635 = vsel %vm619, %v235, 128
    %v636 = vsel %vm620, %v235, 128
    %v637 = vand.u32 %v621, 65535
    %v638 = vshra.s32 %v621, 16
    %v639 = vcvt.s32.f32 %v637
    %v640 = vcvt.s32.f32 %v638
    %641 = vmin.xlane.f32.xlu0 %v640
    %v642 = vpop.xlane.xlu0 %641
    %vm643 = vcmp.eq.f32.partialorder %v640, %v642
    %v644 = vsel %vm643, %v639, inf
    %645 = vmin.xlane.f32.xlu0 %v644
    %v646 = vpop.xlane.xlu0 %645
    %v647 = vcvt.f32.s32 %v646
    %v648 = vcvt.f32.s32 %v642
    %v649 = vshll.u32 %v648, 16
    %v650 = vadd.s32 %v649, %v647
    %v651 = vand.u32 %v622, 65535
    %v652 = vshra.s32 %v622, 16
    %v653 = vcvt.s32.f32 %v651
    %v654 = vcvt.s32.f32 %v652
    %655 = vmin.xlane.f32.xlu0 %v654
    %v656 = vpop.xlane.xlu0 %655
    %vm657 = vcmp.eq.f32.partialorder %v654, %v656
    %v658 = vsel %vm657, %v653, inf
    %659 = vmin.xlane.f32.xlu0 %v658
    %v660 = vpop.xlane.xlu0 %659
    %v661 = vcvt.f32.s32 %v660
    %v662 = vcvt.f32.s32 %v656
    %v663 = vshll.u32 %v662, 16
    %v664 = vadd.s32 %v663, %v661
    %v665 = vand.u32 %v623, 65535
    %v666 = vshra.s32 %v623, 16
    %v667 = vcvt.s32.f32 %v665
    %v668 = vcvt.s32.f32 %v666
    %669 = vmin.xlane.f32.xlu0 %v668
    %v670 = vpop.xlane.xlu0 %669
    %vm671 = vcmp.eq.f32.partialorder %v668, %v670
    %v672 = vsel %vm671, %v667, inf
    %673 = vmin.xlane.f32.xlu0 %v672
    %v674 = vpop.xlane.xlu0 %673
    %v675 = vcvt.f32.s32 %v674
    %v676 = vcvt.f32.s32 %v670
    %v677 = vshll.u32 %v676, 16
    %v678 = vadd.s32 %v677, %v675
    %v679 = vand.u32 %v624, 65535
    %v680 = vshra.s32 %v624, 16
    %v681 = vcvt.s32.f32 %v679
    %v682 = vcvt.s32.f32 %v680
    %683 = vmin.xlane.f32.xlu0 %v682
    %v684 = vpop.xlane.xlu0 %683
    %vm685 = vcmp.eq.f32.partialorder %v682, %v684
    %v686 = vsel %vm685, %v681, inf
    %687 = vmin.xlane.f32.xlu0 %v686
    %v688 = vpop.xlane.xlu0 %687
    %v689 = vcvt.f32.s32 %v688
    %v690 = vcvt.f32.s32 %v684
    %v691 = vshll.u32 %v690, 16
    %v692 = vadd.s32 %v691, %v689
    %v693 = vand.u32 %v625, 65535
    %v694 = vshra.s32 %v625, 16
    %v695 = vcvt.s32.f32 %v693
    %v696 = vcvt.s32.f32 %v694
    %697 = vmin.xlane.f32.xlu0 %v696
    %v698 = vpop.xlane.xlu0 %697
    %vm699 = vcmp.eq.f32.partialorder %v696, %v698
    %v700 = vsel %vm699, %v695, inf
    %701 = vmin.xlane.f32.xlu0 %v700
    %v702 = vpop.xlane.xlu0 %701
    %v703 = vcvt.f32.s32 %v702
    %v704 = vcvt.f32.s32 %v698
    %v705 = vshll.u32 %v704, 16
    %v706 = vadd.s32 %v705, %v703
    %v707 = vand.u32 %v626, 65535
    %v708 = vshra.s32 %v626, 16
    %v709 = vcvt.s32.f32 %v707
    %v710 = vcvt.s32.f32 %v708
    %711 = vmin.xlane.f32.xlu0 %v710
    %v712 = vpop.xlane.xlu0 %711
    %vm713 = vcmp.eq.f32.partialorder %v710, %v712
    %v714 = vsel %vm713, %v709, inf
    %715 = vmin.xlane.f32.xlu0 %v714
    %v716 = vpop.xlane.xlu0 %715
    %v717 = vcvt.f32.s32 %v716
    %v718 = vcvt.f32.s32 %v712
    %v719 = vshll.u32 %v718, 16
    %v720 = vadd.s32 %v719, %v717
    %v721 = vand.u32 %v627, 65535
    %v722 = vshra.s32 %v627, 16
    %v723 = vcvt.s32.f32 %v721
    %v724 = vcvt.s32.f32 %v722
    %725 = vmin.xlane.f32.xlu0 %v724
    %v726 = vpop.xlane.xlu0 %725
    %vm727 = vcmp.eq.f32.partialorder %v724, %v726
    %v728 = vsel %vm727, %v723, inf
    %729 = vmin.xlane.f32.xlu0 %v728
    %v730 = vpop.xlane.xlu0 %729
    %v731 = vcvt.f32.s32 %v730
    %v732 = vcvt.f32.s32 %v726
    %v733 = vshll.u32 %v732, 16
    %v734 = vadd.s32 %v733, %v731
    %v735 = vand.u32 %v628, 65535
    %v736 = vshra.s32 %v628, 16
    %v737 = vcvt.s32.f32 %v735
    %v738 = vcvt.s32.f32 %v736
    %739 = vmin.xlane.f32.xlu0 %v738
    %v740 = vpop.xlane.xlu0 %739
    %vm741 = vcmp.eq.f32.partialorder %v738, %v740
    %v742 = vsel %vm741, %v737, inf
    %743 = vmin.xlane.f32.xlu0 %v742
    %v744 = vpop.xlane.xlu0 %743
    %v745 = vcvt.f32.s32 %v744
    %v746 = vcvt.f32.s32 %v740
    %v747 = vshll.u32 %v746, 16
    %v748 = vadd.s32 %v747, %v745
    %v749 = vand.u32 %v629, 65535
    %v750 = vshra.s32 %v629, 16
    %v751 = vcvt.s32.f32 %v749
    %v752 = vcvt.s32.f32 %v750
    %753 = vmin.xlane.f32.xlu0 %v752
    %v754 = vpop.xlane.xlu0 %753
    %vm755 = vcmp.eq.f32.partialorder %v752, %v754
    %v756 = vsel %vm755, %v751, inf
    %757 = vmin.xlane.f32.xlu0 %v756
    %v758 = vpop.xlane.xlu0 %757
    %v759 = vcvt.f32.s32 %v758
    %v760 = vcvt.f32.s32 %v754
    %v761 = vshll.u32 %v760, 16
    %v762 = vadd.s32 %v761, %v759
    %v763 = vand.u32 %v630, 65535
    %v764 = vshra.s32 %v630, 16
    %v765 = vcvt.s32.f32 %v763
    %v766 = vcvt.s32.f32 %v764
    %767 = vmin.xlane.f32.xlu0 %v766
    %v768 = vpop.xlane.xlu0 %767
    %vm769 = vcmp.eq.f32.partialorder %v766, %v768
    %v770 = vsel %vm769, %v765, inf
    %771 = vmin.xlane.f32.xlu0 %v770
    %v772 = vpop.xlane.xlu0 %771
    %v773 = vcvt.f32.s32 %v772
    %v774 = vcvt.f32.s32 %v768
    %v775 = vshll.u32 %v774, 16
    %v776 = vadd.s32 %v775, %v773
    %v777 = vand.u32 %v631, 65535
    %v778 = vshra.s32 %v631, 16
    %v779 = vcvt.s32.f32 %v777
    %v780 = vcvt.s32.f32 %v778
    %781 = vmin.xlane.f32.xlu0 %v780
    %v782 = vpop.xlane.xlu0 %781
    %vm783 = vcmp.eq.f32.partialorder %v780, %v782
    %v784 = vsel %vm783, %v779, inf
    %785 = vmin.xlane.f32.xlu0 %v784
    %v786 = vpop.xlane.xlu0 %785
    %v787 = vcvt.f32.s32 %v786
    %v788 = vcvt.f32.s32 %v782
    %v789 = vshll.u32 %v788, 16
    %v790 = vadd.s32 %v789, %v787
    %v791 = vand.u32 %v632, 65535
    %v792 = vshra.s32 %v632, 16
    %v793 = vcvt.s32.f32 %v791
    %v794 = vcvt.s32.f32 %v792
    %795 = vmin.xlane.f32.xlu0 %v794
    %v796 = vpop.xlane.xlu0 %795
    %vm797 = vcmp.eq.f32.partialorder %v794, %v796
    %v798 = vsel %vm797, %v793, inf
    %799 = vmin.xlane.f32.xlu0 %v798
    %v800 = vpop.xlane.xlu0 %799
    %v801 = vcvt.f32.s32 %v800
    %v802 = vcvt.f32.s32 %v796
    %v803 = vshll.u32 %v802, 16
    %v804 = vadd.s32 %v803, %v801
    %v805 = vand.u32 %v633, 65535
    %v806 = vshra.s32 %v633, 16
    %v807 = vcvt.s32.f32 %v805
    %v808 = vcvt.s32.f32 %v806
    %809 = vmin.xlane.f32.xlu0 %v808
    %v810 = vpop.xlane.xlu0 %809
    %vm811 = vcmp.eq.f32.partialorder %v808, %v810
    %v812 = vsel %vm811, %v807, inf
    %813 = vmin.xlane.f32.xlu0 %v812
    %v814 = vpop.xlane.xlu0 %813
    %v815 = vcvt.f32.s32 %v814
    %v816 = vcvt.f32.s32 %v810
    %v817 = vshll.u32 %v816, 16
    %v818 = vadd.s32 %v817, %v815
    %v819 = vand.u32 %v634, 65535
    %v820 = vshra.s32 %v634, 16
    %v821 = vcvt.s32.f32 %v819
    %v822 = vcvt.s32.f32 %v820
    %823 = vmin.xlane.f32.xlu0 %v822
    %v824 = vpop.xlane.xlu0 %823
    %vm825 = vcmp.eq.f32.partialorder %v822, %v824
    %v826 = vsel %vm825, %v821, inf
    %827 = vmin.xlane.f32.xlu0 %v826
    %v828 = vpop.xlane.xlu0 %827
    %v829 = vcvt.f32.s32 %v828
    %v830 = vcvt.f32.s32 %v824
    %v831 = vshll.u32 %v830, 16
    %v832 = vadd.s32 %v831, %v829
    %v833 = vand.u32 %v635, 65535
    %v834 = vshra.s32 %v635, 16
    %v835 = vcvt.s32.f32 %v833
    %v836 = vcvt.s32.f32 %v834
    %837 = vmin.xlane.f32.xlu0 %v836
    %v838 = vpop.xlane.xlu0 %837
    %vm839 = vcmp.eq.f32.partialorder %v836, %v838
    %v840 = vsel %vm839, %v835, inf
    %841 = vmin.xlane.f32.xlu0 %v840
    %v842 = vpop.xlane.xlu0 %841
    %v843 = vcvt.f32.s32 %v842
    %v844 = vcvt.f32.s32 %v838
    %v845 = vshll.u32 %v844, 16
    %v846 = vadd.s32 %v845, %v843
    %v847 = vand.u32 %v636, 65535
    %v848 = vshra.s32 %v636, 16
    %v849 = vcvt.s32.f32 %v847
    %v850 = vcvt.s32.f32 %v848
    %851 = vmin.xlane.f32.xlu0 %v850
    %v852 = vpop.xlane.xlu0 %851
    %vm853 = vcmp.eq.f32.partialorder %v850, %v852
    %v854 = vsel %vm853, %v849, inf
    %855 = vmin.xlane.f32.xlu0 %v854
    %v856 = vpop.xlane.xlu0 %855
    %v857 = vcvt.f32.s32 %v856
    %v858 = vcvt.f32.s32 %v852
    %v859 = vshll.u32 %v858, 16
    %v860 = vadd.s32 %v859, %v857
    %vm861 = vcmp.eq.s32.totalorder %v235, %v650
    %vm862 = vcmp.eq.s32.totalorder %v235, %v664
    %vm863 = vcmp.eq.s32.totalorder %v235, %v678
    %vm864 = vcmp.eq.s32.totalorder %v235, %v692
    %vm865 = vcmp.eq.s32.totalorder %v235, %v706
    %vm866 = vcmp.eq.s32.totalorder %v235, %v720
    %vm867 = vcmp.eq.s32.totalorder %v235, %v734
    %vm868 = vcmp.eq.s32.totalorder %v235, %v748
    %vm869 = vcmp.eq.s32.totalorder %v235, %v762
    %vm870 = vcmp.eq.s32.totalorder %v235, %v776
    %vm871 = vcmp.eq.s32.totalorder %v235, %v790
    %vm872 = vcmp.eq.s32.totalorder %v235, %v804
    %vm873 = vcmp.eq.s32.totalorder %v235, %v818
    %vm874 = vcmp.eq.s32.totalorder %v235, %v832
    %vm875 = vcmp.eq.s32.totalorder %v235, %v846
    %vm876 = vcmp.eq.s32.totalorder %v235, %v860
    %v877 = vsel %vm861, inf, %v557
    %v878 = vsel %vm862, inf, %v558
    %v879 = vsel %vm863, inf, %v559
    %v880 = vsel %vm864, inf, %v560
    %v881 = vsel %vm865, inf, %v561
    %v882 = vsel %vm866, inf, %v562
    %v883 = vsel %vm867, inf, %v563
    %v884 = vsel %vm868, inf, %v564
    %v885 = vsel %vm869, inf, %v565
    %v886 = vsel %vm870, inf, %v566
    %v887 = vsel %vm871, inf, %v567
    %v888 = vsel %vm872, inf, %v568
    %v889 = vsel %vm873, inf, %v569
    %v890 = vsel %vm874, inf, %v570
    %v891 = vsel %vm875, inf, %v571
    %v892 = vsel %vm876, inf, %v572
    %893 = vmin.xlane.f32.xlu0 %v877
    %v894 = vpop.xlane.xlu0 %893
    %895 = vmin.xlane.f32.xlu0 %v878
    %v896 = vpop.xlane.xlu0 %895
    %897 = vmin.xlane.f32.xlu0 %v879
    %v898 = vpop.xlane.xlu0 %897
    %899 = vmin.xlane.f32.xlu0 %v880
    %v900 = vpop.xlane.xlu0 %899
    %901 = vmin.xlane.f32.xlu0 %v881
    %v902 = vpop.xlane.xlu0 %901
    %903 = vmin.xlane.f32.xlu0 %v882
    %v904 = vpop.xlane.xlu0 %903
    %905 = vmin.xlane.f32.xlu0 %v883
    %v906 = vpop.xlane.xlu0 %905
    %907 = vmin.xlane.f32.xlu0 %v884
    %v908 = vpop.xlane.xlu0 %907
    %909 = vmin.xlane.f32.xlu0 %v885
    %v910 = vpop.xlane.xlu0 %909
    %911 = vmin.xlane.f32.xlu0 %v886
    %v912 = vpop.xlane.xlu0 %911
    %913 = vmin.xlane.f32.xlu0 %v887
    %v914 = vpop.xlane.xlu0 %913
    %915 = vmin.xlane.f32.xlu0 %v888
    %v916 = vpop.xlane.xlu0 %915
    %917 = vmin.xlane.f32.xlu0 %v889
    %v918 = vpop.xlane.xlu0 %917
    %919 = vmin.xlane.f32.xlu0 %v890
    %v920 = vpop.xlane.xlu0 %919
    %921 = vmin.xlane.f32.xlu0 %v891
    %v922 = vpop.xlane.xlu0 %921
    %923 = vmin.xlane.f32.xlu0 %v892
    %v924 = vpop.xlane.xlu0 %923
    %vm925 = vcmp.eq.f32.partialorder %v877, %v894
    %vm926 = vcmp.eq.f32.partialorder %v878, %v896
    %vm927 = vcmp.eq.f32.partialorder %v879, %v898
    %vm928 = vcmp.eq.f32.partialorder %v880, %v900
    %vm929 = vcmp.eq.f32.partialorder %v881, %v902
    %vm930 = vcmp.eq.f32.partialorder %v882, %v904
    %vm931 = vcmp.eq.f32.partialorder %v883, %v906
    %vm932 = vcmp.eq.f32.partialorder %v884, %v908
    %vm933 = vcmp.eq.f32.partialorder %v885, %v910
    %vm934 = vcmp.eq.f32.partialorder %v886, %v912
    %vm935 = vcmp.eq.f32.partialorder %v887, %v914
    %vm936 = vcmp.eq.f32.partialorder %v888, %v916
    %vm937 = vcmp.eq.f32.partialorder %v889, %v918
    %vm938 = vcmp.eq.f32.partialorder %v890, %v920
    %vm939 = vcmp.eq.f32.partialorder %v891, %v922
    %vm940 = vcmp.eq.f32.partialorder %v892, %v924
    %v941 = vsel %vm925, %v235, 128
    %v942 = vsel %vm926, %v235, 128
    %v943 = vsel %vm927, %v235, 128
    %v944 = vsel %vm928, %v235, 128
    %v945 = vsel %vm929, %v235, 128
    %v946 = vsel %vm930, %v235, 128
    %v947 = vsel %vm931, %v235, 128
    %v948 = vsel %vm932, %v235, 128
    %v949 = vsel %vm933, %v235, 128
    %v950 = vsel %vm934, %v235, 128
    %v951 = vsel %vm935, %v235, 128
    %v952 = vsel %vm936, %v235, 128
    %v953 = vsel %vm937, %v235, 128
    %v954 = vsel %vm938, %v235, 128
    %v955 = vsel %vm939, %v235, 128
    %v956 = vsel %vm940, %v235, 128
    %v957 = vand.u32 %v941, 65535
    %v958 = vshra.s32 %v941, 16
    %v959 = vcvt.s32.f32 %v957
    %v960 = vcvt.s32.f32 %v958
    %961 = vmin.xlane.f32.xlu0 %v960
    %v962 = vpop.xlane.xlu0 %961
    %vm963 = vcmp.eq.f32.partialorder %v960, %v962
    %v964 = vsel %vm963, %v959, inf
    %965 = vmin.xlane.f32.xlu0 %v964
    %v966 = vpop.xlane.xlu0 %965
    %v967 = vcvt.f32.s32 %v966
    %v968 = vcvt.f32.s32 %v962
    %v969 = vshll.u32 %v968, 16
    %v970 = vadd.s32 %v969, %v967
    %v971 = vand.u32 %v942, 65535
    %v972 = vshra.s32 %v942, 16
    %v973 = vcvt.s32.f32 %v971
    %v974 = vcvt.s32.f32 %v972
    %975 = vmin.xlane.f32.xlu0 %v974
    %v976 = vpop.xlane.xlu0 %975
    %vm977 = vcmp.eq.f32.partialorder %v974, %v976
    %v978 = vsel %vm977, %v973, inf
    %979 = vmin.xlane.f32.xlu0 %v978
    %v980 = vpop.xlane.xlu0 %979
    %v981 = vcvt.f32.s32 %v980
    %v982 = vcvt.f32.s32 %v976
    %v983 = vshll.u32 %v982, 16
    %v984 = vadd.s32 %v983, %v981
    %v985 = vand.u32 %v943, 65535
    %v986 = vshra.s32 %v943, 16
    %v987 = vcvt.s32.f32 %v985
    %v988 = vcvt.s32.f32 %v986
    %989 = vmin.xlane.f32.xlu0 %v988
    %v990 = vpop.xlane.xlu0 %989
    %vm991 = vcmp.eq.f32.partialorder %v988, %v990
    %v992 = vsel %vm991, %v987, inf
    %993 = vmin.xlane.f32.xlu0 %v992
    %v994 = vpop.xlane.xlu0 %993
    %v995 = vcvt.f32.s32 %v994
    %v996 = vcvt.f32.s32 %v990
    %v997 = vshll.u32 %v996, 16
    %v998 = vadd.s32 %v997, %v995
    %v999 = vand.u32 %v944, 65535
    %v1000 = vshra.s32 %v944, 16
    %v1001 = vcvt.s32.f32 %v999
    %v1002 = vcvt.s32.f32 %v1000
    %1003 = vmin.xlane.f32.xlu0 %v1002
    %v1004 = vpop.xlane.xlu0 %1003
    %vm1005 = vcmp.eq.f32.partialorder %v1002, %v1004
    %v1006 = vsel %vm1005, %v1001, inf
    %1007 = vmin.xlane.f32.xlu0 %v1006
    %v1008 = vpop.xlane.xlu0 %1007
    %v1009 = vcvt.f32.s32 %v1008
    %v1010 = vcvt.f32.s32 %v1004
    %v1011 = vshll.u32 %v1010, 16
    %v1012 = vadd.s32 %v1011, %v1009
    %v1013 = vand.u32 %v945, 65535
    %v1014 = vshra.s32 %v945, 16
    %v1015 = vcvt.s32.f32 %v1013
    %v1016 = vcvt.s32.f32 %v1014
    %1017 = vmin.xlane.f32.xlu0 %v1016
    %v1018 = vpop.xlane.xlu0 %1017
    %vm1019 = vcmp.eq.f32.partialorder %v1016, %v1018
    %v1020 = vsel %vm1019, %v1015, inf
    %1021 = vmin.xlane.f32.xlu0 %v1020
    %v1022 = vpop.xlane.xlu0 %1021
    %v1023 = vcvt.f32.s32 %v1022
    %v1024 = vcvt.f32.s32 %v1018
    %v1025 = vshll.u32 %v1024, 16
    %v1026 = vadd.s32 %v1025, %v1023
    %v1027 = vand.u32 %v946, 65535
    %v1028 = vshra.s32 %v946, 16
    %v1029 = vcvt.s32.f32 %v1027
    %v1030 = vcvt.s32.f32 %v1028
    %1031 = vmin.xlane.f32.xlu0 %v1030
    %v1032 = vpop.xlane.xlu0 %1031
    %vm1033 = vcmp.eq.f32.partialorder %v1030, %v1032
    %v1034 = vsel %vm1033, %v1029, inf
    %1035 = vmin.xlane.f32.xlu0 %v1034
    %v1036 = vpop.xlane.xlu0 %1035
    %v1037 = vcvt.f32.s32 %v1036
    %v1038 = vcvt.f32.s32 %v1032
    %v1039 = vshll.u32 %v1038, 16
    %v1040 = vadd.s32 %v1039, %v1037
    %v1041 = vand.u32 %v947, 65535
    %v1042 = vshra.s32 %v947, 16
    %v1043 = vcvt.s32.f32 %v1041
    %v1044 = vcvt.s32.f32 %v1042
    %1045 = vmin.xlane.f32.xlu0 %v1044
    %v1046 = vpop.xlane.xlu0 %1045
    %vm1047 = vcmp.eq.f32.partialorder %v1044, %v1046
    %v1048 = vsel %vm1047, %v1043, inf
    %1049 = vmin.xlane.f32.xlu0 %v1048
    %v1050 = vpop.xlane.xlu0 %1049
    %v1051 = vcvt.f32.s32 %v1050
    %v1052 = vcvt.f32.s32 %v1046
    %v1053 = vshll.u32 %v1052, 16
    %v1054 = vadd.s32 %v1053, %v1051
    %v1055 = vand.u32 %v948, 65535
    %v1056 = vshra.s32 %v948, 16
    %v1057 = vcvt.s32.f32 %v1055
    %v1058 = vcvt.s32.f32 %v1056
    %1059 = vmin.xlane.f32.xlu0 %v1058
    %v1060 = vpop.xlane.xlu0 %1059
    %vm1061 = vcmp.eq.f32.partialorder %v1058, %v1060
    %v1062 = vsel %vm1061, %v1057, inf
    %1063 = vmin.xlane.f32.xlu0 %v1062
    %v1064 = vpop.xlane.xlu0 %1063
    %v1065 = vcvt.f32.s32 %v1064
    %v1066 = vcvt.f32.s32 %v1060
    %v1067 = vshll.u32 %v1066, 16
    %v1068 = vadd.s32 %v1067, %v1065
    %v1069 = vand.u32 %v949, 65535
    %v1070 = vshra.s32 %v949, 16
    %v1071 = vcvt.s32.f32 %v1069
    %v1072 = vcvt.s32.f32 %v1070
    %1073 = vmin.xlane.f32.xlu0 %v1072
    %v1074 = vpop.xlane.xlu0 %1073
    %vm1075 = vcmp.eq.f32.partialorder %v1072, %v1074
    %v1076 = vsel %vm1075, %v1071, inf
    %1077 = vmin.xlane.f32.xlu0 %v1076
    %v1078 = vpop.xlane.xlu0 %1077
    %v1079 = vcvt.f32.s32 %v1078
    %v1080 = vcvt.f32.s32 %v1074
    %v1081 = vshll.u32 %v1080, 16
    %v1082 = vadd.s32 %v1081, %v1079
    %v1083 = vand.u32 %v950, 65535
    %v1084 = vshra.s32 %v950, 16
    %v1085 = vcvt.s32.f32 %v1083
    %v1086 = vcvt.s32.f32 %v1084
    %1087 = vmin.xlane.f32.xlu0 %v1086
    %v1088 = vpop.xlane.xlu0 %1087
    %vm1089 = vcmp.eq.f32.partialorder %v1086, %v1088
    %v1090 = vsel %vm1089, %v1085, inf
    %1091 = vmin.xlane.f32.xlu0 %v1090
    %v1092 = vpop.xlane.xlu0 %1091
    %v1093 = vcvt.f32.s32 %v1092
    %v1094 = vcvt.f32.s32 %v1088
    %v1095 = vshll.u32 %v1094, 16
    %v1096 = vadd.s32 %v1095, %v1093
    %v1097 = vand.u32 %v951, 65535
    %v1098 = vshra.s32 %v951, 16
    %v1099 = vcvt.s32.f32 %v1097
    %v1100 = vcvt.s32.f32 %v1098
    %1101 = vmin.xlane.f32.xlu0 %v1100
    %v1102 = vpop.xlane.xlu0 %1101
    %vm1103 = vcmp.eq.f32.partialorder %v1100, %v1102
    %v1104 = vsel %vm1103, %v1099, inf
    %1105 = vmin.xlane.f32.xlu0 %v1104
    %v1106 = vpop.xlane.xlu0 %1105
    %v1107 = vcvt.f32.s32 %v1106
    %v1108 = vcvt.f32.s32 %v1102
    %v1109 = vshll.u32 %v1108, 16
    %v1110 = vadd.s32 %v1109, %v1107
    %v1111 = vand.u32 %v952, 65535
    %v1112 = vshra.s32 %v952, 16
    %v1113 = vcvt.s32.f32 %v1111
    %v1114 = vcvt.s32.f32 %v1112
    %1115 = vmin.xlane.f32.xlu0 %v1114
    %v1116 = vpop.xlane.xlu0 %1115
    %vm1117 = vcmp.eq.f32.partialorder %v1114, %v1116
    %v1118 = vsel %vm1117, %v1113, inf
    %1119 = vmin.xlane.f32.xlu0 %v1118
    %v1120 = vpop.xlane.xlu0 %1119
    %v1121 = vcvt.f32.s32 %v1120
    %v1122 = vcvt.f32.s32 %v1116
    %v1123 = vshll.u32 %v1122, 16
    %v1124 = vadd.s32 %v1123, %v1121
    %v1125 = vand.u32 %v953, 65535
    %v1126 = vshra.s32 %v953, 16
    %v1127 = vcvt.s32.f32 %v1125
    %v1128 = vcvt.s32.f32 %v1126
    %1129 = vmin.xlane.f32.xlu0 %v1128
    %v1130 = vpop.xlane.xlu0 %1129
    %vm1131 = vcmp.eq.f32.partialorder %v1128, %v1130
    %v1132 = vsel %vm1131, %v1127, inf
    %1133 = vmin.xlane.f32.xlu0 %v1132
    %v1134 = vpop.xlane.xlu0 %1133
    %v1135 = vcvt.f32.s32 %v1134
    %v1136 = vcvt.f32.s32 %v1130
    %v1137 = vshll.u32 %v1136, 16
    %v1138 = vadd.s32 %v1137, %v1135
    %v1139 = vand.u32 %v954, 65535
    %v1140 = vshra.s32 %v954, 16
    %v1141 = vcvt.s32.f32 %v1139
    %v1142 = vcvt.s32.f32 %v1140
    %1143 = vmin.xlane.f32.xlu0 %v1142
    %v1144 = vpop.xlane.xlu0 %1143
    %vm1145 = vcmp.eq.f32.partialorder %v1142, %v1144
    %v1146 = vsel %vm1145, %v1141, inf
    %1147 = vmin.xlane.f32.xlu0 %v1146
    %v1148 = vpop.xlane.xlu0 %1147
    %v1149 = vcvt.f32.s32 %v1148
    %v1150 = vcvt.f32.s32 %v1144
    %v1151 = vshll.u32 %v1150, 16
    %v1152 = vadd.s32 %v1151, %v1149
    %v1153 = vand.u32 %v955, 65535
    %v1154 = vshra.s32 %v955, 16
    %v1155 = vcvt.s32.f32 %v1153
    %v1156 = vcvt.s32.f32 %v1154
    %1157 = vmin.xlane.f32.xlu0 %v1156
    %v1158 = vpop.xlane.xlu0 %1157
    %vm1159 = vcmp.eq.f32.partialorder %v1156, %v1158
    %v1160 = vsel %vm1159, %v1155, inf
    %1161 = vmin.xlane.f32.xlu0 %v1160
    %v1162 = vpop.xlane.xlu0 %1161
    %v1163 = vcvt.f32.s32 %v1162
    %v1164 = vcvt.f32.s32 %v1158
    %v1165 = vshll.u32 %v1164, 16
    %v1166 = vadd.s32 %v1165, %v1163
    %v1167 = vand.u32 %v956, 65535
    %v1168 = vshra.s32 %v956, 16
    %v1169 = vcvt.s32.f32 %v1167
    %v1170 = vcvt.s32.f32 %v1168
    %1171 = vmin.xlane.f32.xlu0 %v1170
    %v1172 = vpop.xlane.xlu0 %1171
    %vm1173 = vcmp.eq.f32.partialorder %v1170, %v1172
    %v1174 = vsel %vm1173, %v1169, inf
    %1175 = vmin.xlane.f32.xlu0 %v1174
    %v1176 = vpop.xlane.xlu0 %1175
    %v1177 = vcvt.f32.s32 %v1176
    %v1178 = vcvt.f32.s32 %v1172
    %v1179 = vshll.u32 %v1178, 16
    %v1180 = vadd.s32 %v1179, %v1177
    %vm1181 = vcmp.eq.s32.totalorder %v235, %v970
    %vm1182 = vcmp.eq.s32.totalorder %v235, %v984
    %vm1183 = vcmp.eq.s32.totalorder %v235, %v998
    %vm1184 = vcmp.eq.s32.totalorder %v235, %v1012
    %vm1185 = vcmp.eq.s32.totalorder %v235, %v1026
    %vm1186 = vcmp.eq.s32.totalorder %v235, %v1040
    %vm1187 = vcmp.eq.s32.totalorder %v235, %v1054
    %vm1188 = vcmp.eq.s32.totalorder %v235, %v1068
    %vm1189 = vcmp.eq.s32.totalorder %v235, %v1082
    %vm1190 = vcmp.eq.s32.totalorder %v235, %v1096
    %vm1191 = vcmp.eq.s32.totalorder %v235, %v1110
    %vm1192 = vcmp.eq.s32.totalorder %v235, %v1124
    %vm1193 = vcmp.eq.s32.totalorder %v235, %v1138
    %vm1194 = vcmp.eq.s32.totalorder %v235, %v1152
    %vm1195 = vcmp.eq.s32.totalorder %v235, %v1166
    %vm1196 = vcmp.eq.s32.totalorder %v235, %v1180
    %v1197 = vsel %vm1181, inf, %v877
    %v1198 = vsel %vm1182, inf, %v878
    %v1199 = vsel %vm1183, inf, %v879
    %v1200 = vsel %vm1184, inf, %v880
    %v1201 = vsel %vm1185, inf, %v881
    %v1202 = vsel %vm1186, inf, %v882
    %v1203 = vsel %vm1187, inf, %v883
    %v1204 = vsel %vm1188, inf, %v884
    %v1205 = vsel %vm1189, inf, %v885
    %v1206 = vsel %vm1190, inf, %v886
    %v1207 = vsel %vm1191, inf, %v887
    %v1208 = vsel %vm1192, inf, %v888
    %v1209 = vsel %vm1193, inf, %v889
    %v1210 = vsel %vm1194, inf, %v890
    %v1211 = vsel %vm1195, inf, %v891
    %v1212 = vsel %vm1196, inf, %v892
    %1213 = vmin.xlane.f32.xlu0 %v1197
    %v1214 = vpop.xlane.xlu0 %1213
    %1215 = vmin.xlane.f32.xlu0 %v1198
    %v1216 = vpop.xlane.xlu0 %1215
    %1217 = vmin.xlane.f32.xlu0 %v1199
    %v1218 = vpop.xlane.xlu0 %1217
    %1219 = vmin.xlane.f32.xlu0 %v1200
    %v1220 = vpop.xlane.xlu0 %1219
    %1221 = vmin.xlane.f32.xlu0 %v1201
    %v1222 = vpop.xlane.xlu0 %1221
    %1223 = vmin.xlane.f32.xlu0 %v1202
    %v1224 = vpop.xlane.xlu0 %1223
    %1225 = vmin.xlane.f32.xlu0 %v1203
    %v1226 = vpop.xlane.xlu0 %1225
    %1227 = vmin.xlane.f32.xlu0 %v1204
    %v1228 = vpop.xlane.xlu0 %1227
    %1229 = vmin.xlane.f32.xlu0 %v1205
    %v1230 = vpop.xlane.xlu0 %1229
    %1231 = vmin.xlane.f32.xlu0 %v1206
    %v1232 = vpop.xlane.xlu0 %1231
    %1233 = vmin.xlane.f32.xlu0 %v1207
    %v1234 = vpop.xlane.xlu0 %1233
    %1235 = vmin.xlane.f32.xlu0 %v1208
    %v1236 = vpop.xlane.xlu0 %1235
    %1237 = vmin.xlane.f32.xlu0 %v1209
    %v1238 = vpop.xlane.xlu0 %1237
    %1239 = vmin.xlane.f32.xlu0 %v1210
    %v1240 = vpop.xlane.xlu0 %1239
    %1241 = vmin.xlane.f32.xlu0 %v1211
    %v1242 = vpop.xlane.xlu0 %1241
    %1243 = vmin.xlane.f32.xlu0 %v1212
    %v1244 = vpop.xlane.xlu0 %1243
    %vm1245 = vcmp.eq.f32.partialorder %v1197, %v1214
    %vm1246 = vcmp.eq.f32.partialorder %v1198, %v1216
    %vm1247 = vcmp.eq.f32.partialorder %v1199, %v1218
    %vm1248 = vcmp.eq.f32.partialorder %v1200, %v1220
    %vm1249 = vcmp.eq.f32.partialorder %v1201, %v1222
    %vm1250 = vcmp.eq.f32.partialorder %v1202, %v1224
    %vm1251 = vcmp.eq.f32.partialorder %v1203, %v1226
    %vm1252 = vcmp.eq.f32.partialorder %v1204, %v1228
    %vm1253 = vcmp.eq.f32.partialorder %v1205, %v1230
    %vm1254 = vcmp.eq.f32.partialorder %v1206, %v1232
    %vm1255 = vcmp.eq.f32.partialorder %v1207, %v1234
    %vm1256 = vcmp.eq.f32.partialorder %v1208, %v1236
    %vm1257 = vcmp.eq.f32.partialorder %v1209, %v1238
    %vm1258 = vcmp.eq.f32.partialorder %v1210, %v1240
    %vm1259 = vcmp.eq.f32.partialorder %v1211, %v1242
    %vm1260 = vcmp.eq.f32.partialorder %v1212, %v1244
    %v1261 = vsel %vm1245, %v235, 128
    %v1262 = vsel %vm1246, %v235, 128
    %v1263 = vsel %vm1247, %v235, 128
    %v1264 = vsel %vm1248, %v235, 128
    %v1265 = vsel %vm1249, %v235, 128
    %v1266 = vsel %vm1250, %v235, 128
    %v1267 = vsel %vm1251, %v235, 128
    %v1268 = vsel %vm1252, %v235, 128
    %v1269 = vsel %vm1253, %v235, 128
    %v1270 = vsel %vm1254, %v235, 128
    %v1271 = vsel %vm1255, %v235, 128
    %v1272 = vsel %vm1256, %v235, 128
    %v1273 = vsel %vm1257, %v235, 128
    %v1274 = vsel %vm1258, %v235, 128
    %v1275 = vsel %vm1259, %v235, 128
    %v1276 = vsel %vm1260, %v235, 128
    %v1277 = vand.u32 %v1261, 65535
    %v1278 = vshra.s32 %v1261, 16
    %v1279 = vcvt.s32.f32 %v1277
    %v1280 = vcvt.s32.f32 %v1278
    %1281 = vmin.xlane.f32.xlu0 %v1280
    %v1282 = vpop.xlane.xlu0 %1281
    %vm1283 = vcmp.eq.f32.partialorder %v1280, %v1282
    %v1284 = vsel %vm1283, %v1279, inf
    %1285 = vmin.xlane.f32.xlu0 %v1284
    %v1286 = vpop.xlane.xlu0 %1285
    %v1287 = vcvt.f32.s32 %v1286
    %v1288 = vcvt.f32.s32 %v1282
    %v1289 = vshll.u32 %v1288, 16
    %v1290 = vadd.s32 %v1289, %v1287
    %v1291 = vand.u32 %v1262, 65535
    %v1292 = vshra.s32 %v1262, 16
    %v1293 = vcvt.s32.f32 %v1291
    %v1294 = vcvt.s32.f32 %v1292
    %1295 = vmin.xlane.f32.xlu0 %v1294
    %v1296 = vpop.xlane.xlu0 %1295
    %vm1297 = vcmp.eq.f32.partialorder %v1294, %v1296
    %v1298 = vsel %vm1297, %v1293, inf
    %1299 = vmin.xlane.f32.xlu0 %v1298
    %v1300 = vpop.xlane.xlu0 %1299
    %v1301 = vcvt.f32.s32 %v1300
    %v1302 = vcvt.f32.s32 %v1296
    %v1303 = vshll.u32 %v1302, 16
    %v1304 = vadd.s32 %v1303, %v1301
    %v1305 = vand.u32 %v1263, 65535
    %v1306 = vshra.s32 %v1263, 16
    %v1307 = vcvt.s32.f32 %v1305
    %v1308 = vcvt.s32.f32 %v1306
    %1309 = vmin.xlane.f32.xlu0 %v1308
    %v1310 = vpop.xlane.xlu0 %1309
    %vm1311 = vcmp.eq.f32.partialorder %v1308, %v1310
    %v1312 = vsel %vm1311, %v1307, inf
    %1313 = vmin.xlane.f32.xlu0 %v1312
    %v1314 = vpop.xlane.xlu0 %1313
    %v1315 = vcvt.f32.s32 %v1314
    %v1316 = vcvt.f32.s32 %v1310
    %v1317 = vshll.u32 %v1316, 16
    %v1318 = vadd.s32 %v1317, %v1315
    %v1319 = vand.u32 %v1264, 65535
    %v1320 = vshra.s32 %v1264, 16
    %v1321 = vcvt.s32.f32 %v1319
    %v1322 = vcvt.s32.f32 %v1320
    %1323 = vmin.xlane.f32.xlu0 %v1322
    %v1324 = vpop.xlane.xlu0 %1323
    %vm1325 = vcmp.eq.f32.partialorder %v1322, %v1324
    %v1326 = vsel %vm1325, %v1321, inf
    %1327 = vmin.xlane.f32.xlu0 %v1326
    %v1328 = vpop.xlane.xlu0 %1327
    %v1329 = vcvt.f32.s32 %v1328
    %v1330 = vcvt.f32.s32 %v1324
    %v1331 = vshll.u32 %v1330, 16
    %v1332 = vadd.s32 %v1331, %v1329
    %v1333 = vand.u32 %v1265, 65535
    %v1334 = vshra.s32 %v1265, 16
    %v1335 = vcvt.s32.f32 %v1333
    %v1336 = vcvt.s32.f32 %v1334
    %1337 = vmin.xlane.f32.xlu0 %v1336
    %v1338 = vpop.xlane.xlu0 %1337
    %vm1339 = vcmp.eq.f32.partialorder %v1336, %v1338
    %v1340 = vsel %vm1339, %v1335, inf
    %1341 = vmin.xlane.f32.xlu0 %v1340
    %v1342 = vpop.xlane.xlu0 %1341
    %v1343 = vcvt.f32.s32 %v1342
    %v1344 = vcvt.f32.s32 %v1338
    %v1345 = vshll.u32 %v1344, 16
    %v1346 = vadd.s32 %v1345, %v1343
    %v1347 = vand.u32 %v1266, 65535
    %v1348 = vshra.s32 %v1266, 16
    %v1349 = vcvt.s32.f32 %v1347
    %v1350 = vcvt.s32.f32 %v1348
    %1351 = vmin.xlane.f32.xlu0 %v1350
    %v1352 = vpop.xlane.xlu0 %1351
    %vm1353 = vcmp.eq.f32.partialorder %v1350, %v1352
    %v1354 = vsel %vm1353, %v1349, inf
    %1355 = vmin.xlane.f32.xlu0 %v1354
    %v1356 = vpop.xlane.xlu0 %1355
    %v1357 = vcvt.f32.s32 %v1356
    %v1358 = vcvt.f32.s32 %v1352
    %v1359 = vshll.u32 %v1358, 16
    %v1360 = vadd.s32 %v1359, %v1357
    %v1361 = vand.u32 %v1267, 65535
    %v1362 = vshra.s32 %v1267, 16
    %v1363 = vcvt.s32.f32 %v1361
    %v1364 = vcvt.s32.f32 %v1362
    %1365 = vmin.xlane.f32.xlu0 %v1364
    %v1366 = vpop.xlane.xlu0 %1365
    %vm1367 = vcmp.eq.f32.partialorder %v1364, %v1366
    %v1368 = vsel %vm1367, %v1363, inf
    %1369 = vmin.xlane.f32.xlu0 %v1368
    %v1370 = vpop.xlane.xlu0 %1369
    %v1371 = vcvt.f32.s32 %v1370
    %v1372 = vcvt.f32.s32 %v1366
    %v1373 = vshll.u32 %v1372, 16
    %v1374 = vadd.s32 %v1373, %v1371
    %v1375 = vand.u32 %v1268, 65535
    %v1376 = vshra.s32 %v1268, 16
    %v1377 = vcvt.s32.f32 %v1375
    %v1378 = vcvt.s32.f32 %v1376
    %1379 = vmin.xlane.f32.xlu0 %v1378
    %v1380 = vpop.xlane.xlu0 %1379
    %vm1381 = vcmp.eq.f32.partialorder %v1378, %v1380
    %v1382 = vsel %vm1381, %v1377, inf
    %1383 = vmin.xlane.f32.xlu0 %v1382
    %v1384 = vpop.xlane.xlu0 %1383
    %v1385 = vcvt.f32.s32 %v1384
    %v1386 = vcvt.f32.s32 %v1380
    %v1387 = vshll.u32 %v1386, 16
    %v1388 = vadd.s32 %v1387, %v1385
    %v1389 = vand.u32 %v1269, 65535
    %v1390 = vshra.s32 %v1269, 16
    %v1391 = vcvt.s32.f32 %v1389
    %v1392 = vcvt.s32.f32 %v1390
    %1393 = vmin.xlane.f32.xlu0 %v1392
    %v1394 = vpop.xlane.xlu0 %1393
    %vm1395 = vcmp.eq.f32.partialorder %v1392, %v1394
    %v1396 = vsel %vm1395, %v1391, inf
    %1397 = vmin.xlane.f32.xlu0 %v1396
    %v1398 = vpop.xlane.xlu0 %1397
    %v1399 = vcvt.f32.s32 %v1398
    %v1400 = vcvt.f32.s32 %v1394
    %v1401 = vshll.u32 %v1400, 16
    %v1402 = vadd.s32 %v1401, %v1399
    %v1403 = vand.u32 %v1270, 65535
    %v1404 = vshra.s32 %v1270, 16
    %v1405 = vcvt.s32.f32 %v1403
    %v1406 = vcvt.s32.f32 %v1404
    %1407 = vmin.xlane.f32.xlu0 %v1406
    %v1408 = vpop.xlane.xlu0 %1407
    %vm1409 = vcmp.eq.f32.partialorder %v1406, %v1408
    %v1410 = vsel %vm1409, %v1405, inf
    %1411 = vmin.xlane.f32.xlu0 %v1410
    %v1412 = vpop.xlane.xlu0 %1411
    %v1413 = vcvt.f32.s32 %v1412
    %v1414 = vcvt.f32.s32 %v1408
    %v1415 = vshll.u32 %v1414, 16
    %v1416 = vadd.s32 %v1415, %v1413
    %v1417 = vand.u32 %v1271, 65535
    %v1418 = vshra.s32 %v1271, 16
    %v1419 = vcvt.s32.f32 %v1417
    %v1420 = vcvt.s32.f32 %v1418
    %1421 = vmin.xlane.f32.xlu0 %v1420
    %v1422 = vpop.xlane.xlu0 %1421
    %vm1423 = vcmp.eq.f32.partialorder %v1420, %v1422
    %v1424 = vsel %vm1423, %v1419, inf
    %1425 = vmin.xlane.f32.xlu0 %v1424
    %v1426 = vpop.xlane.xlu0 %1425
    %v1427 = vcvt.f32.s32 %v1426
    %v1428 = vcvt.f32.s32 %v1422
    %v1429 = vshll.u32 %v1428, 16
    %v1430 = vadd.s32 %v1429, %v1427
    %v1431 = vand.u32 %v1272, 65535
    %v1432 = vshra.s32 %v1272, 16
    %v1433 = vcvt.s32.f32 %v1431
    %v1434 = vcvt.s32.f32 %v1432
    %1435 = vmin.xlane.f32.xlu0 %v1434
    %v1436 = vpop.xlane.xlu0 %1435
    %vm1437 = vcmp.eq.f32.partialorder %v1434, %v1436
    %v1438 = vsel %vm1437, %v1433, inf
    %1439 = vmin.xlane.f32.xlu0 %v1438
    %v1440 = vpop.xlane.xlu0 %1439
    %v1441 = vcvt.f32.s32 %v1440
    %v1442 = vcvt.f32.s32 %v1436
    %v1443 = vshll.u32 %v1442, 16
    %v1444 = vadd.s32 %v1443, %v1441
    %v1445 = vand.u32 %v1273, 65535
    %v1446 = vshra.s32 %v1273, 16
    %v1447 = vcvt.s32.f32 %v1445
    %v1448 = vcvt.s32.f32 %v1446
    %1449 = vmin.xlane.f32.xlu0 %v1448
    %v1450 = vpop.xlane.xlu0 %1449
    %vm1451 = vcmp.eq.f32.partialorder %v1448, %v1450
    %v1452 = vsel %vm1451, %v1447, inf
    %1453 = vmin.xlane.f32.xlu0 %v1452
    %v1454 = vpop.xlane.xlu0 %1453
    %v1455 = vcvt.f32.s32 %v1454
    %v1456 = vcvt.f32.s32 %v1450
    %v1457 = vshll.u32 %v1456, 16
    %v1458 = vadd.s32 %v1457, %v1455
    %v1459 = vand.u32 %v1274, 65535
    %v1460 = vshra.s32 %v1274, 16
    %v1461 = vcvt.s32.f32 %v1459
    %v1462 = vcvt.s32.f32 %v1460
    %1463 = vmin.xlane.f32.xlu0 %v1462
    %v1464 = vpop.xlane.xlu0 %1463
    %vm1465 = vcmp.eq.f32.partialorder %v1462, %v1464
    %v1466 = vsel %vm1465, %v1461, inf
    %1467 = vmin.xlane.f32.xlu0 %v1466
    %v1468 = vpop.xlane.xlu0 %1467
    %v1469 = vcvt.f32.s32 %v1468
    %v1470 = vcvt.f32.s32 %v1464
    %v1471 = vshll.u32 %v1470, 16
    %v1472 = vadd.s32 %v1471, %v1469
    %v1473 = vand.u32 %v1275, 65535
    %v1474 = vshra.s32 %v1275, 16
    %v1475 = vcvt.s32.f32 %v1473
    %v1476 = vcvt.s32.f32 %v1474
    %1477 = vmin.xlane.f32.xlu0 %v1476
    %v1478 = vpop.xlane.xlu0 %1477
    %vm1479 = vcmp.eq.f32.partialorder %v1476, %v1478
    %v1480 = vsel %vm1479, %v1475, inf
    %1481 = vmin.xlane.f32.xlu0 %v1480
    %v1482 = vpop.xlane.xlu0 %1481
    %v1483 = vcvt.f32.s32 %v1482
    %v1484 = vcvt.f32.s32 %v1478
    %v1485 = vshll.u32 %v1484, 16
    %v1486 = vadd.s32 %v1485, %v1483
    %v1487 = vand.u32 %v1276, 65535
    %v1488 = vshra.s32 %v1276, 16
    %v1489 = vcvt.s32.f32 %v1487
    %v1490 = vcvt.s32.f32 %v1488
    %1491 = vmin.xlane.f32.xlu0 %v1490
    %v1492 = vpop.xlane.xlu0 %1491
    %vm1493 = vcmp.eq.f32.partialorder %v1490, %v1492
    %v1494 = vsel %vm1493, %v1489, inf
    %1495 = vmin.xlane.f32.xlu0 %v1494
    %v1496 = vpop.xlane.xlu0 %1495
    %v1497 = vcvt.f32.s32 %v1496
    %v1498 = vcvt.f32.s32 %v1492
    %v1499 = vshll.u32 %v1498, 16
    %v1500 = vadd.s32 %v1499, %v1497
    %vm1501 = vcmp.eq.s32.totalorder %v235, %v1290
    %vm1502 = vcmp.eq.s32.totalorder %v235, %v1304
    %vm1503 = vcmp.eq.s32.totalorder %v235, %v1318
    %vm1504 = vcmp.eq.s32.totalorder %v235, %v1332
    %vm1505 = vcmp.eq.s32.totalorder %v235, %v1346
    %vm1506 = vcmp.eq.s32.totalorder %v235, %v1360
    %vm1507 = vcmp.eq.s32.totalorder %v235, %v1374
    %vm1508 = vcmp.eq.s32.totalorder %v235, %v1388
    %vm1509 = vcmp.eq.s32.totalorder %v235, %v1402
    %vm1510 = vcmp.eq.s32.totalorder %v235, %v1416
    %vm1511 = vcmp.eq.s32.totalorder %v235, %v1430
    %vm1512 = vcmp.eq.s32.totalorder %v235, %v1444
    %vm1513 = vcmp.eq.s32.totalorder %v235, %v1458
    %vm1514 = vcmp.eq.s32.totalorder %v235, %v1472
    %vm1515 = vcmp.eq.s32.totalorder %v235, %v1486
    %vm1516 = vcmp.eq.s32.totalorder %v235, %v1500
    %v1517 = vsel %vm1501, inf, %v1197
    %v1518 = vsel %vm1502, inf, %v1198
    %v1519 = vsel %vm1503, inf, %v1199
    %v1520 = vsel %vm1504, inf, %v1200
    %v1521 = vsel %vm1505, inf, %v1201
    %v1522 = vsel %vm1506, inf, %v1202
    %v1523 = vsel %vm1507, inf, %v1203
    %v1524 = vsel %vm1508, inf, %v1204
    %v1525 = vsel %vm1509, inf, %v1205
    %v1526 = vsel %vm1510, inf, %v1206
    %v1527 = vsel %vm1511, inf, %v1207
    %v1528 = vsel %vm1512, inf, %v1208
    %v1529 = vsel %vm1513, inf, %v1209
    %v1530 = vsel %vm1514, inf, %v1210
    %v1531 = vsel %vm1515, inf, %v1211
    %v1532 = vsel %vm1516, inf, %v1212
    %1533 = vmin.xlane.f32.xlu0 %v1517
    %v1534 = vpop.xlane.xlu0 %1533
    %1535 = vmin.xlane.f32.xlu0 %v1518
    %v1536 = vpop.xlane.xlu0 %1535
    %1537 = vmin.xlane.f32.xlu0 %v1519
    %v1538 = vpop.xlane.xlu0 %1537
    %1539 = vmin.xlane.f32.xlu0 %v1520
    %v1540 = vpop.xlane.xlu0 %1539
    %1541 = vmin.xlane.f32.xlu0 %v1521
    %v1542 = vpop.xlane.xlu0 %1541
    %1543 = vmin.xlane.f32.xlu0 %v1522
    %v1544 = vpop.xlane.xlu0 %1543
    %1545 = vmin.xlane.f32.xlu0 %v1523
    %v1546 = vpop.xlane.xlu0 %1545
    %1547 = vmin.xlane.f32.xlu0 %v1524
    %v1548 = vpop.xlane.xlu0 %1547
    %1549 = vmin.xlane.f32.xlu0 %v1525
    %v1550 = vpop.xlane.xlu0 %1549
    %1551 = vmin.xlane.f32.xlu0 %v1526
    %v1552 = vpop.xlane.xlu0 %1551
    %1553 = vmin.xlane.f32.xlu0 %v1527
    %v1554 = vpop.xlane.xlu0 %1553
    %1555 = vmin.xlane.f32.xlu0 %v1528
    %v1556 = vpop.xlane.xlu0 %1555
    %1557 = vmin.xlane.f32.xlu0 %v1529
    %v1558 = vpop.xlane.xlu0 %1557
    %1559 = vmin.xlane.f32.xlu0 %v1530
    %v1560 = vpop.xlane.xlu0 %1559
    %1561 = vmin.xlane.f32.xlu0 %v1531
    %v1562 = vpop.xlane.xlu0 %1561
    %1563 = vmin.xlane.f32.xlu0 %v1532
    %v1564 = vpop.xlane.xlu0 %1563
    %vm1565 = vcmp.eq.f32.partialorder %v1517, %v1534
    %vm1566 = vcmp.eq.f32.partialorder %v1518, %v1536
    %vm1567 = vcmp.eq.f32.partialorder %v1519, %v1538
    %vm1568 = vcmp.eq.f32.partialorder %v1520, %v1540
    %vm1569 = vcmp.eq.f32.partialorder %v1521, %v1542
    %vm1570 = vcmp.eq.f32.partialorder %v1522, %v1544
    %vm1571 = vcmp.eq.f32.partialorder %v1523, %v1546
    %vm1572 = vcmp.eq.f32.partialorder %v1524, %v1548
    %vm1573 = vcmp.eq.f32.partialorder %v1525, %v1550
    %vm1574 = vcmp.eq.f32.partialorder %v1526, %v1552
    %vm1575 = vcmp.eq.f32.partialorder %v1527, %v1554
    %vm1576 = vcmp.eq.f32.partialorder %v1528, %v1556
    %vm1577 = vcmp.eq.f32.partialorder %v1529, %v1558
    %vm1578 = vcmp.eq.f32.partialorder %v1530, %v1560
    %vm1579 = vcmp.eq.f32.partialorder %v1531, %v1562
    %vm1580 = vcmp.eq.f32.partialorder %v1532, %v1564
    %v1581 = vsel %vm1565, %v235, 128
    %v1582 = vsel %vm1566, %v235, 128
    %v1583 = vsel %vm1567, %v235, 128
    %v1584 = vsel %vm1568, %v235, 128
    %v1585 = vsel %vm1569, %v235, 128
    %v1586 = vsel %vm1570, %v235, 128
    %v1587 = vsel %vm1571, %v235, 128
    %v1588 = vsel %vm1572, %v235, 128
    %v1589 = vsel %vm1573, %v235, 128
    %v1590 = vsel %vm1574, %v235, 128
    %v1591 = vsel %vm1575, %v235, 128
    %v1592 = vsel %vm1576, %v235, 128
    %v1593 = vsel %vm1577, %v235, 128
    %v1594 = vsel %vm1578, %v235, 128
    %v1595 = vsel %vm1579, %v235, 128
    %v1596 = vsel %vm1580, %v235, 128
    %v1597 = vand.u32 %v1581, 65535
    %v1598 = vshra.s32 %v1581, 16
    %v1599 = vcvt.s32.f32 %v1597
    %v1600 = vcvt.s32.f32 %v1598
    %1601 = vmin.xlane.f32.xlu0 %v1600
    %v1602 = vpop.xlane.xlu0 %1601
    %vm1603 = vcmp.eq.f32.partialorder %v1600, %v1602
    %v1604 = vsel %vm1603, %v1599, inf
    %1605 = vmin.xlane.f32.xlu0 %v1604
    %v1606 = vpop.xlane.xlu0 %1605
    %v1607 = vcvt.f32.s32 %v1606
    %v1608 = vcvt.f32.s32 %v1602
    %v1609 = vshll.u32 %v1608, 16
    %v1610 = vadd.s32 %v1609, %v1607
    %v1611 = vand.u32 %v1582, 65535
    %v1612 = vshra.s32 %v1582, 16
    %v1613 = vcvt.s32.f32 %v1611
    %v1614 = vcvt.s32.f32 %v1612
    %1615 = vmin.xlane.f32.xlu0 %v1614
    %v1616 = vpop.xlane.xlu0 %1615
    %vm1617 = vcmp.eq.f32.partialorder %v1614, %v1616
    %v1618 = vsel %vm1617, %v1613, inf
    %1619 = vmin.xlane.f32.xlu0 %v1618
    %v1620 = vpop.xlane.xlu0 %1619
    %v1621 = vcvt.f32.s32 %v1620
    %v1622 = vcvt.f32.s32 %v1616
    %v1623 = vshll.u32 %v1622, 16
    %v1624 = vadd.s32 %v1623, %v1621
    %v1625 = vand.u32 %v1583, 65535
    %v1626 = vshra.s32 %v1583, 16
    %v1627 = vcvt.s32.f32 %v1625
    %v1628 = vcvt.s32.f32 %v1626
    %1629 = vmin.xlane.f32.xlu0 %v1628
    %v1630 = vpop.xlane.xlu0 %1629
    %vm1631 = vcmp.eq.f32.partialorder %v1628, %v1630
    %v1632 = vsel %vm1631, %v1627, inf
    %1633 = vmin.xlane.f32.xlu0 %v1632
    %v1634 = vpop.xlane.xlu0 %1633
    %v1635 = vcvt.f32.s32 %v1634
    %v1636 = vcvt.f32.s32 %v1630
    %v1637 = vshll.u32 %v1636, 16
    %v1638 = vadd.s32 %v1637, %v1635
    %v1639 = vand.u32 %v1584, 65535
    %v1640 = vshra.s32 %v1584, 16
    %v1641 = vcvt.s32.f32 %v1639
    %v1642 = vcvt.s32.f32 %v1640
    %1643 = vmin.xlane.f32.xlu0 %v1642
    %v1644 = vpop.xlane.xlu0 %1643
    %vm1645 = vcmp.eq.f32.partialorder %v1642, %v1644
    %v1646 = vsel %vm1645, %v1641, inf
    %1647 = vmin.xlane.f32.xlu0 %v1646
    %v1648 = vpop.xlane.xlu0 %1647
    %v1649 = vcvt.f32.s32 %v1648
    %v1650 = vcvt.f32.s32 %v1644
    %v1651 = vshll.u32 %v1650, 16
    %v1652 = vadd.s32 %v1651, %v1649
    %v1653 = vand.u32 %v1585, 65535
    %v1654 = vshra.s32 %v1585, 16
    %v1655 = vcvt.s32.f32 %v1653
    %v1656 = vcvt.s32.f32 %v1654
    %1657 = vmin.xlane.f32.xlu0 %v1656
    %v1658 = vpop.xlane.xlu0 %1657
    %vm1659 = vcmp.eq.f32.partialorder %v1656, %v1658
    %v1660 = vsel %vm1659, %v1655, inf
    %1661 = vmin.xlane.f32.xlu0 %v1660
    %v1662 = vpop.xlane.xlu0 %1661
    %v1663 = vcvt.f32.s32 %v1662
    %v1664 = vcvt.f32.s32 %v1658
    %v1665 = vshll.u32 %v1664, 16
    %v1666 = vadd.s32 %v1665, %v1663
    %v1667 = vand.u32 %v1586, 65535
    %v1668 = vshra.s32 %v1586, 16
    %v1669 = vcvt.s32.f32 %v1667
    %v1670 = vcvt.s32.f32 %v1668
    %1671 = vmin.xlane.f32.xlu0 %v1670
    %v1672 = vpop.xlane.xlu0 %1671
    %vm1673 = vcmp.eq.f32.partialorder %v1670, %v1672
    %v1674 = vsel %vm1673, %v1669, inf
    %1675 = vmin.xlane.f32.xlu0 %v1674
    %v1676 = vpop.xlane.xlu0 %1675
    %v1677 = vcvt.f32.s32 %v1676
    %v1678 = vcvt.f32.s32 %v1672
    %v1679 = vshll.u32 %v1678, 16
    %v1680 = vadd.s32 %v1679, %v1677
    %v1681 = vand.u32 %v1587, 65535
    %v1682 = vshra.s32 %v1587, 16
    %v1683 = vcvt.s32.f32 %v1681
    %v1684 = vcvt.s32.f32 %v1682
    %1685 = vmin.xlane.f32.xlu0 %v1684
    %v1686 = vpop.xlane.xlu0 %1685
    %vm1687 = vcmp.eq.f32.partialorder %v1684, %v1686
    %v1688 = vsel %vm1687, %v1683, inf
    %1689 = vmin.xlane.f32.xlu0 %v1688
    %v1690 = vpop.xlane.xlu0 %1689
    %v1691 = vcvt.f32.s32 %v1690
    %v1692 = vcvt.f32.s32 %v1686
    %v1693 = vshll.u32 %v1692, 16
    %v1694 = vadd.s32 %v1693, %v1691
    %v1695 = vand.u32 %v1588, 65535
    %v1696 = vshra.s32 %v1588, 16
    %v1697 = vcvt.s32.f32 %v1695
    %v1698 = vcvt.s32.f32 %v1696
    %1699 = vmin.xlane.f32.xlu0 %v1698
    %v1700 = vpop.xlane.xlu0 %1699
    %vm1701 = vcmp.eq.f32.partialorder %v1698, %v1700
    %v1702 = vsel %vm1701, %v1697, inf
    %1703 = vmin.xlane.f32.xlu0 %v1702
    %v1704 = vpop.xlane.xlu0 %1703
    %v1705 = vcvt.f32.s32 %v1704
    %v1706 = vcvt.f32.s32 %v1700
    %v1707 = vshll.u32 %v1706, 16
    %v1708 = vadd.s32 %v1707, %v1705
    %v1709 = vand.u32 %v1589, 65535
    %v1710 = vshra.s32 %v1589, 16
    %v1711 = vcvt.s32.f32 %v1709
    %v1712 = vcvt.s32.f32 %v1710
    %1713 = vmin.xlane.f32.xlu0 %v1712
    %v1714 = vpop.xlane.xlu0 %1713
    %vm1715 = vcmp.eq.f32.partialorder %v1712, %v1714
    %v1716 = vsel %vm1715, %v1711, inf
    %1717 = vmin.xlane.f32.xlu0 %v1716
    %v1718 = vpop.xlane.xlu0 %1717
    %v1719 = vcvt.f32.s32 %v1718
    %v1720 = vcvt.f32.s32 %v1714
    %v1721 = vshll.u32 %v1720, 16
    %v1722 = vadd.s32 %v1721, %v1719
    %v1723 = vand.u32 %v1590, 65535
    %v1724 = vshra.s32 %v1590, 16
    %v1725 = vcvt.s32.f32 %v1723
    %v1726 = vcvt.s32.f32 %v1724
    %1727 = vmin.xlane.f32.xlu0 %v1726
    %v1728 = vpop.xlane.xlu0 %1727
    %vm1729 = vcmp.eq.f32.partialorder %v1726, %v1728
    %v1730 = vsel %vm1729, %v1725, inf
    %1731 = vmin.xlane.f32.xlu0 %v1730
    %v1732 = vpop.xlane.xlu0 %1731
    %v1733 = vcvt.f32.s32 %v1732
    %v1734 = vcvt.f32.s32 %v1728
    %v1735 = vshll.u32 %v1734, 16
    %v1736 = vadd.s32 %v1735, %v1733
    %v1737 = vand.u32 %v1591, 65535
    %v1738 = vshra.s32 %v1591, 16
    %v1739 = vcvt.s32.f32 %v1737
    %v1740 = vcvt.s32.f32 %v1738
    %1741 = vmin.xlane.f32.xlu0 %v1740
    %v1742 = vpop.xlane.xlu0 %1741
    %vm1743 = vcmp.eq.f32.partialorder %v1740, %v1742
    %v1744 = vsel %vm1743, %v1739, inf
    %1745 = vmin.xlane.f32.xlu0 %v1744
    %v1746 = vpop.xlane.xlu0 %1745
    %v1747 = vcvt.f32.s32 %v1746
    %v1748 = vcvt.f32.s32 %v1742
    %v1749 = vshll.u32 %v1748, 16
    %v1750 = vadd.s32 %v1749, %v1747
    %v1751 = vand.u32 %v1592, 65535
    %v1752 = vshra.s32 %v1592, 16
    %v1753 = vcvt.s32.f32 %v1751
    %v1754 = vcvt.s32.f32 %v1752
    %1755 = vmin.xlane.f32.xlu0 %v1754
    %v1756 = vpop.xlane.xlu0 %1755
    %vm1757 = vcmp.eq.f32.partialorder %v1754, %v1756
    %v1758 = vsel %vm1757, %v1753, inf
    %1759 = vmin.xlane.f32.xlu0 %v1758
    %v1760 = vpop.xlane.xlu0 %1759
    %v1761 = vcvt.f32.s32 %v1760
    %v1762 = vcvt.f32.s32 %v1756
    %v1763 = vshll.u32 %v1762, 16
    %v1764 = vadd.s32 %v1763, %v1761
    %v1765 = vand.u32 %v1593, 65535
    %v1766 = vshra.s32 %v1593, 16
    %v1767 = vcvt.s32.f32 %v1765
    %v1768 = vcvt.s32.f32 %v1766
    %1769 = vmin.xlane.f32.xlu0 %v1768
    %v1770 = vpop.xlane.xlu0 %1769
    %vm1771 = vcmp.eq.f32.partialorder %v1768, %v1770
    %v1772 = vsel %vm1771, %v1767, inf
    %1773 = vmin.xlane.f32.xlu0 %v1772
    %v1774 = vpop.xlane.xlu0 %1773
    %v1775 = vcvt.f32.s32 %v1774
    %v1776 = vcvt.f32.s32 %v1770
    %v1777 = vshll.u32 %v1776, 16
    %v1778 = vadd.s32 %v1777, %v1775
    %v1779 = vand.u32 %v1594, 65535
    %v1780 = vshra.s32 %v1594, 16
    %v1781 = vcvt.s32.f32 %v1779
    %v1782 = vcvt.s32.f32 %v1780
    %1783 = vmin.xlane.f32.xlu0 %v1782
    %v1784 = vpop.xlane.xlu0 %1783
    %vm1785 = vcmp.eq.f32.partialorder %v1782, %v1784
    %v1786 = vsel %vm1785, %v1781, inf
    %1787 = vmin.xlane.f32.xlu0 %v1786
    %v1788 = vpop.xlane.xlu0 %1787
    %v1789 = vcvt.f32.s32 %v1788
    %v1790 = vcvt.f32.s32 %v1784
    %v1791 = vshll.u32 %v1790, 16
    %v1792 = vadd.s32 %v1791, %v1789
    %v1793 = vand.u32 %v1595, 65535
    %v1794 = vshra.s32 %v1595, 16
    %v1795 = vcvt.s32.f32 %v1793
    %v1796 = vcvt.s32.f32 %v1794
    %1797 = vmin.xlane.f32.xlu0 %v1796
    %v1798 = vpop.xlane.xlu0 %1797
    %vm1799 = vcmp.eq.f32.partialorder %v1796, %v1798
    %v1800 = vsel %vm1799, %v1795, inf
    %1801 = vmin.xlane.f32.xlu0 %v1800
    %v1802 = vpop.xlane.xlu0 %1801
    %v1803 = vcvt.f32.s32 %v1802
    %v1804 = vcvt.f32.s32 %v1798
    %v1805 = vshll.u32 %v1804, 16
    %v1806 = vadd.s32 %v1805, %v1803
    %v1807 = vand.u32 %v1596, 65535
    %v1808 = vshra.s32 %v1596, 16
    %v1809 = vcvt.s32.f32 %v1807
    %v1810 = vcvt.s32.f32 %v1808
    %1811 = vmin.xlane.f32.xlu0 %v1810
    %v1812 = vpop.xlane.xlu0 %1811
    %vm1813 = vcmp.eq.f32.partialorder %v1810, %v1812
    %v1814 = vsel %vm1813, %v1809, inf
    %1815 = vmin.xlane.f32.xlu0 %v1814
    %v1816 = vpop.xlane.xlu0 %1815
    %v1817 = vcvt.f32.s32 %v1816
    %v1818 = vcvt.f32.s32 %v1812
    %v1819 = vshll.u32 %v1818, 16
    %v1820 = vadd.s32 %v1819, %v1817
    %vm1821 = vcmp.eq.s32.totalorder %v235, %v1610
    %vm1822 = vcmp.eq.s32.totalorder %v235, %v1624
    %vm1823 = vcmp.eq.s32.totalorder %v235, %v1638
    %vm1824 = vcmp.eq.s32.totalorder %v235, %v1652
    %vm1825 = vcmp.eq.s32.totalorder %v235, %v1666
    %vm1826 = vcmp.eq.s32.totalorder %v235, %v1680
    %vm1827 = vcmp.eq.s32.totalorder %v235, %v1694
    %vm1828 = vcmp.eq.s32.totalorder %v235, %v1708
    %vm1829 = vcmp.eq.s32.totalorder %v235, %v1722
    %vm1830 = vcmp.eq.s32.totalorder %v235, %v1736
    %vm1831 = vcmp.eq.s32.totalorder %v235, %v1750
    %vm1832 = vcmp.eq.s32.totalorder %v235, %v1764
    %vm1833 = vcmp.eq.s32.totalorder %v235, %v1778
    %vm1834 = vcmp.eq.s32.totalorder %v235, %v1792
    %vm1835 = vcmp.eq.s32.totalorder %v235, %v1806
    %vm1836 = vcmp.eq.s32.totalorder %v235, %v1820
    %v1837 = vsel %vm1821, inf, %v1517
    %v1838 = vsel %vm1822, inf, %v1518
    %v1839 = vsel %vm1823, inf, %v1519
    %v1840 = vsel %vm1824, inf, %v1520
    %v1841 = vsel %vm1825, inf, %v1521
    %v1842 = vsel %vm1826, inf, %v1522
    %v1843 = vsel %vm1827, inf, %v1523
    %v1844 = vsel %vm1828, inf, %v1524
    %v1845 = vsel %vm1829, inf, %v1525
    %v1846 = vsel %vm1830, inf, %v1526
    %v1847 = vsel %vm1831, inf, %v1527
    %v1848 = vsel %vm1832, inf, %v1528
    %v1849 = vsel %vm1833, inf, %v1529
    %v1850 = vsel %vm1834, inf, %v1530
    %v1851 = vsel %vm1835, inf, %v1531
    %v1852 = vsel %vm1836, inf, %v1532
    %vm1853 = vcmp.eq.f32.partialorder %v1837, inf
    %vm1854 = vcmp.eq.f32.partialorder %v1838, inf
    %vm1855 = vcmp.eq.f32.partialorder %v1839, inf
    %vm1856 = vcmp.eq.f32.partialorder %v1840, inf
    %vm1857 = vcmp.eq.f32.partialorder %v1841, inf
    %vm1858 = vcmp.eq.f32.partialorder %v1842, inf
    %vm1859 = vcmp.eq.f32.partialorder %v1843, inf
    %vm1860 = vcmp.eq.f32.partialorder %v1844, inf
    %vm1861 = vcmp.eq.f32.partialorder %v1845, inf
    %vm1862 = vcmp.eq.f32.partialorder %v1846, inf
    %vm1863 = vcmp.eq.f32.partialorder %v1847, inf
    %vm1864 = vcmp.eq.f32.partialorder %v1848, inf
    %vm1865 = vcmp.eq.f32.partialorder %v1849, inf
    %vm1866 = vcmp.eq.f32.partialorder %v1850, inf
    %vm1867 = vcmp.eq.f32.partialorder %v1851, inf
    %vm1868 = vcmp.eq.f32.partialorder %v1852, inf
    %vm1869 = vcmp.ne.s32.totalorder %v235, %v330
    %vm1870 = vcmp.ne.s32.totalorder %v235, %v344
    %vm1871 = vcmp.ne.s32.totalorder %v235, %v358
    %vm1872 = vcmp.ne.s32.totalorder %v235, %v372
    %vm1873 = vcmp.ne.s32.totalorder %v235, %v386
    %vm1874 = vcmp.ne.s32.totalorder %v235, %v400
    %vm1875 = vcmp.ne.s32.totalorder %v235, %v414
    %vm1876 = vcmp.ne.s32.totalorder %v235, %v428
    %vm1877 = vcmp.ne.s32.totalorder %v235, %v442
    %vm1878 = vcmp.ne.s32.totalorder %v235, %v456
    %vm1879 = vcmp.ne.s32.totalorder %v235, %v470
    %vm1880 = vcmp.ne.s32.totalorder %v235, %v484
    %vm1881 = vcmp.ne.s32.totalorder %v235, %v498
    %vm1882 = vcmp.ne.s32.totalorder %v235, %v512
    %vm1883 = vcmp.ne.s32.totalorder %v235, %v526
    %vm1884 = vcmp.ne.s32.totalorder %v235, %v540
    %vm1885 = vmand %vm1853, %vm1869
    %vm1886 = vmand %vm1854, %vm1870
    %vm1887 = vmand %vm1855, %vm1871
    %vm1888 = vmand %vm1856, %vm1872
    %vm1889 = vmand %vm1857, %vm1873
    %vm1890 = vmand %vm1858, %vm1874
    %vm1891 = vmand %vm1859, %vm1875
    %vm1892 = vmand %vm1860, %vm1876
    %vm1893 = vmand %vm1861, %vm1877
    %vm1894 = vmand %vm1862, %vm1878
    %vm1895 = vmand %vm1863, %vm1879
    %vm1896 = vmand %vm1864, %vm1880
    %vm1897 = vmand %vm1865, %vm1881
    %vm1898 = vmand %vm1866, %vm1882
    %vm1899 = vmand %vm1867, %vm1883
    %vm1900 = vmand %vm1868, %vm1884
    %vm1901 = vmand %vm1885, %vm236
    %vm1902 = vmand %vm1886, %vm236
    %vm1903 = vmand %vm1887, %vm236
    %vm1904 = vmand %vm1888, %vm236
    %vm1905 = vmand %vm1889, %vm236
    %vm1906 = vmand %vm1890, %vm236
    %vm1907 = vmand %vm1891, %vm236
    %vm1908 = vmand %vm1892, %vm236
    %vm1909 = vmand %vm1893, %vm236
    %vm1910 = vmand %vm1894, %vm236
    %vm1911 = vmand %vm1895, %vm236
    %vm1912 = vmand %vm1896, %vm236
    %vm1913 = vmand %vm1897, %vm236
    %vm1914 = vmand %vm1898, %vm236
    %vm1915 = vmand %vm1899, %vm236
    %vm1916 = vmand %vm1900, %vm236
    %v1917 = vsel %vm1901, %v218, 0.0
    %v1918 = vsel %vm1902, %v219, 0.0
    %v1919 = vsel %vm1903, %v220, 0.0
    %v1920 = vsel %vm1904, %v221, 0.0
    %v1921 = vsel %vm1905, %v222, 0.0
    %v1922 = vsel %vm1906, %v223, 0.0
    %v1923 = vsel %vm1907, %v224, 0.0
    %v1924 = vsel %vm1908, %v225, 0.0
    %v1925 = vsel %vm1909, %v226, 0.0
    %v1926 = vsel %vm1910, %v227, 0.0
    %v1927 = vsel %vm1911, %v228, 0.0
    %v1928 = vsel %vm1912, %v229, 0.0
    %v1929 = vsel %vm1913, %v230, 0.0
    %v1930 = vsel %vm1914, %v231, 0.0
    %v1931 = vsel %vm1915, %v232, 0.0
    %v1932 = vsel %vm1916, %v233, 0.0
    %1933 = vst [vmem:[#allocation5] sm:$0xff] %v1917
    %1934 = vst [vmem:[#allocation5 + $0x8] sm:$0xff] %v1918
    %1935 = vst [vmem:[#allocation5 + $0x10] sm:$0xff] %v1919
    %1936 = vst [vmem:[#allocation5 + $0x18] sm:$0xff] %v1920
    %1937 = vst [vmem:[#allocation5 + $0x20] sm:$0xff] %v1921
    %1938 = vst [vmem:[#allocation5 + $0x28] sm:$0xff] %v1922
    %1939 = vst [vmem:[#allocation5 + $0x30] sm:$0xff] %v1923
    %1940 = vst [vmem:[#allocation5 + $0x38] sm:$0xff] %v1924
    %1941 = vst [vmem:[#allocation5 + $0x40] sm:$0xff] %v1925
    %1942 = vst [vmem:[#allocation5 + $0x48] sm:$0xff] %v1926
    %1943 = vst [vmem:[#allocation5 + $0x50] sm:$0xff] %v1927
    %1944 = vst [vmem:[#allocation5 + $0x58] sm:$0xff] %v1928
    %1945 = vst [vmem:[#allocation5 + $0x60] sm:$0xff] %v1929
    %1946 = vst [vmem:[#allocation5 + $0x68] sm:$0xff] %v1930
    %1947 = vst [vmem:[#allocation5 + $0x70] sm:$0xff] %v1931
    %1948 = vst [vmem:[#allocation5 + $0x78] sm:$0xff] %v1932
    // Predicated region
    $region10: #{tpu_custom_call.1} parent=1 // pred_check
      _
    $region11: #{tpu_custom_call.1} parent=1 // pred_check_branch
      %1950 = sbr.rel (0) target = $region13
    $region12: #{tpu_custom_call.1} parent=1 // pred_region
      %s1952 = ssub.s32 2048, 2048
      %1953 = vsyncadd [#allocation4], %s1952
      %s1954 = sshll.u32 [#allocation5], 4
      %s1955 = int_to_ptr.vmem [resolvable:$true] %s1954
      %1960 = dma.vmem_to_hbm [thread:$0]  %s1955, 2048, %s1, [#allocation4], 128, 128, 8
    $region13: #{tpu_custom_call.1} parent=1 // pred_fallthru
      _
    // Predicated region
    $region14: #{tpu_custom_call.1} parent=1 // pred_check
      _
    $region15: #{tpu_custom_call.1} parent=1 // pred_check_branch
      %1962 = sbr.rel (0) target = $region17
    $region16: #{tpu_custom_call.1} parent=1 // pred_region
      %1963 = dma.done [#allocation4], 2048
    $region17: #{tpu_custom_call.1} parent=1 // pred_fallthru
      _
    %1964 = vsyncpa [#allocation3], 1
    %1965 = vsyncpa [#allocation4], 1

</llo_original>
